<compile_context>
chip_gen: v5e
topology: v5e:2x2
jax: 0.10.0
libtpu: 0.0.40
codegen_flags: <defaults>
</compile_context>

<pallas_src>
import math

import numpy as np
import jax
import jax.numpy as jnp
from jax.experimental import pallas as pl
from jax.experimental.pallas import tpu as pltpu

BN_EPS = 1e-5

LAYERS = [
    dict(ic=5,   oc=16,  k=3, s=2, p=2, pool=True,  bn=True),   # layer1
    dict(ic=16,  oc=32,  k=3, s=2, p=2, pool=True,  bn=True),   # layer2
    dict(ic=32,  oc=64,  k=3, s=1, p=2, pool=False, bn=True),   # layer3
    dict(ic=64,  oc=32,  k=1, s=1, p=0, pool=False, bn=True),   # layer4
    dict(ic=32,  oc=64,  k=3, s=1, p=1, pool=True,  bn=True),   # layer5
    dict(ic=64,  oc=128, k=3, s=1, p=1, pool=False, bn=True),   # layer6
    dict(ic=128, oc=1,   k=1, s=1, p=0, pool=False, bn=False),  # layer7
]

LANE = 128  # lane-dense padding for the OC=1 head output


# ----------------------------------------------------------------------------
# Static (trace-time) gather-matrix builders: row layout is (b*H + h)*W + w.
# ----------------------------------------------------------------------------
def _conv_gathers(n, h, w, k, s, p):
    """Per-tap 0/1 gather matrices mapping input rows -> conv output rows."""
    oh = (h + 2 * p - k) // s + 1
    ow = (w + 2 * p - k) // s + 1
    taps = []
    for i in range(k):
        for j in range(k):
            g = np.zeros((n * oh * ow, n * h * w), np.float32)
            any_nz = False
            for b in range(n):
                for oy in range(oh):
                    for ox in range(ow):
                        ih = oy * s + i - p
                        iw = ox * s + j - p
                        if 0 <= ih < h and 0 <= iw < w:
                            g[(b * oh + oy) * ow + ox, (b * h + ih) * w + iw] = 1.0
                            any_nz = True
            if any_nz:                      # skip taps that only see zero padding
                taps.append((i, j, g))
    return taps, oh, ow


def _pool_gathers(n, h, w):
    """Four 0/1 gather matrices for MaxPool2d(2, 2) (floor mode)."""
    oh, ow = h // 2, w // 2
    mats = []
    for di in range(2):
        for dj in range(2):
            g = np.zeros((n * oh * ow, n * h * w), np.float32)
            for b in range(n):
                for oy in range(oh):
                    for ox in range(ow):
                        g[(b * oh + oy) * ow + ox,
                          (b * h + 2 * oy + di) * w + 2 * ox + dj] = 1.0
            mats.append(g)
    return mats, oh, ow


def _im2col(x_nhwc, k, s, p):
    """Wrapper-side im2col for layer 1 only (depends only on the raw input)."""
    n, h, w, c = x_nhwc.shape
    xp = jnp.pad(x_nhwc, ((0, 0), (p, p), (p, p), (0, 0)))
    oh = (h + 2 * p - k) // s + 1
    ow = (w + 2 * p - k) // s + 1
    cols = []
    for i in range(k):
        for j in range(k):
            cols.append(xp[:, i:i + s * (oh - 1) + 1:s,
                           j:j + s * (ow - 1) + 1:s, :])
    patches = jnp.concatenate(cols, axis=-1)         # (N, OH, OW, k*k*C)
    return patches.reshape(n * oh * ow, k * k * c), oh, ow


# ----------------------------------------------------------------------------
# Fused forward: one pallas_call for the whole network.
# ----------------------------------------------------------------------------
def _fused_forward(x_nchw, params):
    n = x_nchw.shape[0]
    x_nhwc = jnp.transpose(x_nchw, (0, 2, 3, 1)).astype(jnp.float32)

    steps = []
    inputs = []
    alphas = []

    def add(arr):
        inputs.append(arr)
        return len(inputs) - 1

    def bn_pack(p):
        return jnp.stack([p["b"], p["gamma"], p["beta"]])      # (3, OC)

    # ---- layer 1: patches built in the wrapper, matmul + BN + PReLU in-kernel
    cfg0, p0 = LAYERS[0], params[0]
    x1, oh, ow = _im2col(x_nhwc, cfg0["k"], cfg0["s"], cfg0["p"])
    w1 = jnp.transpose(p0["w"], (2, 3, 1, 0)).reshape(
        cfg0["k"] * cfg0["k"] * cfg0["ic"], cfg0["oc"])          # (k*k*IC, OC)
    steps.append(dict(kind="conv_first", x=add(x1), w=add(w1), bnp=add(bn_pack(p0)),
                      alpha=len(alphas), rows=float(n * oh * ow)))
    alphas.append(p0["alpha"])
    cur = (n, oh, ow)
    if cfg0["pool"]:
        mats, ph, pw = _pool_gathers(*cur)
        steps.append(dict(kind="pool", p=add(jnp.asarray(np.stack(mats)))))
        cur = (n, ph, pw)

    # ---- layers 2..6: in-kernel gather-matmul convs + BN + PReLU (+ pool)
    for li in range(1, 6):
        cfg, p = LAYERS[li], params[li]
        if cfg["k"] == 1:
            steps.append(dict(kind="conv1x1", w=add(p["w"][:, :, 0, 0].T),
                              bnp=add(bn_pack(p)), alpha=len(alphas),
                              rows=float(cur[0] * cur[1] * cur[2])))
            alphas.append(p["alpha"])
        else:
            taps, oh, ow = _conv_gathers(cur[0], cur[1], cur[2],
                                         cfg["k"], cfg["s"], cfg["p"])
            gstack = jnp.asarray(np.stack([g for (_, _, g) in taps]))   # (T,Mo,Mi)
            wstack = jnp.stack([p["w"][:, :, i, j].T for (i, j, _) in taps])  # (T,IC,OC)
            steps.append(dict(kind="conv", g=add(gstack), w=add(wstack),
                              bnp=add(bn_pack(p)), ntaps=len(taps),
                              alpha=len(alphas), rows=float(cur[0] * oh * ow)))
            alphas.append(p["alpha"])
            cur = (cur[0], oh, ow)
        if cfg["pool"]:
            mats, ph, pw = _pool_gathers(*cur)
            steps.append(dict(kind="pool", p=add(jnp.asarray(np.stack(mats)))))
            cur = (cur[0], ph, pw)

    # ---- layer 7: 1x1 conv + sigmoid, padded to 128 lanes for a dense store
    p6, cfg6 = params[6], LAYERS[6]
    oc7 = cfg6["oc"]
    w7 = jnp.zeros((cfg6["ic"], LANE), jnp.float32).at[:, :oc7].set(p6["w"][:, :, 0, 0].T)
    b7 = jnp.zeros((1, LANE), jnp.float32).at[:, :oc7].set(p6["b"].reshape(1, oc7))
    steps.append(dict(kind="head", w=add(w7), b=add(b7)))

    m_out = cur[0] * cur[1] * cur[2]
    alphas_arr = jnp.stack(alphas).astype(jnp.float32)           # (num_bn_layers,)
    n_inputs = len(inputs)

    # ------------------------------------------------------------------ kernel
    def kernel(alphas_ref, *refs):
        in_refs = refs[:n_inputs]
        o_ref = refs[n_inputs]

        def bn_prelu(y, bnp_ref, alpha_idx, rows):
            prm = bnp_ref[...]                                   # (3, OC)
            y = y + prm[0:1, :]                                  # conv bias
            inv_m = 1.0 / rows
            s1 = jnp.sum(y, axis=0, keepdims=True)               # one-pass stats
            s2 = jnp.sum(y * y, axis=0, keepdims=True)
            mean = s1 * inv_m
            var = jnp.maximum(s2 * inv_m - mean * mean, 0.0)
            z = prm[1:2, :] * (y - mean) * jax.lax.rsqrt(var + BN_EPS) + prm[2:3, :]
            a = alphas_ref[alpha_idx]                            # PReLU (1 param)
            return jnp.where(z >= 0.0, z, a * z)

        h = None
        for st in steps:
            kind = st["kind"]
            if kind == "conv_first":
                y = jnp.dot(in_refs[st["x"]][...], in_refs[st["w"]][...],
                            preferred_element_type=jnp.float32)
                h = bn_prelu(y, in_refs[st["bnp"]], st["alpha"], st["rows"])
            elif kind == "conv":
                g_ref, w_ref = in_refs[st["g"]], in_refs[st["w"]]
                acc = None
                for t in range(st["ntaps"]):
                    xt = jnp.dot(g_ref[t], h, preferred_element_type=jnp.float32)
                    yt = jnp.dot(xt, w_ref[t], preferred_element_type=jnp.float32)
                    acc = yt if acc is None else acc + yt
                h = bn_prelu(acc, in_refs[st["bnp"]], st["alpha"], st["rows"])
            elif kind == "conv1x1":
                y = jnp.dot(h, in_refs[st["w"]][...],
                            preferred_element_type=jnp.float32)
                h = bn_prelu(y, in_refs[st["bnp"]], st["alpha"], st["rows"])
            elif kind == "pool":
                p_ref = in_refs[st["p"]]
                m01 = jnp.maximum(
                    jnp.dot(p_ref[0], h, preferred_element_type=jnp.float32),
                    jnp.dot(p_ref[1], h, preferred_element_type=jnp.float32))
                m23 = jnp.maximum(
                    jnp.dot(p_ref[2], h, preferred_element_type=jnp.float32),
                    jnp.dot(p_ref[3], h, preferred_element_type=jnp.float32))
                h = jnp.maximum(m01, m23)
            else:  # "head": 1x1 conv + sigmoid, lane-dense store
                y = jnp.dot(h, in_refs[st["w"]][...],
                            preferred_element_type=jnp.float32)
                y = y + in_refs[st["b"]][...]
                o_ref[...] = pl.reciprocal(1.0 + jnp.exp(-y), approx=True)

    vmem = pl.BlockSpec(memory_space=pltpu.MemorySpace.VMEM)
    smem = pl.BlockSpec(memory_space=pltpu.MemorySpace.SMEM)
    out = pl.pallas_call(
        kernel,
        out_shape=jax.ShapeDtypeStruct((m_out, LANE), jnp.float32),
        in_specs=[smem] + [vmem] * n_inputs,
        out_specs=vmem,
    )(alphas_arr, *inputs)

    # column 0 holds the OC=1 head; squeeze like torch's .squeeze()
    return jnp.squeeze(out[:, 0].reshape(cur[0], cur[1], cur[2]))


convnet_forward = jax.jit(_fused_forward)


# ----------------------------------------------------------------------------
# Pure-JAX reference (independent of the kernel path) for a sanity check.
# ----------------------------------------------------------------------------
def convnet_reference(x_nchw, params):
    x = x_nchw.astype(jnp.float32)
    for cfg, p in zip(LAYERS, params):
        x = jax.lax.conv_general_dilated(
            x, p["w"], window_strides=(cfg["s"], cfg["s"]),
            padding=[(cfg["p"], cfg["p"]), (cfg["p"], cfg["p"])],
            dimension_numbers=("NCHW", "OIHW", "NCHW"),
            precision=jax.lax.Precision.HIGHEST)
        x = x + p["b"].reshape(1, -1, 1, 1)
        if cfg["bn"]:
            mean = jnp.mean(x, axis=(0, 2, 3), keepdims=True)
            var = jnp.mean((x - mean) ** 2, axis=(0, 2, 3), keepdims=True)
            x = (p["gamma"].reshape(1, -1, 1, 1) * (x - mean)
                 * jax.lax.rsqrt(var + BN_EPS) + p["beta"].reshape(1, -1, 1, 1))
            x = jnp.where(x >= 0.0, x, p["alpha"] * x)
        else:
            x = jax.nn.sigmoid(x)
        if cfg["pool"]:
            _, _, h, w = x.shape
            xc = x[:, :, :(h // 2) * 2, :(w // 2) * 2]
            x = jnp.maximum(
                jnp.maximum(xc[:, :, 0::2, 0::2], xc[:, :, 0::2, 1::2]),
                jnp.maximum(xc[:, :, 1::2, 0::2], xc[:, :, 1::2, 1::2]))
    return jnp.squeeze(x)


# ----------------------------------------------------------------------------
# Parameters (deterministic, PyTorch-style init; PReLU init=0.001 per module)
# ----------------------------------------------------------------------------
def init_params(key):
    params = []
    for cfg in LAYERS:
        key, kw_, kb_ = jax.random.split(key, 3)
        fan_in = cfg["ic"] * cfg["k"] * cfg["k"]
        bound = 1.0 / math.sqrt(fan_in)
        w = jax.random.uniform(kw_, (cfg["oc"], cfg["ic"], cfg["k"], cfg["k"]),
                               jnp.float32, -bound, bound)
        b = jax.random.uniform(kb_, (cfg["oc"],), jnp.float32, -bound, bound)
        p = dict(w=w, b=b)
        if cfg["bn"]:
            p["gamma"] = jnp.ones((cfg["oc"],), jnp.float32)
            p["beta"] = jnp.zeros((cfg["oc"],), jnp.float32)
            p["alpha"] = jnp.array(0.001, jnp.float32)   # nn.PReLU(init=0.001)
        params.append(p)
    return params


if __name__ == "__main__":
    key = jax.random.PRNGKey(0)
    x = jax.random.normal(key, (2, 5, 16, 16), jnp.float32)   # NCHW, like PyTorch
    params = init_params(jax.random.PRNGKey(42))

    out = jax.block_until_ready(convnet_forward(x, params))
    ref = jax.block_until_ready(convnet_reference(x, params))

    assert out.shape == (2,), out.shape
    assert bool(jnp.all(jnp.isfinite(out)))
    assert float(jnp.max(jnp.abs(out - ref))) < 2e-2, (out, ref)
    print("KERNEL_OK")
</pallas_src>

<mosaic_0001>
module attributes {stable_mosaic.version = 11 : i64} {
  func.func @kernel(%arg0: memref<6xf32, #tpu.memory_space<smem>>, %arg1: memref<162x45xf32, #tpu.memory_space<vmem>>, %arg2: memref<45x16xf32, #tpu.memory_space<vmem>>, %arg3: memref<3x16xf32, #tpu.memory_space<vmem>>, %arg4: memref<4x32x162xf32, #tpu.memory_space<vmem>>, %arg5: memref<9x18x32xf32, #tpu.memory_space<vmem>>, %arg6: memref<9x16x32xf32, #tpu.memory_space<vmem>>, %arg7: memref<3x32xf32, #tpu.memory_space<vmem>>, %arg8: memref<4x2x18xf32, #tpu.memory_space<vmem>>, %arg9: memref<9x18x2xf32, #tpu.memory_space<vmem>>, %arg10: memref<9x32x64xf32, #tpu.memory_space<vmem>>, %arg11: memref<3x64xf32, #tpu.memory_space<vmem>>, %arg12: memref<64x32xf32, #tpu.memory_space<vmem>>, %arg13: memref<3x32xf32, #tpu.memory_space<vmem>>, %arg14: memref<9x18x18xf32, #tpu.memory_space<vmem>>, %arg15: memref<9x32x64xf32, #tpu.memory_space<vmem>>, %arg16: memref<3x64xf32, #tpu.memory_space<vmem>>, %arg17: memref<4x2x18xf32, #tpu.memory_space<vmem>>, %arg18: memref<1x2x2xf32, #tpu.memory_space<vmem>>, %arg19: memref<1x64x128xf32, #tpu.memory_space<vmem>>, %arg20: memref<3x128xf32, #tpu.memory_space<vmem>>, %arg21: memref<128x128xf32, #tpu.memory_space<vmem>>, %arg22: memref<1x128xf32, #tpu.memory_space<vmem>>, %arg23: memref<2x128xf32, #tpu.memory_space<vmem>>) attributes {dimension_semantics = [], scalar_prefetch = 0 : i64, scratch_operands = 0 : i64, tpu.core_type = #tpu.core_type<tc>} {
    %c0 = arith.constant 0 : index
    %c0_0 = arith.constant 0 : index
    %0 = vector.load %arg1[%c0, %c0_0] : memref<162x45xf32, #tpu.memory_space<vmem>>, vector<162x45xf32>
    %c0_1 = arith.constant 0 : index
    %c0_2 = arith.constant 0 : index
    %1 = vector.load %arg2[%c0_1, %c0_2] : memref<45x16xf32, #tpu.memory_space<vmem>>, vector<45x16xf32>
    %cst = arith.constant dense<0.000000e+00> : vector<162x16xf32>
    %2 = tpu.matmul %0, %1, %cst {dimension_numbers = #tpu.dot_dimension_numbers<[1], [0], [0], [1], [0, 0, 1, 1], [], []>} : vector<162x45xf32>, vector<45x16xf32>, vector<162x16xf32> -> vector<162x16xf32>
    %c0_3 = arith.constant 0 : index
    %c0_4 = arith.constant 0 : index
    %3 = vector.load %arg3[%c0_3, %c0_4] : memref<3x16xf32, #tpu.memory_space<vmem>>, vector<3x16xf32>
    %4 = vector.extract_strided_slice %3 {offsets = [0, 0], sizes = [1, 16], strides = [1, 1]} : vector<3x16xf32> to vector<1x16xf32>
    %5 = vector.broadcast %4 : vector<1x16xf32> to vector<162x16xf32>
    %6 = arith.addf %2, %5 : vector<162x16xf32>
    %cst_5 = arith.constant dense<0.000000e+00> : vector<16xf32>
    %7 = vector.multi_reduction <add>, %6, %cst_5 [0] : vector<162x16xf32> to vector<16xf32>
    %8 = vector.shape_cast %7 : vector<16xf32> to vector<1x16xf32>
    %9 = arith.mulf %6, %6 : vector<162x16xf32>
    %cst_6 = arith.constant dense<0.000000e+00> : vector<16xf32>
    %10 = vector.multi_reduction <add>, %9, %cst_6 [0] : vector<162x16xf32> to vector<16xf32>
    %11 = vector.shape_cast %10 : vector<16xf32> to vector<1x16xf32>
    %cst_7 = arith.constant 0.00617283955 : f32
    %12 = vector.broadcast %cst_7 : f32 to vector<1x16xf32>
    %13 = arith.mulf %8, %12 : vector<1x16xf32>
    %cst_8 = arith.constant 0.00617283955 : f32
    %14 = vector.broadcast %cst_8 : f32 to vector<1x16xf32>
    %15 = arith.mulf %11, %14 : vector<1x16xf32>
    %16 = arith.mulf %13, %13 : vector<1x16xf32>
    %17 = arith.subf %15, %16 : vector<1x16xf32>
    %cst_9 = arith.constant 0.000000e+00 : f32
    %18 = vector.broadcast %cst_9 : f32 to vector<1x16xf32>
    %19 = arith.maximumf %17, %18 : vector<1x16xf32>
    %20 = vector.extract_strided_slice %3 {offsets = [1, 0], sizes = [1, 16], strides = [1, 1]} : vector<3x16xf32> to vector<1x16xf32>
    %21 = vector.broadcast %13 : vector<1x16xf32> to vector<162x16xf32>
    %22 = arith.subf %6, %21 : vector<162x16xf32>
    %23 = vector.broadcast %20 : vector<1x16xf32> to vector<162x16xf32>
    %24 = arith.mulf %23, %22 : vector<162x16xf32>
    %cst_10 = arith.constant 9.99999974E-6 : f32
    %25 = vector.broadcast %cst_10 : f32 to vector<1x16xf32>
    %26 = arith.addf %19, %25 : vector<1x16xf32>
    %27 = math.rsqrt %26 : vector<1x16xf32>
    %28 = vector.broadcast %27 : vector<1x16xf32> to vector<162x16xf32>
    %29 = arith.mulf %24, %28 : vector<162x16xf32>
    %30 = vector.extract_strided_slice %3 {offsets = [2, 0], sizes = [1, 16], strides = [1, 1]} : vector<3x16xf32> to vector<1x16xf32>
    %31 = vector.broadcast %30 : vector<1x16xf32> to vector<162x16xf32>
    %32 = arith.addf %29, %31 : vector<162x16xf32>
    %c0_11 = arith.constant 0 : index
    %33 = memref.load %arg0[%c0_11] : memref<6xf32, #tpu.memory_space<smem>>
    %cst_12 = arith.constant 0.000000e+00 : f32
    %34 = vector.broadcast %cst_12 : f32 to vector<162x16xf32>
    %35 = arith.cmpf oge, %32, %34 : vector<162x16xf32>
    %36 = vector.broadcast %33 : f32 to vector<162x16xf32>
    %37 = arith.mulf %36, %32 : vector<162x16xf32>
    %38 = arith.select %35, %32, %37 : vector<162x16xi1>, vector<162x16xf32>
    %c0_13 = arith.constant 0 : index
    %c0_14 = arith.constant 0 : index
    %c0_15 = arith.constant 0 : index
    %39 = vector.load %arg4[%c0_13, %c0_14, %c0_15] : memref<4x32x162xf32, #tpu.memory_space<vmem>>, vector<1x32x162xf32>
    %40 = vector.shape_cast %39 : vector<1x32x162xf32> to vector<32x162xf32>
    %cst_16 = arith.constant dense<0.000000e+00> : vector<32x16xf32>
    %41 = tpu.matmul %40, %38, %cst_16 {dimension_numbers = #tpu.dot_dimension_numbers<[1], [0], [0], [1], [0, 0, 1, 1], [], []>} : vector<32x162xf32>, vector<162x16xf32>, vector<32x16xf32> -> vector<32x16xf32>
    %c1 = arith.constant 1 : index
    %c0_17 = arith.constant 0 : index
    %c0_18 = arith.constant 0 : index
    %42 = vector.load %arg4[%c1, %c0_17, %c0_18] : memref<4x32x162xf32, #tpu.memory_space<vmem>>, vector<1x32x162xf32>
    %43 = vector.shape_cast %42 : vector<1x32x162xf32> to vector<32x162xf32>
    %cst_19 = arith.constant dense<0.000000e+00> : vector<32x16xf32>
    %44 = tpu.matmul %43, %38, %cst_19 {dimension_numbers = #tpu.dot_dimension_numbers<[1], [0], [0], [1], [0, 0, 1, 1], [], []>} : vector<32x162xf32>, vector<162x16xf32>, vector<32x16xf32> -> vector<32x16xf32>
    %45 = arith.maximumf %41, %44 : vector<32x16xf32>
    %c2 = arith.constant 2 : index
    %c0_20 = arith.constant 0 : index
    %c0_21 = arith.constant 0 : index
    %46 = vector.load %arg4[%c2, %c0_20, %c0_21] : memref<4x32x162xf32, #tpu.memory_space<vmem>>, vector<1x32x162xf32>
    %47 = vector.shape_cast %46 : vector<1x32x162xf32> to vector<32x162xf32>
    %cst_22 = arith.constant dense<0.000000e+00> : vector<32x16xf32>
    %48 = tpu.matmul %47, %38, %cst_22 {dimension_numbers = #tpu.dot_dimension_numbers<[1], [0], [0], [1], [0, 0, 1, 1], [], []>} : vector<32x162xf32>, vector<162x16xf32>, vector<32x16xf32> -> vector<32x16xf32>
    %c3 = arith.constant 3 : index
    %c0_23 = arith.constant 0 : index
    %c0_24 = arith.constant 0 : index
    %49 = vector.load %arg4[%c3, %c0_23, %c0_24] : memref<4x32x162xf32, #tpu.memory_space<vmem>>, vector<1x32x162xf32>
    %50 = vector.shape_cast %49 : vector<1x32x162xf32> to vector<32x162xf32>
    %cst_25 = arith.constant dense<0.000000e+00> : vector<32x16xf32>
    %51 = tpu.matmul %50, %38, %cst_25 {dimension_numbers = #tpu.dot_dimension_numbers<[1], [0], [0], [1], [0, 0, 1, 1], [], []>} : vector<32x162xf32>, vector<162x16xf32>, vector<32x16xf32> -> vector<32x16xf32>
    %52 = arith.maximumf %48, %51 : vector<32x16xf32>
    %53 = arith.maximumf %45, %52 : vector<32x16xf32>
    %c0_26 = arith.constant 0 : index
    %c0_27 = arith.constant 0 : index
    %c0_28 = arith.constant 0 : index
    %54 = vector.load %arg5[%c0_26, %c0_27, %c0_28] : memref<9x18x32xf32, #tpu.memory_space<vmem>>, vector<1x18x32xf32>
    %55 = vector.shape_cast %54 : vector<1x18x32xf32> to vector<18x32xf32>
    %cst_29 = arith.constant dense<0.000000e+00> : vector<18x16xf32>
    %56 = tpu.matmul %55, %53, %cst_29 {dimension_numbers = #tpu.dot_dimension_numbers<[1], [0], [0], [1], [0, 0, 1, 1], [], []>} : vector<18x32xf32>, vector<32x16xf32>, vector<18x16xf32> -> vector<18x16xf32>
    %c0_30 = arith.constant 0 : index
    %c0_31 = arith.constant 0 : index
    %c0_32 = arith.constant 0 : index
    %57 = vector.load %arg6[%c0_30, %c0_31, %c0_32] : memref<9x16x32xf32, #tpu.memory_space<vmem>>, vector<1x16x32xf32>
    %58 = vector.shape_cast %57 : vector<1x16x32xf32> to vector<16x32xf32>
    %cst_33 = arith.constant dense<0.000000e+00> : vector<18x32xf32>
    %59 = tpu.matmul %56, %58, %cst_33 {dimension_numbers = #tpu.dot_dimension_numbers<[1], [0], [0], [1], [0, 0, 1, 1], [], []>} : vector<18x16xf32>, vector<16x32xf32>, vector<18x32xf32> -> vector<18x32xf32>
    %c1_34 = arith.constant 1 : index
    %c0_35 = arith.constant 0 : index
    %c0_36 = arith.constant 0 : index
    %60 = vector.load %arg5[%c1_34, %c0_35, %c0_36] : memref<9x18x32xf32, #tpu.memory_space<vmem>>, vector<1x18x32xf32>
    %61 = vector.shape_cast %60 : vector<1x18x32xf32> to vector<18x32xf32>
    %cst_37 = arith.constant dense<0.000000e+00> : vector<18x16xf32>
    %62 = tpu.matmul %61, %53, %cst_37 {dimension_numbers = #tpu.dot_dimension_numbers<[1], [0], [0], [1], [0, 0, 1, 1], [], []>} : vector<18x32xf32>, vector<32x16xf32>, vector<18x16xf32> -> vector<18x16xf32>
    %c1_38 = arith.constant 1 : index
    %c0_39 = arith.constant 0 : index
    %c0_40 = arith.constant 0 : index
    %63 = vector.load %arg6[%c1_38, %c0_39, %c0_40] : memref<9x16x32xf32, #tpu.memory_space<vmem>>, vector<1x16x32xf32>
    %64 = vector.shape_cast %63 : vector<1x16x32xf32> to vector<16x32xf32>
    %cst_41 = arith.constant dense<0.000000e+00> : vector<18x32xf32>
    %65 = tpu.matmul %62, %64, %cst_41 {dimension_numbers = #tpu.dot_dimension_numbers<[1], [0], [0], [1], [0, 0, 1, 1], [], []>} : vector<18x16xf32>, vector<16x32xf32>, vector<18x32xf32> -> vector<18x32xf32>
    %66 = arith.addf %59, %65 : vector<18x32xf32>
    %c2_42 = arith.constant 2 : index
    %c0_43 = arith.constant 0 : index
    %c0_44 = arith.constant 0 : index
    %67 = vector.load %arg5[%c2_42, %c0_43, %c0_44] : memref<9x18x32xf32, #tpu.memory_space<vmem>>, vector<1x18x32xf32>
    %68 = vector.shape_cast %67 : vector<1x18x32xf32> to vector<18x32xf32>
    %cst_45 = arith.constant dense<0.000000e+00> : vector<18x16xf32>
    %69 = tpu.matmul %68, %53, %cst_45 {dimension_numbers = #tpu.dot_dimension_numbers<[1], [0], [0], [1], [0, 0, 1, 1], [], []>} : vector<18x32xf32>, vector<32x16xf32>, vector<18x16xf32> -> vector<18x16xf32>
    %c2_46 = arith.constant 2 : index
    %c0_47 = arith.constant 0 : index
    %c0_48 = arith.constant 0 : index
    %70 = vector.load %arg6[%c2_46, %c0_47, %c0_48] : memref<9x16x32xf32, #tpu.memory_space<vmem>>, vector<1x16x32xf32>
    %71 = vector.shape_cast %70 : vector<1x16x32xf32> to vector<16x32xf32>
    %cst_49 = arith.constant dense<0.000000e+00> : vector<18x32xf32>
    %72 = tpu.matmul %69, %71, %cst_49 {dimension_numbers = #tpu.dot_dimension_numbers<[1], [0], [0], [1], [0, 0, 1, 1], [], []>} : vector<18x16xf32>, vector<16x32xf32>, vector<18x32xf32> -> vector<18x32xf32>
    %73 = arith.addf %66, %72 : vector<18x32xf32>
    %c3_50 = arith.constant 3 : index
    %c0_51 = arith.constant 0 : index
    %c0_52 = arith.constant 0 : index
    %74 = vector.load %arg5[%c3_50, %c0_51, %c0_52] : memref<9x18x32xf32, #tpu.memory_space<vmem>>, vector<1x18x32xf32>
    %75 = vector.shape_cast %74 : vector<1x18x32xf32> to vector<18x32xf32>
    %cst_53 = arith.constant dense<0.000000e+00> : vector<18x16xf32>
    %76 = tpu.matmul %75, %53, %cst_53 {dimension_numbers = #tpu.dot_dimension_numbers<[1], [0], [0], [1], [0, 0, 1, 1], [], []>} : vector<18x32xf32>, vector<32x16xf32>, vector<18x16xf32> -> vector<18x16xf32>
    %c3_54 = arith.constant 3 : index
    %c0_55 = arith.constant 0 : index
    %c0_56 = arith.constant 0 : index
    %77 = vector.load %arg6[%c3_54, %c0_55, %c0_56] : memref<9x16x32xf32, #tpu.memory_space<vmem>>, vector<1x16x32xf32>
    %78 = vector.shape_cast %77 : vector<1x16x32xf32> to vector<16x32xf32>
    %cst_57 = arith.constant dense<0.000000e+00> : vector<18x32xf32>
    %79 = tpu.matmul %76, %78, %cst_57 {dimension_numbers = #tpu.dot_dimension_numbers<[1], [0], [0], [1], [0, 0, 1, 1], [], []>} : vector<18x16xf32>, vector<16x32xf32>, vector<18x32xf32> -> vector<18x32xf32>
    %80 = arith.addf %73, %79 : vector<18x32xf32>
    %c4 = arith.constant 4 : index
    %c0_58 = arith.constant 0 : index
    %c0_59 = arith.constant 0 : index
    %81 = vector.load %arg5[%c4, %c0_58, %c0_59] : memref<9x18x32xf32, #tpu.memory_space<vmem>>, vector<1x18x32xf32>
    %82 = vector.shape_cast %81 : vector<1x18x32xf32> to vector<18x32xf32>
    %cst_60 = arith.constant dense<0.000000e+00> : vector<18x16xf32>
    %83 = tpu.matmul %82, %53, %cst_60 {dimension_numbers = #tpu.dot_dimension_numbers<[1], [0], [0], [1], [0, 0, 1, 1], [], []>} : vector<18x32xf32>, vector<32x16xf32>, vector<18x16xf32> -> vector<18x16xf32>
    %c4_61 = arith.constant 4 : index
    %c0_62 = arith.constant 0 : index
    %c0_63 = arith.constant 0 : index
    %84 = vector.load %arg6[%c4_61, %c0_62, %c0_63] : memref<9x16x32xf32, #tpu.memory_space<vmem>>, vector<1x16x32xf32>
    %85 = vector.shape_cast %84 : vector<1x16x32xf32> to vector<16x32xf32>
    %cst_64 = arith.constant dense<0.000000e+00> : vector<18x32xf32>
    %86 = tpu.matmul %83, %85, %cst_64 {dimension_numbers = #tpu.dot_dimension_numbers<[1], [0], [0], [1], [0, 0, 1, 1], [], []>} : vector<18x16xf32>, vector<16x32xf32>, vector<18x32xf32> -> vector<18x32xf32>
    %87 = arith.addf %80, %86 : vector<18x32xf32>
    %c5 = arith.constant 5 : index
    %c0_65 = arith.constant 0 : index
    %c0_66 = arith.constant 0 : index
    %88 = vector.load %arg5[%c5, %c0_65, %c0_66] : memref<9x18x32xf32, #tpu.memory_space<vmem>>, vector<1x18x32xf32>
    %89 = vector.shape_cast %88 : vector<1x18x32xf32> to vector<18x32xf32>
    %cst_67 = arith.constant dense<0.000000e+00> : vector<18x16xf32>
    %90 = tpu.matmul %89, %53, %cst_67 {dimension_numbers = #tpu.dot_dimension_numbers<[1], [0], [0], [1], [0, 0, 1, 1], [], []>} : vector<18x32xf32>, vector<32x16xf32>, vector<18x16xf32> -> vector<18x16xf32>
    %c5_68 = arith.constant 5 : index
    %c0_69 = arith.constant 0 : index
    %c0_70 = arith.constant 0 : index
    %91 = vector.load %arg6[%c5_68, %c0_69, %c0_70] : memref<9x16x32xf32, #tpu.memory_space<vmem>>, vector<1x16x32xf32>
    %92 = vector.shape_cast %91 : vector<1x16x32xf32> to vector<16x32xf32>
    %cst_71 = arith.constant dense<0.000000e+00> : vector<18x32xf32>
    %93 = tpu.matmul %90, %92, %cst_71 {dimension_numbers = #tpu.dot_dimension_numbers<[1], [0], [0], [1], [0, 0, 1, 1], [], []>} : vector<18x16xf32>, vector<16x32xf32>, vector<18x32xf32> -> vector<18x32xf32>
    %94 = arith.addf %87, %93 : vector<18x32xf32>
    %c6 = arith.constant 6 : index
    %c0_72 = arith.constant 0 : index
    %c0_73 = arith.constant 0 : index
    %95 = vector.load %arg5[%c6, %c0_72, %c0_73] : memref<9x18x32xf32, #tpu.memory_space<vmem>>, vector<1x18x32xf32>
    %96 = vector.shape_cast %95 : vector<1x18x32xf32> to vector<18x32xf32>
    %cst_74 = arith.constant dense<0.000000e+00> : vector<18x16xf32>
    %97 = tpu.matmul %96, %53, %cst_74 {dimension_numbers = #tpu.dot_dimension_numbers<[1], [0], [0], [1], [0, 0, 1, 1], [], []>} : vector<18x32xf32>, vector<32x16xf32>, vector<18x16xf32> -> vector<18x16xf32>
    %c6_75 = arith.constant 6 : index
    %c0_76 = arith.constant 0 : index
    %c0_77 = arith.constant 0 : index
    %98 = vector.load %arg6[%c6_75, %c0_76, %c0_77] : memref<9x16x32xf32, #tpu.memory_space<vmem>>, vector<1x16x32xf32>
    %99 = vector.shape_cast %98 : vector<1x16x32xf32> to vector<16x32xf32>
    %cst_78 = arith.constant dense<0.000000e+00> : vector<18x32xf32>
    %100 = tpu.matmul %97, %99, %cst_78 {dimension_numbers = #tpu.dot_dimension_numbers<[1], [0], [0], [1], [0, 0, 1, 1], [], []>} : vector<18x16xf32>, vector<16x32xf32>, vector<18x32xf32> -> vector<18x32xf32>
    %101 = arith.addf %94, %100 : vector<18x32xf32>
    %c7 = arith.constant 7 : index
    %c0_79 = arith.constant 0 : index
    %c0_80 = arith.constant 0 : index
    %102 = vector.load %arg5[%c7, %c0_79, %c0_80] : memref<9x18x32xf32, #tpu.memory_space<vmem>>, vector<1x18x32xf32>
    %103 = vector.shape_cast %102 : vector<1x18x32xf32> to vector<18x32xf32>
    %cst_81 = arith.constant dense<0.000000e+00> : vector<18x16xf32>
    %104 = tpu.matmul %103, %53, %cst_81 {dimension_numbers = #tpu.dot_dimension_numbers<[1], [0], [0], [1], [0, 0, 1, 1], [], []>} : vector<18x32xf32>, vector<32x16xf32>, vector<18x16xf32> -> vector<18x16xf32>
    %c7_82 = arith.constant 7 : index
    %c0_83 = arith.constant 0 : index
    %c0_84 = arith.constant 0 : index
    %105 = vector.load %arg6[%c7_82, %c0_83, %c0_84] : memref<9x16x32xf32, #tpu.memory_space<vmem>>, vector<1x16x32xf32>
    %106 = vector.shape_cast %105 : vector<1x16x32xf32> to vector<16x32xf32>
    %cst_85 = arith.constant dense<0.000000e+00> : vector<18x32xf32>
    %107 = tpu.matmul %104, %106, %cst_85 {dimension_numbers = #tpu.dot_dimension_numbers<[1], [0], [0], [1], [0, 0, 1, 1], [], []>} : vector<18x16xf32>, vector<16x32xf32>, vector<18x32xf32> -> vector<18x32xf32>
    %108 = arith.addf %101, %107 : vector<18x32xf32>
    %c8 = arith.constant 8 : index
    %c0_86 = arith.constant 0 : index
    %c0_87 = arith.constant 0 : index
    %109 = vector.load %arg5[%c8, %c0_86, %c0_87] : memref<9x18x32xf32, #tpu.memory_space<vmem>>, vector<1x18x32xf32>
    %110 = vector.shape_cast %109 : vector<1x18x32xf32> to vector<18x32xf32>
    %cst_88 = arith.constant dense<0.000000e+00> : vector<18x16xf32>
    %111 = tpu.matmul %110, %53, %cst_88 {dimension_numbers = #tpu.dot_dimension_numbers<[1], [0], [0], [1], [0, 0, 1, 1], [], []>} : vector<18x32xf32>, vector<32x16xf32>, vector<18x16xf32> -> vector<18x16xf32>
    %c8_89 = arith.constant 8 : index
    %c0_90 = arith.constant 0 : index
    %c0_91 = arith.constant 0 : index
    %112 = vector.load %arg6[%c8_89, %c0_90, %c0_91] : memref<9x16x32xf32, #tpu.memory_space<vmem>>, vector<1x16x32xf32>
    %113 = vector.shape_cast %112 : vector<1x16x32xf32> to vector<16x32xf32>
    %cst_92 = arith.constant dense<0.000000e+00> : vector<18x32xf32>
    %114 = tpu.matmul %111, %113, %cst_92 {dimension_numbers = #tpu.dot_dimension_numbers<[1], [0], [0], [1], [0, 0, 1, 1], [], []>} : vector<18x16xf32>, vector<16x32xf32>, vector<18x32xf32> -> vector<18x32xf32>
    %115 = arith.addf %108, %114 : vector<18x32xf32>
    %c0_93 = arith.constant 0 : index
    %c0_94 = arith.constant 0 : index
    %116 = vector.load %arg7[%c0_93, %c0_94] : memref<3x32xf32, #tpu.memory_space<vmem>>, vector<3x32xf32>
    %117 = vector.extract_strided_slice %116 {offsets = [0, 0], sizes = [1, 32], strides = [1, 1]} : vector<3x32xf32> to vector<1x32xf32>
    %118 = vector.broadcast %117 : vector<1x32xf32> to vector<18x32xf32>
    %119 = arith.addf %115, %118 : vector<18x32xf32>
    %cst_95 = arith.constant dense<0.000000e+00> : vector<32xf32>
    %120 = vector.multi_reduction <add>, %119, %cst_95 [0] : vector<18x32xf32> to vector<32xf32>
    %121 = vector.shape_cast %120 : vector<32xf32> to vector<1x32xf32>
    %122 = arith.mulf %119, %119 : vector<18x32xf32>
    %cst_96 = arith.constant dense<0.000000e+00> : vector<32xf32>
    %123 = vector.multi_reduction <add>, %122, %cst_96 [0] : vector<18x32xf32> to vector<32xf32>
    %124 = vector.shape_cast %123 : vector<32xf32> to vector<1x32xf32>
    %cst_97 = arith.constant 0.055555556 : f32
    %125 = vector.broadcast %cst_97 : f32 to vector<1x32xf32>
    %126 = arith.mulf %121, %125 : vector<1x32xf32>
    %cst_98 = arith.constant 0.055555556 : f32
    %127 = vector.broadcast %cst_98 : f32 to vector<1x32xf32>
    %128 = arith.mulf %124, %127 : vector<1x32xf32>
    %129 = arith.mulf %126, %126 : vector<1x32xf32>
    %130 = arith.subf %128, %129 : vector<1x32xf32>
    %cst_99 = arith.constant 0.000000e+00 : f32
    %131 = vector.broadcast %cst_99 : f32 to vector<1x32xf32>
    %132 = arith.maximumf %130, %131 : vector<1x32xf32>
    %133 = vector.extract_strided_slice %116 {offsets = [1, 0], sizes = [1, 32], strides = [1, 1]} : vector<3x32xf32> to vector<1x32xf32>
    %134 = vector.broadcast %126 : vector<1x32xf32> to vector<18x32xf32>
    %135 = arith.subf %119, %134 : vector<18x32xf32>
    %136 = vector.broadcast %133 : vector<1x32xf32> to vector<18x32xf32>
    %137 = arith.mulf %136, %135 : vector<18x32xf32>
    %cst_100 = arith.constant 9.99999974E-6 : f32
    %138 = vector.broadcast %cst_100 : f32 to vector<1x32xf32>
    %139 = arith.addf %132, %138 : vector<1x32xf32>
    %140 = math.rsqrt %139 : vector<1x32xf32>
    %141 = vector.broadcast %140 : vector<1x32xf32> to vector<18x32xf32>
    %142 = arith.mulf %137, %141 : vector<18x32xf32>
    %143 = vector.extract_strided_slice %116 {offsets = [2, 0], sizes = [1, 32], strides = [1, 1]} : vector<3x32xf32> to vector<1x32xf32>
    %144 = vector.broadcast %143 : vector<1x32xf32> to vector<18x32xf32>
    %145 = arith.addf %142, %144 : vector<18x32xf32>
    %c1_101 = arith.constant 1 : index
    %146 = memref.load %arg0[%c1_101] : memref<6xf32, #tpu.memory_space<smem>>
    %cst_102 = arith.constant 0.000000e+00 : f32
    %147 = vector.broadcast %cst_102 : f32 to vector<18x32xf32>
    %148 = arith.cmpf oge, %145, %147 : vector<18x32xf32>
    %149 = vector.broadcast %146 : f32 to vector<18x32xf32>
    %150 = arith.mulf %149, %145 : vector<18x32xf32>
    %151 = arith.select %148, %145, %150 : vector<18x32xi1>, vector<18x32xf32>
    %c0_103 = arith.constant 0 : index
    %c0_104 = arith.constant 0 : index
    %c0_105 = arith.constant 0 : index
    %152 = vector.load %arg8[%c0_103, %c0_104, %c0_105] : memref<4x2x18xf32, #tpu.memory_space<vmem>>, vector<1x2x18xf32>
    %153 = vector.shape_cast %152 : vector<1x2x18xf32> to vector<2x18xf32>
    %cst_106 = arith.constant dense<0.000000e+00> : vector<2x32xf32>
    %154 = tpu.matmul %153, %151, %cst_106 {dimension_numbers = #tpu.dot_dimension_numbers<[1], [0], [0], [1], [0, 0, 1, 1], [], []>} : vector<2x18xf32>, vector<18x32xf32>, vector<2x32xf32> -> vector<2x32xf32>
    %c1_107 = arith.constant 1 : index
    %c0_108 = arith.constant 0 : index
    %c0_109 = arith.constant 0 : index
    %155 = vector.load %arg8[%c1_107, %c0_108, %c0_109] : memref<4x2x18xf32, #tpu.memory_space<vmem>>, vector<1x2x18xf32>
    %156 = vector.shape_cast %155 : vector<1x2x18xf32> to vector<2x18xf32>
    %cst_110 = arith.constant dense<0.000000e+00> : vector<2x32xf32>
    %157 = tpu.matmul %156, %151, %cst_110 {dimension_numbers = #tpu.dot_dimension_numbers<[1], [0], [0], [1], [0, 0, 1, 1], [], []>} : vector<2x18xf32>, vector<18x32xf32>, vector<2x32xf32> -> vector<2x32xf32>
    %158 = arith.maximumf %154, %157 : vector<2x32xf32>
    %c2_111 = arith.constant 2 : index
    %c0_112 = arith.constant 0 : index
    %c0_113 = arith.constant 0 : index
    %159 = vector.load %arg8[%c2_111, %c0_112, %c0_113] : memref<4x2x18xf32, #tpu.memory_space<vmem>>, vector<1x2x18xf32>
    %160 = vector.shape_cast %159 : vector<1x2x18xf32> to vector<2x18xf32>
    %cst_114 = arith.constant dense<0.000000e+00> : vector<2x32xf32>
    %161 = tpu.matmul %160, %151, %cst_114 {dimension_numbers = #tpu.dot_dimension_numbers<[1], [0], [0], [1], [0, 0, 1, 1], [], []>} : vector<2x18xf32>, vector<18x32xf32>, vector<2x32xf32> -> vector<2x32xf32>
    %c3_115 = arith.constant 3 : index
    %c0_116 = arith.constant 0 : index
    %c0_117 = arith.constant 0 : index
    %162 = vector.load %arg8[%c3_115, %c0_116, %c0_117] : memref<4x2x18xf32, #tpu.memory_space<vmem>>, vector<1x2x18xf32>
    %163 = vector.shape_cast %162 : vector<1x2x18xf32> to vector<2x18xf32>
    %cst_118 = arith.constant dense<0.000000e+00> : vector<2x32xf32>
    %164 = tpu.matmul %163, %151, %cst_118 {dimension_numbers = #tpu.dot_dimension_numbers<[1], [0], [0], [1], [0, 0, 1, 1], [], []>} : vector<2x18xf32>, vector<18x32xf32>, vector<2x32xf32> -> vector<2x32xf32>
    %165 = arith.maximumf %161, %164 : vector<2x32xf32>
    %166 = arith.maximumf %158, %165 : vector<2x32xf32>
    %c0_119 = arith.constant 0 : index
    %c0_120 = arith.constant 0 : index
    %c0_121 = arith.constant 0 : index
    %167 = vector.load %arg9[%c0_119, %c0_120, %c0_121] : memref<9x18x2xf32, #tpu.memory_space<vmem>>, vector<1x18x2xf32>
    %168 = vector.shape_cast %167 : vector<1x18x2xf32> to vector<18x2xf32>
    %cst_122 = arith.constant dense<0.000000e+00> : vector<18x32xf32>
    %169 = tpu.matmul %168, %166, %cst_122 {dimension_numbers = #tpu.dot_dimension_numbers<[1], [0], [0], [1], [0, 0, 1, 1], [], []>} : vector<18x2xf32>, vector<2x32xf32>, vector<18x32xf32> -> vector<18x32xf32>
    %c0_123 = arith.constant 0 : index
    %c0_124 = arith.constant 0 : index
    %c0_125 = arith.constant 0 : index
    %170 = vector.load %arg10[%c0_123, %c0_124, %c0_125] : memref<9x32x64xf32, #tpu.memory_space<vmem>>, vector<1x32x64xf32>
    %171 = vector.shape_cast %170 : vector<1x32x64xf32> to vector<32x64xf32>
    %cst_126 = arith.constant dense<0.000000e+00> : vector<18x64xf32>
    %172 = tpu.matmul %169, %171, %cst_126 {dimension_numbers = #tpu.dot_dimension_numbers<[1], [0], [0], [1], [0, 0, 1, 1], [], []>} : vector<18x32xf32>, vector<32x64xf32>, vector<18x64xf32> -> vector<18x64xf32>
    %c1_127 = arith.constant 1 : index
    %c0_128 = arith.constant 0 : index
    %c0_129 = arith.constant 0 : index
    %173 = vector.load %arg9[%c1_127, %c0_128, %c0_129] : memref<9x18x2xf32, #tpu.memory_space<vmem>>, vector<1x18x2xf32>
    %174 = vector.shape_cast %173 : vector<1x18x2xf32> to vector<18x2xf32>
    %cst_130 = arith.constant dense<0.000000e+00> : vector<18x32xf32>
    %175 = tpu.matmul %174, %166, %cst_130 {dimension_numbers = #tpu.dot_dimension_numbers<[1], [0], [0], [1], [0, 0, 1, 1], [], []>} : vector<18x2xf32>, vector<2x32xf32>, vector<18x32xf32> -> vector<18x32xf32>
    %c1_131 = arith.constant 1 : index
    %c0_132 = arith.constant 0 : index
    %c0_133 = arith.constant 0 : index
    %176 = vector.load %arg10[%c1_131, %c0_132, %c0_133] : memref<9x32x64xf32, #tpu.memory_space<vmem>>, vector<1x32x64xf32>
    %177 = vector.shape_cast %176 : vector<1x32x64xf32> to vector<32x64xf32>
    %cst_134 = arith.constant dense<0.000000e+00> : vector<18x64xf32>
    %178 = tpu.matmul %175, %177, %cst_134 {dimension_numbers = #tpu.dot_dimension_numbers<[1], [0], [0], [1], [0, 0, 1, 1], [], []>} : vector<18x32xf32>, vector<32x64xf32>, vector<18x64xf32> -> vector<18x64xf32>
    %179 = arith.addf %172, %178 : vector<18x64xf32>
    %c2_135 = arith.constant 2 : index
    %c0_136 = arith.constant 0 : index
    %c0_137 = arith.constant 0 : index
    %180 = vector.load %arg9[%c2_135, %c0_136, %c0_137] : memref<9x18x2xf32, #tpu.memory_space<vmem>>, vector<1x18x2xf32>
    %181 = vector.shape_cast %180 : vector<1x18x2xf32> to vector<18x2xf32>
    %cst_138 = arith.constant dense<0.000000e+00> : vector<18x32xf32>
    %182 = tpu.matmul %181, %166, %cst_138 {dimension_numbers = #tpu.dot_dimension_numbers<[1], [0], [0], [1], [0, 0, 1, 1], [], []>} : vector<18x2xf32>, vector<2x32xf32>, vector<18x32xf32> -> vector<18x32xf32>
    %c2_139 = arith.constant 2 : index
    %c0_140 = arith.constant 0 : index
    %c0_141 = arith.constant 0 : index
    %183 = vector.load %arg10[%c2_139, %c0_140, %c0_141] : memref<9x32x64xf32, #tpu.memory_space<vmem>>, vector<1x32x64xf32>
    %184 = vector.shape_cast %183 : vector<1x32x64xf32> to vector<32x64xf32>
    %cst_142 = arith.constant dense<0.000000e+00> : vector<18x64xf32>
    %185 = tpu.matmul %182, %184, %cst_142 {dimension_numbers = #tpu.dot_dimension_numbers<[1], [0], [0], [1], [0, 0, 1, 1], [], []>} : vector<18x32xf32>, vector<32x64xf32>, vector<18x64xf32> -> vector<18x64xf32>
    %186 = arith.addf %179, %185 : vector<18x64xf32>
    %c3_143 = arith.constant 3 : index
    %c0_144 = arith.constant 0 : index
    %c0_145 = arith.constant 0 : index
    %187 = vector.load %arg9[%c3_143, %c0_144, %c0_145] : memref<9x18x2xf32, #tpu.memory_space<vmem>>, vector<1x18x2xf32>
    %188 = vector.shape_cast %187 : vector<1x18x2xf32> to vector<18x2xf32>
    %cst_146 = arith.constant dense<0.000000e+00> : vector<18x32xf32>
    %189 = tpu.matmul %188, %166, %cst_146 {dimension_numbers = #tpu.dot_dimension_numbers<[1], [0], [0], [1], [0, 0, 1, 1], [], []>} : vector<18x2xf32>, vector<2x32xf32>, vector<18x32xf32> -> vector<18x32xf32>
    %c3_147 = arith.constant 3 : index
    %c0_148 = arith.constant 0 : index
    %c0_149 = arith.constant 0 : index
    %190 = vector.load %arg10[%c3_147, %c0_148, %c0_149] : memref<9x32x64xf32, #tpu.memory_space<vmem>>, vector<1x32x64xf32>
    %191 = vector.shape_cast %190 : vector<1x32x64xf32> to vector<32x64xf32>
    %cst_150 = arith.constant dense<0.000000e+00> : vector<18x64xf32>
    %192 = tpu.matmul %189, %191, %cst_150 {dimension_numbers = #tpu.dot_dimension_numbers<[1], [0], [0], [1], [0, 0, 1, 1], [], []>} : vector<18x32xf32>, vector<32x64xf32>, vector<18x64xf32> -> vector<18x64xf32>
    %193 = arith.addf %186, %192 : vector<18x64xf32>
    %c4_151 = arith.constant 4 : index
    %c0_152 = arith.constant 0 : index
    %c0_153 = arith.constant 0 : index
    %194 = vector.load %arg9[%c4_151, %c0_152, %c0_153] : memref<9x18x2xf32, #tpu.memory_space<vmem>>, vector<1x18x2xf32>
    %195 = vector.shape_cast %194 : vector<1x18x2xf32> to vector<18x2xf32>
    %cst_154 = arith.constant dense<0.000000e+00> : vector<18x32xf32>
    %196 = tpu.matmul %195, %166, %cst_154 {dimension_numbers = #tpu.dot_dimension_numbers<[1], [0], [0], [1], [0, 0, 1, 1], [], []>} : vector<18x2xf32>, vector<2x32xf32>, vector<18x32xf32> -> vector<18x32xf32>
    %c4_155 = arith.constant 4 : index
    %c0_156 = arith.constant 0 : index
    %c0_157 = arith.constant 0 : index
    %197 = vector.load %arg10[%c4_155, %c0_156, %c0_157] : memref<9x32x64xf32, #tpu.memory_space<vmem>>, vector<1x32x64xf32>
    %198 = vector.shape_cast %197 : vector<1x32x64xf32> to vector<32x64xf32>
    %cst_158 = arith.constant dense<0.000000e+00> : vector<18x64xf32>
    %199 = tpu.matmul %196, %198, %cst_158 {dimension_numbers = #tpu.dot_dimension_numbers<[1], [0], [0], [1], [0, 0, 1, 1], [], []>} : vector<18x32xf32>, vector<32x64xf32>, vector<18x64xf32> -> vector<18x64xf32>
    %200 = arith.addf %193, %199 : vector<18x64xf32>
    %c5_159 = arith.constant 5 : index
    %c0_160 = arith.constant 0 : index
    %c0_161 = arith.constant 0 : index
    %201 = vector.load %arg9[%c5_159, %c0_160, %c0_161] : memref<9x18x2xf32, #tpu.memory_space<vmem>>, vector<1x18x2xf32>
    %202 = vector.shape_cast %201 : vector<1x18x2xf32> to vector<18x2xf32>
    %cst_162 = arith.constant dense<0.000000e+00> : vector<18x32xf32>
    %203 = tpu.matmul %202, %166, %cst_162 {dimension_numbers = #tpu.dot_dimension_numbers<[1], [0], [0], [1], [0, 0, 1, 1], [], []>} : vector<18x2xf32>, vector<2x32xf32>, vector<18x32xf32> -> vector<18x32xf32>
    %c5_163 = arith.constant 5 : index
    %c0_164 = arith.constant 0 : index
    %c0_165 = arith.constant 0 : index
    %204 = vector.load %arg10[%c5_163, %c0_164, %c0_165] : memref<9x32x64xf32, #tpu.memory_space<vmem>>, vector<1x32x64xf32>
    %205 = vector.shape_cast %204 : vector<1x32x64xf32> to vector<32x64xf32>
    %cst_166 = arith.constant dense<0.000000e+00> : vector<18x64xf32>
    %206 = tpu.matmul %203, %205, %cst_166 {dimension_numbers = #tpu.dot_dimension_numbers<[1], [0], [0], [1], [0, 0, 1, 1], [], []>} : vector<18x32xf32>, vector<32x64xf32>, vector<18x64xf32> -> vector<18x64xf32>
    %207 = arith.addf %200, %206 : vector<18x64xf32>
    %c6_167 = arith.constant 6 : index
    %c0_168 = arith.constant 0 : index
    %c0_169 = arith.constant 0 : index
    %208 = vector.load %arg9[%c6_167, %c0_168, %c0_169] : memref<9x18x2xf32, #tpu.memory_space<vmem>>, vector<1x18x2xf32>
    %209 = vector.shape_cast %208 : vector<1x18x2xf32> to vector<18x2xf32>
    %cst_170 = arith.constant dense<0.000000e+00> : vector<18x32xf32>
    %210 = tpu.matmul %209, %166, %cst_170 {dimension_numbers = #tpu.dot_dimension_numbers<[1], [0], [0], [1], [0, 0, 1, 1], [], []>} : vector<18x2xf32>, vector<2x32xf32>, vector<18x32xf32> -> vector<18x32xf32>
    %c6_171 = arith.constant 6 : index
    %c0_172 = arith.constant 0 : index
    %c0_173 = arith.constant 0 : index
    %211 = vector.load %arg10[%c6_171, %c0_172, %c0_173] : memref<9x32x64xf32, #tpu.memory_space<vmem>>, vector<1x32x64xf32>
    %212 = vector.shape_cast %211 : vector<1x32x64xf32> to vector<32x64xf32>
    %cst_174 = arith.constant dense<0.000000e+00> : vector<18x64xf32>
    %213 = tpu.matmul %210, %212, %cst_174 {dimension_numbers = #tpu.dot_dimension_numbers<[1], [0], [0], [1], [0, 0, 1, 1], [], []>} : vector<18x32xf32>, vector<32x64xf32>, vector<18x64xf32> -> vector<18x64xf32>
    %214 = arith.addf %207, %213 : vector<18x64xf32>
    %c7_175 = arith.constant 7 : index
    %c0_176 = arith.constant 0 : index
    %c0_177 = arith.constant 0 : index
    %215 = vector.load %arg9[%c7_175, %c0_176, %c0_177] : memref<9x18x2xf32, #tpu.memory_space<vmem>>, vector<1x18x2xf32>
    %216 = vector.shape_cast %215 : vector<1x18x2xf32> to vector<18x2xf32>
    %cst_178 = arith.constant dense<0.000000e+00> : vector<18x32xf32>
    %217 = tpu.matmul %216, %166, %cst_178 {dimension_numbers = #tpu.dot_dimension_numbers<[1], [0], [0], [1], [0, 0, 1, 1], [], []>} : vector<18x2xf32>, vector<2x32xf32>, vector<18x32xf32> -> vector<18x32xf32>
    %c7_179 = arith.constant 7 : index
    %c0_180 = arith.constant 0 : index
    %c0_181 = arith.constant 0 : index
    %218 = vector.load %arg10[%c7_179, %c0_180, %c0_181] : memref<9x32x64xf32, #tpu.memory_space<vmem>>, vector<1x32x64xf32>
    %219 = vector.shape_cast %218 : vector<1x32x64xf32> to vector<32x64xf32>
    %cst_182 = arith.constant dense<0.000000e+00> : vector<18x64xf32>
    %220 = tpu.matmul %217, %219, %cst_182 {dimension_numbers = #tpu.dot_dimension_numbers<[1], [0], [0], [1], [0, 0, 1, 1], [], []>} : vector<18x32xf32>, vector<32x64xf32>, vector<18x64xf32> -> vector<18x64xf32>
    %221 = arith.addf %214, %220 : vector<18x64xf32>
    %c8_183 = arith.constant 8 : index
    %c0_184 = arith.constant 0 : index
    %c0_185 = arith.constant 0 : index
    %222 = vector.load %arg9[%c8_183, %c0_184, %c0_185] : memref<9x18x2xf32, #tpu.memory_space<vmem>>, vector<1x18x2xf32>
    %223 = vector.shape_cast %222 : vector<1x18x2xf32> to vector<18x2xf32>
    %cst_186 = arith.constant dense<0.000000e+00> : vector<18x32xf32>
    %224 = tpu.matmul %223, %166, %cst_186 {dimension_numbers = #tpu.dot_dimension_numbers<[1], [0], [0], [1], [0, 0, 1, 1], [], []>} : vector<18x2xf32>, vector<2x32xf32>, vector<18x32xf32> -> vector<18x32xf32>
    %c8_187 = arith.constant 8 : index
    %c0_188 = arith.constant 0 : index
    %c0_189 = arith.constant 0 : index
    %225 = vector.load %arg10[%c8_187, %c0_188, %c0_189] : memref<9x32x64xf32, #tpu.memory_space<vmem>>, vector<1x32x64xf32>
    %226 = vector.shape_cast %225 : vector<1x32x64xf32> to vector<32x64xf32>
    %cst_190 = arith.constant dense<0.000000e+00> : vector<18x64xf32>
    %227 = tpu.matmul %224, %226, %cst_190 {dimension_numbers = #tpu.dot_dimension_numbers<[1], [0], [0], [1], [0, 0, 1, 1], [], []>} : vector<18x32xf32>, vector<32x64xf32>, vector<18x64xf32> -> vector<18x64xf32>
    %228 = arith.addf %221, %227 : vector<18x64xf32>
    %c0_191 = arith.constant 0 : index
    %c0_192 = arith.constant 0 : index
    %229 = vector.load %arg11[%c0_191, %c0_192] : memref<3x64xf32, #tpu.memory_space<vmem>>, vector<3x64xf32>
    %230 = vector.extract_strided_slice %229 {offsets = [0, 0], sizes = [1, 64], strides = [1, 1]} : vector<3x64xf32> to vector<1x64xf32>
    %231 = vector.broadcast %230 : vector<1x64xf32> to vector<18x64xf32>
    %232 = arith.addf %228, %231 : vector<18x64xf32>
    %cst_193 = arith.constant dense<0.000000e+00> : vector<64xf32>
    %233 = vector.multi_reduction <add>, %232, %cst_193 [0] : vector<18x64xf32> to vector<64xf32>
    %234 = vector.shape_cast %233 : vector<64xf32> to vector<1x64xf32>
    %235 = arith.mulf %232, %232 : vector<18x64xf32>
    %cst_194 = arith.constant dense<0.000000e+00> : vector<64xf32>
    %236 = vector.multi_reduction <add>, %235, %cst_194 [0] : vector<18x64xf32> to vector<64xf32>
    %237 = vector.shape_cast %236 : vector<64xf32> to vector<1x64xf32>
    %cst_195 = arith.constant 0.055555556 : f32
    %238 = vector.broadcast %cst_195 : f32 to vector<1x64xf32>
    %239 = arith.mulf %234, %238 : vector<1x64xf32>
    %cst_196 = arith.constant 0.055555556 : f32
    %240 = vector.broadcast %cst_196 : f32 to vector<1x64xf32>
    %241 = arith.mulf %237, %240 : vector<1x64xf32>
    %242 = arith.mulf %239, %239 : vector<1x64xf32>
    %243 = arith.subf %241, %242 : vector<1x64xf32>
    %cst_197 = arith.constant 0.000000e+00 : f32
    %244 = vector.broadcast %cst_197 : f32 to vector<1x64xf32>
    %245 = arith.maximumf %243, %244 : vector<1x64xf32>
    %246 = vector.extract_strided_slice %229 {offsets = [1, 0], sizes = [1, 64], strides = [1, 1]} : vector<3x64xf32> to vector<1x64xf32>
    %247 = vector.broadcast %239 : vector<1x64xf32> to vector<18x64xf32>
    %248 = arith.subf %232, %247 : vector<18x64xf32>
    %249 = vector.broadcast %246 : vector<1x64xf32> to vector<18x64xf32>
    %250 = arith.mulf %249, %248 : vector<18x64xf32>
    %cst_198 = arith.constant 9.99999974E-6 : f32
    %251 = vector.broadcast %cst_198 : f32 to vector<1x64xf32>
    %252 = arith.addf %245, %251 : vector<1x64xf32>
    %253 = math.rsqrt %252 : vector<1x64xf32>
    %254 = vector.broadcast %253 : vector<1x64xf32> to vector<18x64xf32>
    %255 = arith.mulf %250, %254 : vector<18x64xf32>
    %256 = vector.extract_strided_slice %229 {offsets = [2, 0], sizes = [1, 64], strides = [1, 1]} : vector<3x64xf32> to vector<1x64xf32>
    %257 = vector.broadcast %256 : vector<1x64xf32> to vector<18x64xf32>
    %258 = arith.addf %255, %257 : vector<18x64xf32>
    %c2_199 = arith.constant 2 : index
    %259 = memref.load %arg0[%c2_199] : memref<6xf32, #tpu.memory_space<smem>>
    %cst_200 = arith.constant 0.000000e+00 : f32
    %260 = vector.broadcast %cst_200 : f32 to vector<18x64xf32>
    %261 = arith.cmpf oge, %258, %260 : vector<18x64xf32>
    %262 = vector.broadcast %259 : f32 to vector<18x64xf32>
    %263 = arith.mulf %262, %258 : vector<18x64xf32>
    %264 = arith.select %261, %258, %263 : vector<18x64xi1>, vector<18x64xf32>
    %c0_201 = arith.constant 0 : index
    %c0_202 = arith.constant 0 : index
    %265 = vector.load %arg12[%c0_201, %c0_202] : memref<64x32xf32, #tpu.memory_space<vmem>>, vector<64x32xf32>
    %cst_203 = arith.constant dense<0.000000e+00> : vector<18x32xf32>
    %266 = tpu.matmul %264, %265, %cst_203 {dimension_numbers = #tpu.dot_dimension_numbers<[1], [0], [0], [1], [0, 0, 1, 1], [], []>} : vector<18x64xf32>, vector<64x32xf32>, vector<18x32xf32> -> vector<18x32xf32>
    %c0_204 = arith.constant 0 : index
    %c0_205 = arith.constant 0 : index
    %267 = vector.load %arg13[%c0_204, %c0_205] : memref<3x32xf32, #tpu.memory_space<vmem>>, vector<3x32xf32>
    %268 = vector.extract_strided_slice %267 {offsets = [0, 0], sizes = [1, 32], strides = [1, 1]} : vector<3x32xf32> to vector<1x32xf32>
    %269 = vector.broadcast %268 : vector<1x32xf32> to vector<18x32xf32>
    %270 = arith.addf %266, %269 : vector<18x32xf32>
    %cst_206 = arith.constant dense<0.000000e+00> : vector<32xf32>
    %271 = vector.multi_reduction <add>, %270, %cst_206 [0] : vector<18x32xf32> to vector<32xf32>
    %272 = vector.shape_cast %271 : vector<32xf32> to vector<1x32xf32>
    %273 = arith.mulf %270, %270 : vector<18x32xf32>
    %cst_207 = arith.constant dense<0.000000e+00> : vector<32xf32>
    %274 = vector.multi_reduction <add>, %273, %cst_207 [0] : vector<18x32xf32> to vector<32xf32>
    %275 = vector.shape_cast %274 : vector<32xf32> to vector<1x32xf32>
    %cst_208 = arith.constant 0.055555556 : f32
    %276 = vector.broadcast %cst_208 : f32 to vector<1x32xf32>
    %277 = arith.mulf %272, %276 : vector<1x32xf32>
    %cst_209 = arith.constant 0.055555556 : f32
    %278 = vector.broadcast %cst_209 : f32 to vector<1x32xf32>
    %279 = arith.mulf %275, %278 : vector<1x32xf32>
    %280 = arith.mulf %277, %277 : vector<1x32xf32>
    %281 = arith.subf %279, %280 : vector<1x32xf32>
    %cst_210 = arith.constant 0.000000e+00 : f32
    %282 = vector.broadcast %cst_210 : f32 to vector<1x32xf32>
    %283 = arith.maximumf %281, %282 : vector<1x32xf32>
    %284 = vector.extract_strided_slice %267 {offsets = [1, 0], sizes = [1, 32], strides = [1, 1]} : vector<3x32xf32> to vector<1x32xf32>
    %285 = vector.broadcast %277 : vector<1x32xf32> to vector<18x32xf32>
    %286 = arith.subf %270, %285 : vector<18x32xf32>
    %287 = vector.broadcast %284 : vector<1x32xf32> to vector<18x32xf32>
    %288 = arith.mulf %287, %286 : vector<18x32xf32>
    %cst_211 = arith.constant 9.99999974E-6 : f32
    %289 = vector.broadcast %cst_211 : f32 to vector<1x32xf32>
    %290 = arith.addf %283, %289 : vector<1x32xf32>
    %291 = math.rsqrt %290 : vector<1x32xf32>
    %292 = vector.broadcast %291 : vector<1x32xf32> to vector<18x32xf32>
    %293 = arith.mulf %288, %292 : vector<18x32xf32>
    %294 = vector.extract_strided_slice %267 {offsets = [2, 0], sizes = [1, 32], strides = [1, 1]} : vector<3x32xf32> to vector<1x32xf32>
    %295 = vector.broadcast %294 : vector<1x32xf32> to vector<18x32xf32>
    %296 = arith.addf %293, %295 : vector<18x32xf32>
    %c3_212 = arith.constant 3 : index
    %297 = memref.load %arg0[%c3_212] : memref<6xf32, #tpu.memory_space<smem>>
    %cst_213 = arith.constant 0.000000e+00 : f32
    %298 = vector.broadcast %cst_213 : f32 to vector<18x32xf32>
    %299 = arith.cmpf oge, %296, %298 : vector<18x32xf32>
    %300 = vector.broadcast %297 : f32 to vector<18x32xf32>
    %301 = arith.mulf %300, %296 : vector<18x32xf32>
    %302 = arith.select %299, %296, %301 : vector<18x32xi1>, vector<18x32xf32>
    %c0_214 = arith.constant 0 : index
    %c0_215 = arith.constant 0 : index
    %c0_216 = arith.constant 0 : index
    %303 = vector.load %arg14[%c0_214, %c0_215, %c0_216] : memref<9x18x18xf32, #tpu.memory_space<vmem>>, vector<1x18x18xf32>
    %304 = vector.shape_cast %303 : vector<1x18x18xf32> to vector<18x18xf32>
    %cst_217 = arith.constant dense<0.000000e+00> : vector<18x32xf32>
    %305 = tpu.matmul %304, %302, %cst_217 {dimension_numbers = #tpu.dot_dimension_numbers<[1], [0], [0], [1], [0, 0, 1, 1], [], []>} : vector<18x18xf32>, vector<18x32xf32>, vector<18x32xf32> -> vector<18x32xf32>
    %c0_218 = arith.constant 0 : index
    %c0_219 = arith.constant 0 : index
    %c0_220 = arith.constant 0 : index
    %306 = vector.load %arg15[%c0_218, %c0_219, %c0_220] : memref<9x32x64xf32, #tpu.memory_space<vmem>>, vector<1x32x64xf32>
    %307 = vector.shape_cast %306 : vector<1x32x64xf32> to vector<32x64xf32>
    %cst_221 = arith.constant dense<0.000000e+00> : vector<18x64xf32>
    %308 = tpu.matmul %305, %307, %cst_221 {dimension_numbers = #tpu.dot_dimension_numbers<[1], [0], [0], [1], [0, 0, 1, 1], [], []>} : vector<18x32xf32>, vector<32x64xf32>, vector<18x64xf32> -> vector<18x64xf32>
    %c1_222 = arith.constant 1 : index
    %c0_223 = arith.constant 0 : index
    %c0_224 = arith.constant 0 : index
    %309 = vector.load %arg14[%c1_222, %c0_223, %c0_224] : memref<9x18x18xf32, #tpu.memory_space<vmem>>, vector<1x18x18xf32>
    %310 = vector.shape_cast %309 : vector<1x18x18xf32> to vector<18x18xf32>
    %cst_225 = arith.constant dense<0.000000e+00> : vector<18x32xf32>
    %311 = tpu.matmul %310, %302, %cst_225 {dimension_numbers = #tpu.dot_dimension_numbers<[1], [0], [0], [1], [0, 0, 1, 1], [], []>} : vector<18x18xf32>, vector<18x32xf32>, vector<18x32xf32> -> vector<18x32xf32>
    %c1_226 = arith.constant 1 : index
    %c0_227 = arith.constant 0 : index
    %c0_228 = arith.constant 0 : index
    %312 = vector.load %arg15[%c1_226, %c0_227, %c0_228] : memref<9x32x64xf32, #tpu.memory_space<vmem>>, vector<1x32x64xf32>
    %313 = vector.shape_cast %312 : vector<1x32x64xf32> to vector<32x64xf32>
    %cst_229 = arith.constant dense<0.000000e+00> : vector<18x64xf32>
    %314 = tpu.matmul %311, %313, %cst_229 {dimension_numbers = #tpu.dot_dimension_numbers<[1], [0], [0], [1], [0, 0, 1, 1], [], []>} : vector<18x32xf32>, vector<32x64xf32>, vector<18x64xf32> -> vector<18x64xf32>
    %315 = arith.addf %308, %314 : vector<18x64xf32>
    %c2_230 = arith.constant 2 : index
    %c0_231 = arith.constant 0 : index
    %c0_232 = arith.constant 0 : index
    %316 = vector.load %arg14[%c2_230, %c0_231, %c0_232] : memref<9x18x18xf32, #tpu.memory_space<vmem>>, vector<1x18x18xf32>
    %317 = vector.shape_cast %316 : vector<1x18x18xf32> to vector<18x18xf32>
    %cst_233 = arith.constant dense<0.000000e+00> : vector<18x32xf32>
    %318 = tpu.matmul %317, %302, %cst_233 {dimension_numbers = #tpu.dot_dimension_numbers<[1], [0], [0], [1], [0, 0, 1, 1], [], []>} : vector<18x18xf32>, vector<18x32xf32>, vector<18x32xf32> -> vector<18x32xf32>
    %c2_234 = arith.constant 2 : index
    %c0_235 = arith.constant 0 : index
    %c0_236 = arith.constant 0 : index
    %319 = vector.load %arg15[%c2_234, %c0_235, %c0_236] : memref<9x32x64xf32, #tpu.memory_space<vmem>>, vector<1x32x64xf32>
    %320 = vector.shape_cast %319 : vector<1x32x64xf32> to vector<32x64xf32>
    %cst_237 = arith.constant dense<0.000000e+00> : vector<18x64xf32>
    %321 = tpu.matmul %318, %320, %cst_237 {dimension_numbers = #tpu.dot_dimension_numbers<[1], [0], [0], [1], [0, 0, 1, 1], [], []>} : vector<18x32xf32>, vector<32x64xf32>, vector<18x64xf32> -> vector<18x64xf32>
    %322 = arith.addf %315, %321 : vector<18x64xf32>
    %c3_238 = arith.constant 3 : index
    %c0_239 = arith.constant 0 : index
    %c0_240 = arith.constant 0 : index
    %323 = vector.load %arg14[%c3_238, %c0_239, %c0_240] : memref<9x18x18xf32, #tpu.memory_space<vmem>>, vector<1x18x18xf32>
    %324 = vector.shape_cast %323 : vector<1x18x18xf32> to vector<18x18xf32>
    %cst_241 = arith.constant dense<0.000000e+00> : vector<18x32xf32>
    %325 = tpu.matmul %324, %302, %cst_241 {dimension_numbers = #tpu.dot_dimension_numbers<[1], [0], [0], [1], [0, 0, 1, 1], [], []>} : vector<18x18xf32>, vector<18x32xf32>, vector<18x32xf32> -> vector<18x32xf32>
    %c3_242 = arith.constant 3 : index
    %c0_243 = arith.constant 0 : index
    %c0_244 = arith.constant 0 : index
    %326 = vector.load %arg15[%c3_242, %c0_243, %c0_244] : memref<9x32x64xf32, #tpu.memory_space<vmem>>, vector<1x32x64xf32>
    %327 = vector.shape_cast %326 : vector<1x32x64xf32> to vector<32x64xf32>
    %cst_245 = arith.constant dense<0.000000e+00> : vector<18x64xf32>
    %328 = tpu.matmul %325, %327, %cst_245 {dimension_numbers = #tpu.dot_dimension_numbers<[1], [0], [0], [1], [0, 0, 1, 1], [], []>} : vector<18x32xf32>, vector<32x64xf32>, vector<18x64xf32> -> vector<18x64xf32>
    %329 = arith.addf %322, %328 : vector<18x64xf32>
    %c4_246 = arith.constant 4 : index
    %c0_247 = arith.constant 0 : index
    %c0_248 = arith.constant 0 : index
    %330 = vector.load %arg14[%c4_246, %c0_247, %c0_248] : memref<9x18x18xf32, #tpu.memory_space<vmem>>, vector<1x18x18xf32>
    %331 = vector.shape_cast %330 : vector<1x18x18xf32> to vector<18x18xf32>
    %cst_249 = arith.constant dense<0.000000e+00> : vector<18x32xf32>
    %332 = tpu.matmul %331, %302, %cst_249 {dimension_numbers = #tpu.dot_dimension_numbers<[1], [0], [0], [1], [0, 0, 1, 1], [], []>} : vector<18x18xf32>, vector<18x32xf32>, vector<18x32xf32> -> vector<18x32xf32>
    %c4_250 = arith.constant 4 : index
    %c0_251 = arith.constant 0 : index
    %c0_252 = arith.constant 0 : index
    %333 = vector.load %arg15[%c4_250, %c0_251, %c0_252] : memref<9x32x64xf32, #tpu.memory_space<vmem>>, vector<1x32x64xf32>
    %334 = vector.shape_cast %333 : vector<1x32x64xf32> to vector<32x64xf32>
    %cst_253 = arith.constant dense<0.000000e+00> : vector<18x64xf32>
    %335 = tpu.matmul %332, %334, %cst_253 {dimension_numbers = #tpu.dot_dimension_numbers<[1], [0], [0], [1], [0, 0, 1, 1], [], []>} : vector<18x32xf32>, vector<32x64xf32>, vector<18x64xf32> -> vector<18x64xf32>
    %336 = arith.addf %329, %335 : vector<18x64xf32>
    %c5_254 = arith.constant 5 : index
    %c0_255 = arith.constant 0 : index
    %c0_256 = arith.constant 0 : index
    %337 = vector.load %arg14[%c5_254, %c0_255, %c0_256] : memref<9x18x18xf32, #tpu.memory_space<vmem>>, vector<1x18x18xf32>
    %338 = vector.shape_cast %337 : vector<1x18x18xf32> to vector<18x18xf32>
    %cst_257 = arith.constant dense<0.000000e+00> : vector<18x32xf32>
    %339 = tpu.matmul %338, %302, %cst_257 {dimension_numbers = #tpu.dot_dimension_numbers<[1], [0], [0], [1], [0, 0, 1, 1], [], []>} : vector<18x18xf32>, vector<18x32xf32>, vector<18x32xf32> -> vector<18x32xf32>
    %c5_258 = arith.constant 5 : index
    %c0_259 = arith.constant 0 : index
    %c0_260 = arith.constant 0 : index
    %340 = vector.load %arg15[%c5_258, %c0_259, %c0_260] : memref<9x32x64xf32, #tpu.memory_space<vmem>>, vector<1x32x64xf32>
    %341 = vector.shape_cast %340 : vector<1x32x64xf32> to vector<32x64xf32>
    %cst_261 = arith.constant dense<0.000000e+00> : vector<18x64xf32>
    %342 = tpu.matmul %339, %341, %cst_261 {dimension_numbers = #tpu.dot_dimension_numbers<[1], [0], [0], [1], [0, 0, 1, 1], [], []>} : vector<18x32xf32>, vector<32x64xf32>, vector<18x64xf32> -> vector<18x64xf32>
    %343 = arith.addf %336, %342 : vector<18x64xf32>
    %c6_262 = arith.constant 6 : index
    %c0_263 = arith.constant 0 : index
    %c0_264 = arith.constant 0 : index
    %344 = vector.load %arg14[%c6_262, %c0_263, %c0_264] : memref<9x18x18xf32, #tpu.memory_space<vmem>>, vector<1x18x18xf32>
    %345 = vector.shape_cast %344 : vector<1x18x18xf32> to vector<18x18xf32>
    %cst_265 = arith.constant dense<0.000000e+00> : vector<18x32xf32>
    %346 = tpu.matmul %345, %302, %cst_265 {dimension_numbers = #tpu.dot_dimension_numbers<[1], [0], [0], [1], [0, 0, 1, 1], [], []>} : vector<18x18xf32>, vector<18x32xf32>, vector<18x32xf32> -> vector<18x32xf32>
    %c6_266 = arith.constant 6 : index
    %c0_267 = arith.constant 0 : index
    %c0_268 = arith.constant 0 : index
    %347 = vector.load %arg15[%c6_266, %c0_267, %c0_268] : memref<9x32x64xf32, #tpu.memory_space<vmem>>, vector<1x32x64xf32>
    %348 = vector.shape_cast %347 : vector<1x32x64xf32> to vector<32x64xf32>
    %cst_269 = arith.constant dense<0.000000e+00> : vector<18x64xf32>
    %349 = tpu.matmul %346, %348, %cst_269 {dimension_numbers = #tpu.dot_dimension_numbers<[1], [0], [0], [1], [0, 0, 1, 1], [], []>} : vector<18x32xf32>, vector<32x64xf32>, vector<18x64xf32> -> vector<18x64xf32>
    %350 = arith.addf %343, %349 : vector<18x64xf32>
    %c7_270 = arith.constant 7 : index
    %c0_271 = arith.constant 0 : index
    %c0_272 = arith.constant 0 : index
    %351 = vector.load %arg14[%c7_270, %c0_271, %c0_272] : memref<9x18x18xf32, #tpu.memory_space<vmem>>, vector<1x18x18xf32>
    %352 = vector.shape_cast %351 : vector<1x18x18xf32> to vector<18x18xf32>
    %cst_273 = arith.constant dense<0.000000e+00> : vector<18x32xf32>
    %353 = tpu.matmul %352, %302, %cst_273 {dimension_numbers = #tpu.dot_dimension_numbers<[1], [0], [0], [1], [0, 0, 1, 1], [], []>} : vector<18x18xf32>, vector<18x32xf32>, vector<18x32xf32> -> vector<18x32xf32>
    %c7_274 = arith.constant 7 : index
    %c0_275 = arith.constant 0 : index
    %c0_276 = arith.constant 0 : index
    %354 = vector.load %arg15[%c7_274, %c0_275, %c0_276] : memref<9x32x64xf32, #tpu.memory_space<vmem>>, vector<1x32x64xf32>
    %355 = vector.shape_cast %354 : vector<1x32x64xf32> to vector<32x64xf32>
    %cst_277 = arith.constant dense<0.000000e+00> : vector<18x64xf32>
    %356 = tpu.matmul %353, %355, %cst_277 {dimension_numbers = #tpu.dot_dimension_numbers<[1], [0], [0], [1], [0, 0, 1, 1], [], []>} : vector<18x32xf32>, vector<32x64xf32>, vector<18x64xf32> -> vector<18x64xf32>
    %357 = arith.addf %350, %356 : vector<18x64xf32>
    %c8_278 = arith.constant 8 : index
    %c0_279 = arith.constant 0 : index
    %c0_280 = arith.constant 0 : index
    %358 = vector.load %arg14[%c8_278, %c0_279, %c0_280] : memref<9x18x18xf32, #tpu.memory_space<vmem>>, vector<1x18x18xf32>
    %359 = vector.shape_cast %358 : vector<1x18x18xf32> to vector<18x18xf32>
    %cst_281 = arith.constant dense<0.000000e+00> : vector<18x32xf32>
    %360 = tpu.matmul %359, %302, %cst_281 {dimension_numbers = #tpu.dot_dimension_numbers<[1], [0], [0], [1], [0, 0, 1, 1], [], []>} : vector<18x18xf32>, vector<18x32xf32>, vector<18x32xf32> -> vector<18x32xf32>
    %c8_282 = arith.constant 8 : index
    %c0_283 = arith.constant 0 : index
    %c0_284 = arith.constant 0 : index
    %361 = vector.load %arg15[%c8_282, %c0_283, %c0_284] : memref<9x32x64xf32, #tpu.memory_space<vmem>>, vector<1x32x64xf32>
    %362 = vector.shape_cast %361 : vector<1x32x64xf32> to vector<32x64xf32>
    %cst_285 = arith.constant dense<0.000000e+00> : vector<18x64xf32>
    %363 = tpu.matmul %360, %362, %cst_285 {dimension_numbers = #tpu.dot_dimension_numbers<[1], [0], [0], [1], [0, 0, 1, 1], [], []>} : vector<18x32xf32>, vector<32x64xf32>, vector<18x64xf32> -> vector<18x64xf32>
    %364 = arith.addf %357, %363 : vector<18x64xf32>
    %c0_286 = arith.constant 0 : index
    %c0_287 = arith.constant 0 : index
    %365 = vector.load %arg16[%c0_286, %c0_287] : memref<3x64xf32, #tpu.memory_space<vmem>>, vector<3x64xf32>
    %366 = vector.extract_strided_slice %365 {offsets = [0, 0], sizes = [1, 64], strides = [1, 1]} : vector<3x64xf32> to vector<1x64xf32>
    %367 = vector.broadcast %366 : vector<1x64xf32> to vector<18x64xf32>
    %368 = arith.addf %364, %367 : vector<18x64xf32>
    %cst_288 = arith.constant dense<0.000000e+00> : vector<64xf32>
    %369 = vector.multi_reduction <add>, %368, %cst_288 [0] : vector<18x64xf32> to vector<64xf32>
    %370 = vector.shape_cast %369 : vector<64xf32> to vector<1x64xf32>
    %371 = arith.mulf %368, %368 : vector<18x64xf32>
    %cst_289 = arith.constant dense<0.000000e+00> : vector<64xf32>
    %372 = vector.multi_reduction <add>, %371, %cst_289 [0] : vector<18x64xf32> to vector<64xf32>
    %373 = vector.shape_cast %372 : vector<64xf32> to vector<1x64xf32>
    %cst_290 = arith.constant 0.055555556 : f32
    %374 = vector.broadcast %cst_290 : f32 to vector<1x64xf32>
    %375 = arith.mulf %370, %374 : vector<1x64xf32>
    %cst_291 = arith.constant 0.055555556 : f32
    %376 = vector.broadcast %cst_291 : f32 to vector<1x64xf32>
    %377 = arith.mulf %373, %376 : vector<1x64xf32>
    %378 = arith.mulf %375, %375 : vector<1x64xf32>
    %379 = arith.subf %377, %378 : vector<1x64xf32>
    %cst_292 = arith.constant 0.000000e+00 : f32
    %380 = vector.broadcast %cst_292 : f32 to vector<1x64xf32>
    %381 = arith.maximumf %379, %380 : vector<1x64xf32>
    %382 = vector.extract_strided_slice %365 {offsets = [1, 0], sizes = [1, 64], strides = [1, 1]} : vector<3x64xf32> to vector<1x64xf32>
    %383 = vector.broadcast %375 : vector<1x64xf32> to vector<18x64xf32>
    %384 = arith.subf %368, %383 : vector<18x64xf32>
    %385 = vector.broadcast %382 : vector<1x64xf32> to vector<18x64xf32>
    %386 = arith.mulf %385, %384 : vector<18x64xf32>
    %cst_293 = arith.constant 9.99999974E-6 : f32
    %387 = vector.broadcast %cst_293 : f32 to vector<1x64xf32>
    %388 = arith.addf %381, %387 : vector<1x64xf32>
    %389 = math.rsqrt %388 : vector<1x64xf32>
    %390 = vector.broadcast %389 : vector<1x64xf32> to vector<18x64xf32>
    %391 = arith.mulf %386, %390 : vector<18x64xf32>
    %392 = vector.extract_strided_slice %365 {offsets = [2, 0], sizes = [1, 64], strides = [1, 1]} : vector<3x64xf32> to vector<1x64xf32>
    %393 = vector.broadcast %392 : vector<1x64xf32> to vector<18x64xf32>
    %394 = arith.addf %391, %393 : vector<18x64xf32>
    %c4_294 = arith.constant 4 : index
    %395 = memref.load %arg0[%c4_294] : memref<6xf32, #tpu.memory_space<smem>>
    %cst_295 = arith.constant 0.000000e+00 : f32
    %396 = vector.broadcast %cst_295 : f32 to vector<18x64xf32>
    %397 = arith.cmpf oge, %394, %396 : vector<18x64xf32>
    %398 = vector.broadcast %395 : f32 to vector<18x64xf32>
    %399 = arith.mulf %398, %394 : vector<18x64xf32>
    %400 = arith.select %397, %394, %399 : vector<18x64xi1>, vector<18x64xf32>
    %c0_296 = arith.constant 0 : index
    %c0_297 = arith.constant 0 : index
    %c0_298 = arith.constant 0 : index
    %401 = vector.load %arg17[%c0_296, %c0_297, %c0_298] : memref<4x2x18xf32, #tpu.memory_space<vmem>>, vector<1x2x18xf32>
    %402 = vector.shape_cast %401 : vector<1x2x18xf32> to vector<2x18xf32>
    %cst_299 = arith.constant dense<0.000000e+00> : vector<2x64xf32>
    %403 = tpu.matmul %402, %400, %cst_299 {dimension_numbers = #tpu.dot_dimension_numbers<[1], [0], [0], [1], [0, 0, 1, 1], [], []>} : vector<2x18xf32>, vector<18x64xf32>, vector<2x64xf32> -> vector<2x64xf32>
    %c1_300 = arith.constant 1 : index
    %c0_301 = arith.constant 0 : index
    %c0_302 = arith.constant 0 : index
    %404 = vector.load %arg17[%c1_300, %c0_301, %c0_302] : memref<4x2x18xf32, #tpu.memory_space<vmem>>, vector<1x2x18xf32>
    %405 = vector.shape_cast %404 : vector<1x2x18xf32> to vector<2x18xf32>
    %cst_303 = arith.constant dense<0.000000e+00> : vector<2x64xf32>
    %406 = tpu.matmul %405, %400, %cst_303 {dimension_numbers = #tpu.dot_dimension_numbers<[1], [0], [0], [1], [0, 0, 1, 1], [], []>} : vector<2x18xf32>, vector<18x64xf32>, vector<2x64xf32> -> vector<2x64xf32>
    %407 = arith.maximumf %403, %406 : vector<2x64xf32>
    %c2_304 = arith.constant 2 : index
    %c0_305 = arith.constant 0 : index
    %c0_306 = arith.constant 0 : index
    %408 = vector.load %arg17[%c2_304, %c0_305, %c0_306] : memref<4x2x18xf32, #tpu.memory_space<vmem>>, vector<1x2x18xf32>
    %409 = vector.shape_cast %408 : vector<1x2x18xf32> to vector<2x18xf32>
    %cst_307 = arith.constant dense<0.000000e+00> : vector<2x64xf32>
    %410 = tpu.matmul %409, %400, %cst_307 {dimension_numbers = #tpu.dot_dimension_numbers<[1], [0], [0], [1], [0, 0, 1, 1], [], []>} : vector<2x18xf32>, vector<18x64xf32>, vector<2x64xf32> -> vector<2x64xf32>
    %c3_308 = arith.constant 3 : index
    %c0_309 = arith.constant 0 : index
    %c0_310 = arith.constant 0 : index
    %411 = vector.load %arg17[%c3_308, %c0_309, %c0_310] : memref<4x2x18xf32, #tpu.memory_space<vmem>>, vector<1x2x18xf32>
    %412 = vector.shape_cast %411 : vector<1x2x18xf32> to vector<2x18xf32>
    %cst_311 = arith.constant dense<0.000000e+00> : vector<2x64xf32>
    %413 = tpu.matmul %412, %400, %cst_311 {dimension_numbers = #tpu.dot_dimension_numbers<[1], [0], [0], [1], [0, 0, 1, 1], [], []>} : vector<2x18xf32>, vector<18x64xf32>, vector<2x64xf32> -> vector<2x64xf32>
    %414 = arith.maximumf %410, %413 : vector<2x64xf32>
    %415 = arith.maximumf %407, %414 : vector<2x64xf32>
    %c0_312 = arith.constant 0 : index
    %c0_313 = arith.constant 0 : index
    %c0_314 = arith.constant 0 : index
    %416 = vector.load %arg18[%c0_312, %c0_313, %c0_314] : memref<1x2x2xf32, #tpu.memory_space<vmem>>, vector<1x2x2xf32>
    %417 = vector.shape_cast %416 : vector<1x2x2xf32> to vector<2x2xf32>
    %cst_315 = arith.constant dense<0.000000e+00> : vector<2x64xf32>
    %418 = tpu.matmul %417, %415, %cst_315 {dimension_numbers = #tpu.dot_dimension_numbers<[1], [0], [0], [1], [0, 0, 1, 1], [], []>} : vector<2x2xf32>, vector<2x64xf32>, vector<2x64xf32> -> vector<2x64xf32>
    %c0_316 = arith.constant 0 : index
    %c0_317 = arith.constant 0 : index
    %c0_318 = arith.constant 0 : index
    %419 = vector.load %arg19[%c0_316, %c0_317, %c0_318] : memref<1x64x128xf32, #tpu.memory_space<vmem>>, vector<1x64x128xf32>
    %420 = vector.shape_cast %419 : vector<1x64x128xf32> to vector<64x128xf32>
    %cst_319 = arith.constant dense<0.000000e+00> : vector<2x128xf32>
    %421 = tpu.matmul %418, %420, %cst_319 {dimension_numbers = #tpu.dot_dimension_numbers<[1], [0], [0], [1], [0, 0, 1, 1], [], []>} : vector<2x64xf32>, vector<64x128xf32>, vector<2x128xf32> -> vector<2x128xf32>
    %c0_320 = arith.constant 0 : index
    %c0_321 = arith.constant 0 : index
    %422 = vector.load %arg20[%c0_320, %c0_321] : memref<3x128xf32, #tpu.memory_space<vmem>>, vector<3x128xf32>
    %423 = vector.extract_strided_slice %422 {offsets = [0, 0], sizes = [1, 128], strides = [1, 1]} : vector<3x128xf32> to vector<1x128xf32>
    %424 = vector.broadcast %423 : vector<1x128xf32> to vector<2x128xf32>
    %425 = arith.addf %421, %424 : vector<2x128xf32>
    %cst_322 = arith.constant dense<0.000000e+00> : vector<128xf32>
    %426 = vector.multi_reduction <add>, %425, %cst_322 [0] : vector<2x128xf32> to vector<128xf32>
    %427 = vector.shape_cast %426 : vector<128xf32> to vector<1x128xf32>
    %428 = arith.mulf %425, %425 : vector<2x128xf32>
    %cst_323 = arith.constant dense<0.000000e+00> : vector<128xf32>
    %429 = vector.multi_reduction <add>, %428, %cst_323 [0] : vector<2x128xf32> to vector<128xf32>
    %430 = vector.shape_cast %429 : vector<128xf32> to vector<1x128xf32>
    %cst_324 = arith.constant 5.000000e-01 : f32
    %431 = vector.broadcast %cst_324 : f32 to vector<1x128xf32>
    %432 = arith.mulf %427, %431 : vector<1x128xf32>
    %cst_325 = arith.constant 5.000000e-01 : f32
    %433 = vector.broadcast %cst_325 : f32 to vector<1x128xf32>
    %434 = arith.mulf %430, %433 : vector<1x128xf32>
    %435 = arith.mulf %432, %432 : vector<1x128xf32>
    %436 = arith.subf %434, %435 : vector<1x128xf32>
    %cst_326 = arith.constant 0.000000e+00 : f32
    %437 = vector.broadcast %cst_326 : f32 to vector<1x128xf32>
    %438 = arith.maximumf %436, %437 : vector<1x128xf32>
    %439 = vector.extract_strided_slice %422 {offsets = [1, 0], sizes = [1, 128], strides = [1, 1]} : vector<3x128xf32> to vector<1x128xf32>
    %440 = vector.broadcast %432 : vector<1x128xf32> to vector<2x128xf32>
    %441 = arith.subf %425, %440 : vector<2x128xf32>
    %442 = vector.broadcast %439 : vector<1x128xf32> to vector<2x128xf32>
    %443 = arith.mulf %442, %441 : vector<2x128xf32>
    %cst_327 = arith.constant 9.99999974E-6 : f32
    %444 = vector.broadcast %cst_327 : f32 to vector<1x128xf32>
    %445 = arith.addf %438, %444 : vector<1x128xf32>
    %446 = math.rsqrt %445 : vector<1x128xf32>
    %447 = vector.broadcast %446 : vector<1x128xf32> to vector<2x128xf32>
    %448 = arith.mulf %443, %447 : vector<2x128xf32>
    %449 = vector.extract_strided_slice %422 {offsets = [2, 0], sizes = [1, 128], strides = [1, 1]} : vector<3x128xf32> to vector<1x128xf32>
    %450 = vector.broadcast %449 : vector<1x128xf32> to vector<2x128xf32>
    %451 = arith.addf %448, %450 : vector<2x128xf32>
    %c5_328 = arith.constant 5 : index
    %452 = memref.load %arg0[%c5_328] : memref<6xf32, #tpu.memory_space<smem>>
    %cst_329 = arith.constant 0.000000e+00 : f32
    %453 = vector.broadcast %cst_329 : f32 to vector<2x128xf32>
    %454 = arith.cmpf oge, %451, %453 : vector<2x128xf32>
    %455 = vector.broadcast %452 : f32 to vector<2x128xf32>
    %456 = arith.mulf %455, %451 : vector<2x128xf32>
    %457 = arith.select %454, %451, %456 : vector<2x128xi1>, vector<2x128xf32>
    %c0_330 = arith.constant 0 : index
    %c0_331 = arith.constant 0 : index
    %458 = vector.load %arg21[%c0_330, %c0_331] : memref<128x128xf32, #tpu.memory_space<vmem>>, vector<128x128xf32>
    %cst_332 = arith.constant dense<0.000000e+00> : vector<2x128xf32>
    %459 = tpu.matmul %457, %458, %cst_332 {dimension_numbers = #tpu.dot_dimension_numbers<[1], [0], [0], [1], [0, 0, 1, 1], [], []>} : vector<2x128xf32>, vector<128x128xf32>, vector<2x128xf32> -> vector<2x128xf32>
    %c0_333 = arith.constant 0 : index
    %c0_334 = arith.constant 0 : index
    %460 = vector.load %arg22[%c0_333, %c0_334] : memref<1x128xf32, #tpu.memory_space<vmem>>, vector<1x128xf32>
    %461 = vector.broadcast %460 : vector<1x128xf32> to vector<2x128xf32>
    %462 = arith.addf %459, %461 : vector<2x128xf32>
    %cst_335 = arith.constant 0.000000e+00 : f32
    %463 = vector.broadcast %cst_335 : f32 to vector<2x128xf32>
    %464 = arith.subf %463, %462 : vector<2x128xf32>
    %465 = math.exp %464 : vector<2x128xf32>
    %cst_336 = arith.constant 1.000000e+00 : f32
    %466 = vector.broadcast %cst_336 : f32 to vector<2x128xf32>
    %467 = arith.addf %466, %465 : vector<2x128xf32>
    %468 = tpu.reciprocal %467 {approx = true} : vector<2x128xf32> -> vector<2x128xf32>
    %c0_337 = arith.constant 0 : index
    %c0_338 = arith.constant 0 : index
    %469 = vector.load %arg23[%c0_337, %c0_338] : memref<2x128xf32, #tpu.memory_space<vmem>>, vector<2x128xf32>
    tpu.vector_store %arg23[%c0_337, %c0_338], %468 {strides = array<i32>} : memref<2x128xf32, #tpu.memory_space<vmem>>, vector<2x128xf32>,
    return
  }
}

</mosaic_0001>

<llo_original>
// kernel: _fused_forward.1
$region0: #{_fused_forward.1}
  #allocation0 [shape = 'u32[]', space=smem, size = 0x4, offset = 0x4, fixed_abs, tag = 'smem constant byte address 0x4 - core index']
  #allocation1 [shape = 'u32[72,128]{1,0:T(1,128)}', space=vmem, size = 0x9000, scoped, tag = 'internal scratch']
  %s0 = inlined_call_operand.vmem [shape: f32[6], index: 0, kind: input, shape index: {}]
  %s1 = inlined_call_operand.vmem [shape: f32[162,45], index: 1, kind: input, shape index: {}]
  %s2 = inlined_call_operand.vmem [shape: f32[45,16], index: 2, kind: input, shape index: {}]
  %s3 = inlined_call_operand.vmem [shape: f32[3,16], index: 3, kind: input, shape index: {}]
  %s4 = inlined_call_operand.vmem [shape: f32[4,32,162], index: 4, kind: input, shape index: {}]
  %s5 = inlined_call_operand.vmem [shape: f32[9,18,32], index: 5, kind: input, shape index: {}]
  %s6 = inlined_call_operand.vmem [shape: f32[9,16,32], index: 6, kind: input, shape index: {}]
  %s7 = inlined_call_operand.vmem [shape: f32[3,32], index: 7, kind: input, shape index: {}]
  %s8 = inlined_call_operand.vmem [shape: f32[4,2,18], index: 8, kind: input, shape index: {}, may-alias: {8,17}]
  %s9 = inlined_call_operand.vmem [shape: f32[9,18,2], index: 9, kind: input, shape index: {}]
  %s10 = inlined_call_operand.vmem [shape: f32[9,32,64], index: 10, kind: input, shape index: {}]
  %s11 = inlined_call_operand.vmem [shape: f32[3,64], index: 11, kind: input, shape index: {}]
  %s12 = inlined_call_operand.vmem [shape: f32[64,32], index: 12, kind: input, shape index: {}]
  %s13 = inlined_call_operand.vmem [shape: f32[3,32], index: 13, kind: input, shape index: {}]
  %s14 = inlined_call_operand.vmem [shape: f32[9,18,18], index: 14, kind: input, shape index: {}]
  %s15 = inlined_call_operand.vmem [shape: f32[9,32,64], index: 15, kind: input, shape index: {}]
  %s16 = inlined_call_operand.vmem [shape: f32[3,64], index: 16, kind: input, shape index: {}]
  %s17 = inlined_call_operand.vmem [shape: f32[4,2,18], index: 17, kind: input, shape index: {}, may-alias: {8,17}]
  %s18 = inlined_call_operand.vmem [shape: f32[1,2,2], index: 18, kind: input, shape index: {}]
  %s19 = inlined_call_operand.vmem [shape: f32[1,64,128], index: 19, kind: input, shape index: {}]
  %s20 = inlined_call_operand.vmem [shape: f32[3,128], index: 20, kind: input, shape index: {}]
  %s21 = inlined_call_operand.vmem [shape: f32[128,128], index: 21, kind: input, shape index: {}]
  %s22 = inlined_call_operand.vmem [shape: f32[1,128], index: 22, kind: input, shape index: {}]
  %s23 = inlined_call_operand.vmem [shape: f32[2,128], index: 23, kind: output, shape index: {}]
  %s24 = sld [smem:[#allocation0]]
  $region106: #{_fused_forward.1} parent=0
    _
  %s26 = ssub.s32 1, %s24
  %s27 = scalar_select 0, %s26, %s24
  $region1: #{_fused_forward.1} parent=0
    #allocation2 [shape = 'u8[512]{0}', space=smem, size = 0x200, scoped, tag = 'input window, operand 0, single buffered']
    #allocation3 [shape = 's32[1]{0}', space=sflag, size = 0x4, scoped, tag = 'scoped memory for _fused_forward.1']
    %28 = vsyncpa [#allocation3], 0
    // Predicated region
    $region2: #{_fused_forward.1} parent=1 // pred_check
      _
    $region3: #{_fused_forward.1} parent=1 // pred_check_branch
      %30 = sbr.rel (0) target = $region5
    $region4: #{_fused_forward.1} parent=1 // pred_region
      %32 = vsyncadd [#allocation3], 0
      %s34 = sshll.u32 %s0, 4
      %s35 = int_to_ptr.vmem [resolvable:$true] %s34
      %37 = dma.vmem_to_smem %s35, 16, [#allocation2], [#allocation3]
    $region5: #{_fused_forward.1} parent=1 // pred_fallthru
      _
    // Predicated region
    $region6: #{_fused_forward.1} parent=1 // pred_check
      _
    $region7: #{_fused_forward.1} parent=1 // pred_check_branch
      %39 = sbr.rel (0) target = $region9
    $region8: #{_fused_forward.1} parent=1 // pred_region
      _
    $region9: #{_fused_forward.1} parent=1 // pred_fallthru
      _
    // Predicated region
    $region10: #{_fused_forward.1} parent=1 // pred_check
      _
    $region11: #{_fused_forward.1} parent=1 // pred_check_branch
      %41 = sbr.rel (0) target = $region13
    $region12: #{_fused_forward.1} parent=1 // pred_region
      _
    $region13: #{_fused_forward.1} parent=1 // pred_fallthru
      _
    // Predicated region
    $region14: #{_fused_forward.1} parent=1 // pred_check
      _
    $region15: #{_fused_forward.1} parent=1 // pred_check_branch
      %43 = sbr.rel (0) target = $region17
    $region16: #{_fused_forward.1} parent=1 // pred_region
      _
    $region17: #{_fused_forward.1} parent=1 // pred_fallthru
      _
    // Predicated region
    $region18: #{_fused_forward.1} parent=1 // pred_check
      _
    $region19: #{_fused_forward.1} parent=1 // pred_check_branch
      %45 = sbr.rel (0) target = $region21
    $region20: #{_fused_forward.1} parent=1 // pred_region
      _
    $region21: #{_fused_forward.1} parent=1 // pred_fallthru
      _
    // Predicated region
    $region22: #{_fused_forward.1} parent=1 // pred_check
      _
    $region23: #{_fused_forward.1} parent=1 // pred_check_branch
      %47 = sbr.rel (0) target = $region25
    $region24: #{_fused_forward.1} parent=1 // pred_region
      _
    $region25: #{_fused_forward.1} parent=1 // pred_fallthru
      _
    // Predicated region
    $region26: #{_fused_forward.1} parent=1 // pred_check
      _
    $region27: #{_fused_forward.1} parent=1 // pred_check_branch
      %49 = sbr.rel (0) target = $region29
    $region28: #{_fused_forward.1} parent=1 // pred_region
      _
    $region29: #{_fused_forward.1} parent=1 // pred_fallthru
      _
    // Predicated region
    $region30: #{_fused_forward.1} parent=1 // pred_check
      _
    $region31: #{_fused_forward.1} parent=1 // pred_check_branch
      %51 = sbr.rel (0) target = $region33
    $region32: #{_fused_forward.1} parent=1 // pred_region
      _
    $region33: #{_fused_forward.1} parent=1 // pred_fallthru
      _
    // Predicated region
    $region34: #{_fused_forward.1} parent=1 // pred_check
      _
    $region35: #{_fused_forward.1} parent=1 // pred_check_branch
      %53 = sbr.rel (0) target = $region37
    $region36: #{_fused_forward.1} parent=1 // pred_region
      _
    $region37: #{_fused_forward.1} parent=1 // pred_fallthru
      _
    // Predicated region
    $region38: #{_fused_forward.1} parent=1 // pred_check
      _
    $region39: #{_fused_forward.1} parent=1 // pred_check_branch
      %55 = sbr.rel (0) target = $region41
    $region40: #{_fused_forward.1} parent=1 // pred_region
      _
    $region41: #{_fused_forward.1} parent=1 // pred_fallthru
      _
    // Predicated region
    $region42: #{_fused_forward.1} parent=1 // pred_check
      _
    $region43: #{_fused_forward.1} parent=1 // pred_check_branch
      %57 = sbr.rel (0) target = $region45
    $region44: #{_fused_forward.1} parent=1 // pred_region
      _
    $region45: #{_fused_forward.1} parent=1 // pred_fallthru
      _
    // Predicated region
    $region46: #{_fused_forward.1} parent=1 // pred_check
      _
    $region47: #{_fused_forward.1} parent=1 // pred_check_branch
      %59 = sbr.rel (0) target = $region49
    $region48: #{_fused_forward.1} parent=1 // pred_region
      _
    $region49: #{_fused_forward.1} parent=1 // pred_fallthru
      _
    // Predicated region
    $region50: #{_fused_forward.1} parent=1 // pred_check
      _
    $region51: #{_fused_forward.1} parent=1 // pred_check_branch
      %61 = sbr.rel (0) target = $region53
    $region52: #{_fused_forward.1} parent=1 // pred_region
      _
    $region53: #{_fused_forward.1} parent=1 // pred_fallthru
      _
    // Predicated region
    $region54: #{_fused_forward.1} parent=1 // pred_check
      _
    $region55: #{_fused_forward.1} parent=1 // pred_check_branch
      %63 = sbr.rel (0) target = $region57
    $region56: #{_fused_forward.1} parent=1 // pred_region
      _
    $region57: #{_fused_forward.1} parent=1 // pred_fallthru
      _
    // Predicated region
    $region58: #{_fused_forward.1} parent=1 // pred_check
      _
    $region59: #{_fused_forward.1} parent=1 // pred_check_branch
      %65 = sbr.rel (0) target = $region61
    $region60: #{_fused_forward.1} parent=1 // pred_region
      _
    $region61: #{_fused_forward.1} parent=1 // pred_fallthru
      _
    // Predicated region
    $region62: #{_fused_forward.1} parent=1 // pred_check
      _
    $region63: #{_fused_forward.1} parent=1 // pred_check_branch
      %67 = sbr.rel (0) target = $region65
    $region64: #{_fused_forward.1} parent=1 // pred_region
      _
    $region65: #{_fused_forward.1} parent=1 // pred_fallthru
      _
    // Predicated region
    $region66: #{_fused_forward.1} parent=1 // pred_check
      _
    $region67: #{_fused_forward.1} parent=1 // pred_check_branch
      %69 = sbr.rel (0) target = $region69
    $region68: #{_fused_forward.1} parent=1 // pred_region
      _
    $region69: #{_fused_forward.1} parent=1 // pred_fallthru
      _
    // Predicated region
    $region70: #{_fused_forward.1} parent=1 // pred_check
      _
    $region71: #{_fused_forward.1} parent=1 // pred_check_branch
      %71 = sbr.rel (0) target = $region73
    $region72: #{_fused_forward.1} parent=1 // pred_region
      _
    $region73: #{_fused_forward.1} parent=1 // pred_fallthru
      _
    // Predicated region
    $region74: #{_fused_forward.1} parent=1 // pred_check
      _
    $region75: #{_fused_forward.1} parent=1 // pred_check_branch
      %73 = sbr.rel (0) target = $region77
    $region76: #{_fused_forward.1} parent=1 // pred_region
      _
    $region77: #{_fused_forward.1} parent=1 // pred_fallthru
      _
    // Predicated region
    $region78: #{_fused_forward.1} parent=1 // pred_check
      _
    $region79: #{_fused_forward.1} parent=1 // pred_check_branch
      %75 = sbr.rel (0) target = $region81
    $region80: #{_fused_forward.1} parent=1 // pred_region
      _
    $region81: #{_fused_forward.1} parent=1 // pred_fallthru
      _
    // Predicated region
    $region82: #{_fused_forward.1} parent=1 // pred_check
      _
    $region83: #{_fused_forward.1} parent=1 // pred_check_branch
      %77 = sbr.rel (0) target = $region85
    $region84: #{_fused_forward.1} parent=1 // pred_region
      _
    $region85: #{_fused_forward.1} parent=1 // pred_fallthru
      _
    // Predicated region
    $region86: #{_fused_forward.1} parent=1 // pred_check
      _
    $region87: #{_fused_forward.1} parent=1 // pred_check_branch
      %79 = sbr.rel (0) target = $region89
    $region88: #{_fused_forward.1} parent=1 // pred_region
      _
    $region89: #{_fused_forward.1} parent=1 // pred_fallthru
      _
    // Predicated region
    $region90: #{_fused_forward.1} parent=1 // pred_check
      _
    $region91: #{_fused_forward.1} parent=1 // pred_check_branch
      %81 = sbr.rel (0) target = $region93
    $region92: #{_fused_forward.1} parent=1 // pred_region
      _
    $region93: #{_fused_forward.1} parent=1 // pred_fallthru
      _
    // Predicated region
    $region94: #{_fused_forward.1} parent=1 // pred_check
      _
    $region95: #{_fused_forward.1} parent=1 // pred_check_branch
      %83 = sbr.rel (0) target = $region97
    $region96: #{_fused_forward.1} parent=1 // pred_region
      %85 = dma.done [#allocation3], 16
    $region97: #{_fused_forward.1} parent=1 // pred_fallthru
      _
    %86 = sfence
    %v87 = vld [vmem:[%s1] sm:$0xff]
    %v88 = vld [vmem:[%s1 + $0x8] sm:$0xff]
    %v89 = vld [vmem:[%s1 + $0x10] sm:$0xff]
    %v90 = vld [vmem:[%s1 + $0x18] sm:$0xff]
    %v91 = vld [vmem:[%s1 + $0x20] sm:$0xff]
    %v92 = vld [vmem:[%s1 + $0x28] sm:$0xff]
    %v93 = vld [vmem:[%s1 + $0x30] sm:$0xff]
    %v94 = vld [vmem:[%s1 + $0x38] sm:$0xff]
    %v95 = vld [vmem:[%s1 + $0x40] sm:$0xff]
    %v96 = vld [vmem:[%s1 + $0x48] sm:$0xff]
    %v97 = vld [vmem:[%s1 + $0x50] sm:$0xff]
    %v98 = vld [vmem:[%s1 + $0x58] sm:$0xff]
    %v99 = vld [vmem:[%s1 + $0x60] sm:$0xff]
    %v100 = vld [vmem:[%s1 + $0x68] sm:$0xff]
    %v101 = vld [vmem:[%s1 + $0x70] sm:$0xff]
    %v102 = vld [vmem:[%s1 + $0x78] sm:$0xff]
    %v103 = vld [vmem:[%s1 + $0x80] sm:$0xff]
    %v104 = vld [vmem:[%s1 + $0x88] sm:$0xff]
    %v105 = vld [vmem:[%s1 + $0x90] sm:$0xff]
    %v106 = vld [vmem:[%s1 + $0x98] sm:$0xff]
    %v107 = vld [vmem:[%s1 + $0xa0] sm:$0x3]
    %v108 = vld [vmem:[%s2] sm:$0xff]
    %v109 = vld [vmem:[%s2 + $0x8] sm:$0xff]
    %v110 = vld [vmem:[%s2 + $0x10] sm:$0xff]
    %v111 = vld [vmem:[%s2 + $0x18] sm:$0xff]
    %v112 = vld [vmem:[%s2 + $0x20] sm:$0xff]
    %v113 = vld [vmem:[%s2 + $0x28] sm:$0x1f]
    %v114 = vld [vmem:[%s3] sm:$0x7]
    %v115 = vperm.slane %v114, 0
    %vm116 = vcmask 367616
    %v118 = vsel %vm116, %v87, 0
    %v121 = vsel %vm116, %v88, 0
    %v124 = vsel %vm116, %v89, 0
    %v127 = vsel %vm116, %v90, 0
    %v130 = vsel %vm116, %v91, 0
    %v133 = vsel %vm116, %v92, 0
    %v136 = vsel %vm116, %v93, 0
    %v139 = vsel %vm116, %v94, 0
    %v142 = vsel %vm116, %v95, 0
    %v145 = vsel %vm116, %v96, 0
    %v148 = vsel %vm116, %v97, 0
    %v151 = vsel %vm116, %v98, 0
    %v154 = vsel %vm116, %v99, 0
    %v157 = vsel %vm116, %v100, 0
    %v160 = vsel %vm116, %v101, 0
    %v163 = vsel %vm116, %v102, 0
    %v166 = vsel %vm116, %v103, 0
    %v169 = vsel %vm116, %v104, 0
    %v172 = vsel %vm116, %v105, 0
    %v175 = vsel %vm116, %v106, 0
    %v178 = vsel %vm116, %v107, 0
    %vm180 = vcmask 1044480
    %v182 = vsel %vm180, %v113, 0
    %184 = vmatpush.msra.mxu0 0.0
    %185 = vmatpush.msra.mxu0 0.0
    %186 = vmatpush.msra.mxu0 0.0
    %187 = vmatpush.msra.mxu0 0.0
    %188 = vmatpush.msra.mxu0 0.0
    %189 = vmatpush.msra.mxu0 0.0
    %190 = vmatpush.msra.mxu0 0.0
    %191 = vmatpush.msra.mxu0 0.0
    %192 = vmatpush.msra.mxu0 0.0
    %193 = vmatpush.msra.mxu0 0.0
    %194 = vmatpush.msra.mxu0 %v182
    %195 = vmatpush.msra.mxu0 %v112
    %196 = vmatpush.msra.mxu0 %v111
    %197 = vmatpush.msra.mxu0 %v110
    %198 = vmatpush.msra.mxu0 %v109
    %199 = vmatpush.msra.mxu0 %v108
    %200 = vmatmul.f32.gmra.mxu0 %v118
    %v201 = vpop.f32.mrf.mxu0
    %v202 = vadd.f32 %v115, %v201
    %203 = vmatmul.f32.gmra.mxu0 %v121
    %v204 = vpop.f32.mrf.mxu0
    %v205 = vadd.f32 %v115, %v204
    %206 = vmatmul.f32.gmra.mxu0 %v124
    %v207 = vpop.f32.mrf.mxu0
    %v208 = vadd.f32 %v115, %v207
    %209 = vmatmul.f32.gmra.mxu0 %v127
    %v210 = vpop.f32.mrf.mxu0
    %v211 = vadd.f32 %v115, %v210
    %212 = vmatmul.f32.gmra.mxu0 %v130
    %v213 = vpop.f32.mrf.mxu0
    %v214 = vadd.f32 %v115, %v213
    %215 = vmatmul.f32.gmra.mxu0 %v133
    %v216 = vpop.f32.mrf.mxu0
    %v217 = vadd.f32 %v115, %v216
    %218 = vmatmul.f32.gmra.mxu0 %v136
    %v219 = vpop.f32.mrf.mxu0
    %v220 = vadd.f32 %v115, %v219
    %221 = vmatmul.f32.gmra.mxu0 %v139
    %v222 = vpop.f32.mrf.mxu0
    %v223 = vadd.f32 %v115, %v222
    %224 = vmatmul.f32.gmra.mxu0 %v142
    %v225 = vpop.f32.mrf.mxu0
    %v226 = vadd.f32 %v115, %v225
    %227 = vmatmul.f32.gmra.mxu0 %v145
    %v228 = vpop.f32.mrf.mxu0
    %v229 = vadd.f32 %v115, %v228
    %230 = vmatmul.f32.gmra.mxu0 %v148
    %v231 = vpop.f32.mrf.mxu0
    %v232 = vadd.f32 %v115, %v231
    %233 = vmatmul.f32.gmra.mxu0 %v151
    %v234 = vpop.f32.mrf.mxu0
    %v235 = vadd.f32 %v115, %v234
    %236 = vmatmul.f32.gmra.mxu0 %v154
    %v237 = vpop.f32.mrf.mxu0
    %v238 = vadd.f32 %v115, %v237
    %239 = vmatmul.f32.gmra.mxu0 %v157
    %v240 = vpop.f32.mrf.mxu0
    %v241 = vadd.f32 %v115, %v240
    %242 = vmatmul.f32.gmra.mxu0 %v160
    %v243 = vpop.f32.mrf.mxu0
    %v244 = vadd.f32 %v115, %v243
    %245 = vmatmul.f32.gmra.mxu0 %v163
    %v246 = vpop.f32.mrf.mxu0
    %v247 = vadd.f32 %v115, %v246
    %248 = vmatmul.f32.gmra.mxu0 %v166
    %v249 = vpop.f32.mrf.mxu0
    %v250 = vadd.f32 %v115, %v249
    %251 = vmatmul.f32.gmra.mxu0 %v169
    %v252 = vpop.f32.mrf.mxu0
    %v253 = vadd.f32 %v115, %v252
    %254 = vmatmul.f32.gmra.mxu0 %v172
    %v255 = vpop.f32.mrf.mxu0
    %v256 = vadd.f32 %v115, %v255
    %257 = vmatmul.f32.gmra.mxu0 %v175
    %v258 = vpop.f32.mrf.mxu0
    %v259 = vadd.f32 %v115, %v258
    %260 = vmatmul.f32.gmra.mxu0 %v178
    %v261 = vpop.f32.mrf.mxu0
    %v262 = vadd.f32 %v115, %v261
    %263 = vdwg.mxu0
    %vm264 = vcmask 130048
    %v265 = vsel %vm264, %v202, 0.0
    %v266 = vsel %vm264, %v205, 0.0
    %v267 = vadd.f32 %v265, %v266
    %v268 = vsel %vm264, %v208, 0.0
    %v269 = vadd.f32 %v267, %v268
    %v270 = vsel %vm264, %v211, 0.0
    %v271 = vadd.f32 %v269, %v270
    %v272 = vsel %vm264, %v214, 0.0
    %v273 = vadd.f32 %v271, %v272
    %v274 = vsel %vm264, %v217, 0.0
    %v275 = vadd.f32 %v273, %v274
    %v276 = vsel %vm264, %v220, 0.0
    %v277 = vadd.f32 %v275, %v276
    %v278 = vsel %vm264, %v223, 0.0
    %v279 = vadd.f32 %v277, %v278
    %v280 = vsel %vm264, %v226, 0.0
    %v281 = vadd.f32 %v279, %v280
    %v282 = vsel %vm264, %v229, 0.0
    %v283 = vadd.f32 %v281, %v282
    %v284 = vsel %vm264, %v232, 0.0
    %v285 = vadd.f32 %v283, %v284
    %v286 = vsel %vm264, %v235, 0.0
    %v287 = vadd.f32 %v285, %v286
    %v288 = vsel %vm264, %v238, 0.0
    %v289 = vadd.f32 %v287, %v288
    %v290 = vsel %vm264, %v241, 0.0
    %v291 = vadd.f32 %v289, %v290
    %v292 = vsel %vm264, %v244, 0.0
    %v293 = vadd.f32 %v291, %v292
    %v294 = vsel %vm264, %v247, 0.0
    %v295 = vadd.f32 %v293, %v294
    %v296 = vsel %vm264, %v250, 0.0
    %v297 = vadd.f32 %v295, %v296
    %v298 = vsel %vm264, %v253, 0.0
    %v299 = vadd.f32 %v297, %v298
    %v300 = vsel %vm264, %v256, 0.0
    %v301 = vadd.f32 %v299, %v300
    %v302 = vsel %vm264, %v259, 0.0
    %v303 = vadd.f32 %v301, %v302
    %vm304 = vcmask 123904
    %v305 = vsel %vm304, %v262, 0.0
    %v306 = vadd.f32 %v303, %v305
    %v307 = vrot.slane %v306, 4
    %v308 = vadd.f32 %v306, %v307
    %v309 = vrot.slane %v308, 2
    %v310 = vadd.f32 %v308, %v309
    %v311 = vrot.slane %v310, 1
    %v312 = vadd.f32 %v310, %v311
    %v313 = vmul.f32 %v202, %v202
    %v314 = vmul.f32 %v205, %v205
    %v315 = vmul.f32 %v208, %v208
    %v316 = vmul.f32 %v211, %v211
    %v317 = vmul.f32 %v214, %v214
    %v318 = vmul.f32 %v217, %v217
    %v319 = vmul.f32 %v220, %v220
    %v320 = vmul.f32 %v223, %v223
    %v321 = vmul.f32 %v226, %v226
    %v322 = vmul.f32 %v229, %v229
    %v323 = vmul.f32 %v232, %v232
    %v324 = vmul.f32 %v235, %v235
    %v325 = vmul.f32 %v238, %v238
    %v326 = vmul.f32 %v241, %v241
    %v327 = vmul.f32 %v244, %v244
    %v328 = vmul.f32 %v247, %v247
    %v329 = vmul.f32 %v250, %v250
    %v330 = vmul.f32 %v253, %v253
    %v331 = vmul.f32 %v256, %v256
    %v332 = vmul.f32 %v259, %v259
    %v333 = vmul.f32 %v262, %v262
    %v334 = vsel %vm264, %v313, 0.0
    %v335 = vsel %vm264, %v314, 0.0
    %v336 = vadd.f32 %v334, %v335
    %v337 = vsel %vm264, %v315, 0.0
    %v338 = vadd.f32 %v336, %v337
    %v339 = vsel %vm264, %v316, 0.0
    %v340 = vadd.f32 %v338, %v339
    %v341 = vsel %vm264, %v317, 0.0
    %v342 = vadd.f32 %v340, %v341
    %v343 = vsel %vm264, %v318, 0.0
    %v344 = vadd.f32 %v342, %v343
    %v345 = vsel %vm264, %v319, 0.0
    %v346 = vadd.f32 %v344, %v345
    %v347 = vsel %vm264, %v320, 0.0
    %v348 = vadd.f32 %v346, %v347
    %v349 = vsel %vm264, %v321, 0.0
    %v350 = vadd.f32 %v348, %v349
    %v351 = vsel %vm264, %v322, 0.0
    %v352 = vadd.f32 %v350, %v351
    %v353 = vsel %vm264, %v323, 0.0
    %v354 = vadd.f32 %v352, %v353
    %v355 = vsel %vm264, %v324, 0.0
    %v356 = vadd.f32 %v354, %v355
    %v357 = vsel %vm264, %v325, 0.0
    %v358 = vadd.f32 %v356, %v357
    %v359 = vsel %vm264, %v326, 0.0
    %v360 = vadd.f32 %v358, %v359
    %v361 = vsel %vm264, %v327, 0.0
    %v362 = vadd.f32 %v360, %v361
    %v363 = vsel %vm264, %v328, 0.0
    %v364 = vadd.f32 %v362, %v363
    %v365 = vsel %vm264, %v329, 0.0
    %v366 = vadd.f32 %v364, %v365
    %v367 = vsel %vm264, %v330, 0.0
    %v368 = vadd.f32 %v366, %v367
    %v369 = vsel %vm264, %v331, 0.0
    %v370 = vadd.f32 %v368, %v369
    %v371 = vsel %vm264, %v332, 0.0
    %v372 = vadd.f32 %v370, %v371
    %v373 = vsel %vm304, %v333, 0.0
    %v374 = vadd.f32 %v372, %v373
    %v375 = vrot.slane %v374, 4
    %v376 = vadd.f32 %v374, %v375
    %v377 = vrot.slane %v376, 2
    %v378 = vadd.f32 %v376, %v377
    %v379 = vrot.slane %v378, 1
    %v380 = vadd.f32 %v378, %v379
    %v381 = vmul.f32 %v312, 0.0061728396
    %v382 = vmul.f32 %v380, 0.0061728396
    %v383 = vmul.f32 %v381, %v381
    %v384 = vsub.f32 %v382, %v383
    %v385 = vmax.f32 %v384, 0.0
    %v386 = vsub.f32 %v202, %v381
    %v387 = vsub.f32 %v205, %v381
    %v388 = vsub.f32 %v208, %v381
    %v389 = vsub.f32 %v211, %v381
    %v390 = vsub.f32 %v214, %v381
    %v391 = vsub.f32 %v217, %v381
    %v392 = vsub.f32 %v220, %v381
    %v393 = vsub.f32 %v223, %v381
    %v394 = vsub.f32 %v226, %v381
    %v395 = vsub.f32 %v229, %v381
    %v396 = vsub.f32 %v232, %v381
    %v397 = vsub.f32 %v235, %v381
    %v398 = vsub.f32 %v238, %v381
    %v399 = vsub.f32 %v241, %v381
    %v400 = vsub.f32 %v244, %v381
    %v401 = vsub.f32 %v247, %v381
    %v402 = vsub.f32 %v250, %v381
    %v403 = vsub.f32 %v253, %v381
    %v404 = vsub.f32 %v256, %v381
    %v405 = vsub.f32 %v259, %v381
    %v406 = vsub.f32 %v262, %v381
    %v407 = vperm.slane %v114, 1
    %v408 = vmul.f32 %v407, %v386
    %v409 = vmul.f32 %v407, %v387
    %v410 = vmul.f32 %v407, %v388
    %v411 = vmul.f32 %v407, %v389
    %v412 = vmul.f32 %v407, %v390
    %v413 = vmul.f32 %v407, %v391
    %v414 = vmul.f32 %v407, %v392
    %v415 = vmul.f32 %v407, %v393
    %v416 = vmul.f32 %v407, %v394
    %v417 = vmul.f32 %v407, %v395
    %v418 = vmul.f32 %v407, %v396
    %v419 = vmul.f32 %v407, %v397
    %v420 = vmul.f32 %v407, %v398
    %v421 = vmul.f32 %v407, %v399
    %v422 = vmul.f32 %v407, %v400
    %v423 = vmul.f32 %v407, %v401
    %v424 = vmul.f32 %v407, %v402
    %v425 = vmul.f32 %v407, %v403
    %v426 = vmul.f32 %v407, %v404
    %v427 = vmul.f32 %v407, %v405
    %v428 = vmul.f32 %v407, %v406
    %v429 = vadd.f32 %v385, 1e-05
    %v430 = vrsqrt.pop %v429
    %v431 = vmul.f32 %v430, %v429
    %v432 = vmul.f32 %v431, %v430
    %v433 = vmul.f32 0.5, %v432
    %v434 = vsub.f32 1.5, %v433
    %v435 = vmul.f32 %v430, %v434
    %vm436 = vweird.f32 %v429
    %vm437 = vweird.f32 %v430
    %vm438 = vmor %vm436, %vm437
    %v439 = vsel %vm438, %v430, %v435
    %v440 = vmul.f32 %v408, %v439
    %v441 = vmul.f32 %v409, %v439
    %v442 = vmul.f32 %v410, %v439
    %v443 = vmul.f32 %v411, %v439
    %v444 = vmul.f32 %v412, %v439
    %v445 = vmul.f32 %v413, %v439
    %v446 = vmul.f32 %v414, %v439
    %v447 = vmul.f32 %v415, %v439
    %v448 = vmul.f32 %v416, %v439
    %v449 = vmul.f32 %v417, %v439
    %v450 = vmul.f32 %v418, %v439
    %v451 = vmul.f32 %v419, %v439
    %v452 = vmul.f32 %v420, %v439
    %v453 = vmul.f32 %v421, %v439
    %v454 = vmul.f32 %v422, %v439
    %v455 = vmul.f32 %v423, %v439
    %v456 = vmul.f32 %v424, %v439
    %v457 = vmul.f32 %v425, %v439
    %v458 = vmul.f32 %v426, %v439
    %v459 = vmul.f32 %v427, %v439
    %v460 = vmul.f32 %v428, %v439
    %v461 = vperm.slane %v114, 2
    %v462 = vadd.f32 %v440, %v461
    %v463 = vadd.f32 %v441, %v461
    %v464 = vadd.f32 %v442, %v461
    %v465 = vadd.f32 %v443, %v461
    %v466 = vadd.f32 %v444, %v461
    %v467 = vadd.f32 %v445, %v461
    %v468 = vadd.f32 %v446, %v461
    %v469 = vadd.f32 %v447, %v461
    %v470 = vadd.f32 %v448, %v461
    %v471 = vadd.f32 %v449, %v461
    %v472 = vadd.f32 %v450, %v461
    %v473 = vadd.f32 %v451, %v461
    %v474 = vadd.f32 %v452, %v461
    %v475 = vadd.f32 %v453, %v461
    %v476 = vadd.f32 %v454, %v461
    %v477 = vadd.f32 %v455, %v461
    %v478 = vadd.f32 %v456, %v461
    %v479 = vadd.f32 %v457, %v461
    %v480 = vadd.f32 %v458, %v461
    %v481 = vadd.f32 %v459, %v461
    %v482 = vadd.f32 %v460, %v461
    %s483 = sld [smem:[#allocation2]]
    %vm484 = vcmp.ge.f32.partialorder %v462, 0.0
    %vm485 = vcmp.ge.f32.partialorder %v463, 0.0
    %vm486 = vcmp.ge.f32.partialorder %v464, 0.0
    %vm487 = vcmp.ge.f32.partialorder %v465, 0.0
    %vm488 = vcmp.ge.f32.partialorder %v466, 0.0
    %vm489 = vcmp.ge.f32.partialorder %v467, 0.0
    %vm490 = vcmp.ge.f32.partialorder %v468, 0.0
    %vm491 = vcmp.ge.f32.partialorder %v469, 0.0
    %vm492 = vcmp.ge.f32.partialorder %v470, 0.0
    %vm493 = vcmp.ge.f32.partialorder %v471, 0.0
    %vm494 = vcmp.ge.f32.partialorder %v472, 0.0
    %vm495 = vcmp.ge.f32.partialorder %v473, 0.0
    %vm496 = vcmp.ge.f32.partialorder %v474, 0.0
    %vm497 = vcmp.ge.f32.partialorder %v475, 0.0
    %vm498 = vcmp.ge.f32.partialorder %v476, 0.0
    %vm499 = vcmp.ge.f32.partialorder %v477, 0.0
    %vm500 = vcmp.ge.f32.partialorder %v478, 0.0
    %vm501 = vcmp.ge.f32.partialorder %v479, 0.0
    %vm502 = vcmp.ge.f32.partialorder %v480, 0.0
    %vm503 = vcmp.ge.f32.partialorder %v481, 0.0
    %vm504 = vcmp.ge.f32.partialorder %v482, 0.0
    %v505 = vstv %s483
    %v506 = vmul.f32 %v505, %v462
    %v507 = vmul.f32 %v505, %v463
    %v508 = vmul.f32 %v505, %v464
    %v509 = vmul.f32 %v505, %v465
    %v510 = vmul.f32 %v505, %v466
    %v511 = vmul.f32 %v505, %v467
    %v512 = vmul.f32 %v505, %v468
    %v513 = vmul.f32 %v505, %v469
    %v514 = vmul.f32 %v505, %v470
    %v515 = vmul.f32 %v505, %v471
    %v516 = vmul.f32 %v505, %v472
    %v517 = vmul.f32 %v505, %v473
    %v518 = vmul.f32 %v505, %v474
    %v519 = vmul.f32 %v505, %v475
    %v520 = vmul.f32 %v505, %v476
    %v521 = vmul.f32 %v505, %v477
    %v522 = vmul.f32 %v505, %v478
    %v523 = vmul.f32 %v505, %v479
    %v524 = vmul.f32 %v505, %v480
    %v525 = vmul.f32 %v505, %v481
    %v526 = vmul.f32 %v505, %v482
    %v527 = vsel %vm484, %v462, %v506
    %v528 = vsel %vm485, %v463, %v507
    %v529 = vsel %vm486, %v464, %v508
    %v530 = vsel %vm487, %v465, %v509
    %v531 = vsel %vm488, %v466, %v510
    %v532 = vsel %vm489, %v467, %v511
    %v533 = vsel %vm490, %v468, %v512
    %v534 = vsel %vm491, %v469, %v513
    %v535 = vsel %vm492, %v470, %v514
    %v536 = vsel %vm493, %v471, %v515
    %v537 = vsel %vm494, %v472, %v516
    %v538 = vsel %vm495, %v473, %v517
    %v539 = vsel %vm496, %v474, %v518
    %v540 = vsel %vm497, %v475, %v519
    %v541 = vsel %vm498, %v476, %v520
    %v542 = vsel %vm499, %v477, %v521
    %v543 = vsel %vm500, %v478, %v522
    %v544 = vsel %vm501, %v479, %v523
    %v545 = vsel %vm502, %v480, %v524
    %v546 = vsel %vm503, %v481, %v525
    %v547 = vsel %vm504, %v482, %v526
    %v548 = vld [vmem:[%s4] sm:$0xff]
    %v549 = vld [vmem:[%s4 + $0x8] sm:$0xff]
    %v550 = vld [vmem:[%s4 + $0x10] sm:$0xff]
    %v551 = vld [vmem:[%s4 + $0x18] sm:$0xff]
    %v552 = vld [vmem:[%s4 + $0x20] sm:$0xff]
    %v553 = vld [vmem:[%s4 + $0x28] sm:$0xff]
    %v554 = vld [vmem:[%s4 + $0x30] sm:$0xff]
    %v555 = vld [vmem:[%s4 + $0x38] sm:$0xff]
    %vm556 = vcmask 277504
    %v558 = vsel %vm556, %v549, 0
    %v561 = vsel %vm556, %v551, 0
    %v564 = vsel %vm556, %v553, 0
    %v567 = vsel %vm556, %v555, 0
    %vm569 = vcmask 1041408
    %v571 = vsel %vm569, %v547, 0
    %573 = vmatpush.msra.mxu0 %v542
    %574 = vmatpush.msra.mxu0 %v541
    %575 = vmatpush.msra.mxu0 %v540
    %576 = vmatpush.msra.mxu0 %v539
    %577 = vmatpush.msra.mxu0 %v538
    %578 = vmatpush.msra.mxu0 %v537
    %579 = vmatpush.msra.mxu0 %v536
    %580 = vmatpush.msra.mxu0 %v535
    %581 = vmatpush.msra.mxu0 %v534
    %582 = vmatpush.msra.mxu0 %v533
    %583 = vmatpush.msra.mxu0 %v532
    %584 = vmatpush.msra.mxu0 %v531
    %585 = vmatpush.msra.mxu0 %v530
    %586 = vmatpush.msra.mxu0 %v529
    %587 = vmatpush.msra.mxu0 %v528
    %588 = vmatpush.msra.mxu0 %v527
    %589 = vmatmul.f32.gmra.mxu0 %v548
    %v590 = vpop.f32.mrf.mxu0
    %v591 = vadd.f32 0.0, %v590
    %592 = vmatmul.f32.gmra.mxu0 %v550
    %v593 = vpop.f32.mrf.mxu0
    %v594 = vadd.f32 0.0, %v593
    %595 = vmatmul.f32.gmra.mxu0 %v552
    %v596 = vpop.f32.mrf.mxu0
    %v597 = vadd.f32 0.0, %v596
    %598 = vmatmul.f32.gmra.mxu0 %v554
    %v599 = vpop.f32.mrf.mxu0
    %v600 = vadd.f32 0.0, %v599
    %601 = vdwg.mxu0
    %602 = vmatpush.msra.mxu0 0.0
    %603 = vmatpush.msra.mxu0 0.0
    %604 = vmatpush.msra.mxu0 0.0
    %605 = vmatpush.msra.mxu0 0.0
    %606 = vmatpush.msra.mxu0 0.0
    %607 = vmatpush.msra.mxu0 0.0
    %608 = vmatpush.msra.mxu0 0.0
    %609 = vmatpush.msra.mxu0 0.0
    %610 = vmatpush.msra.mxu0 0.0
    %611 = vmatpush.msra.mxu0 0.0
    %612 = vmatpush.msra.mxu0 0.0
    %613 = vmatpush.msra.mxu0 %v571
    %614 = vmatpush.msra.mxu0 %v546
    %615 = vmatpush.msra.mxu0 %v545
    %616 = vmatpush.msra.mxu0 %v544
    %617 = vmatpush.msra.mxu0 %v543
    %618 = vmatmul.f32.gmra.mxu0 %v558
    %v619 = vpop.f32.mrf.mxu0
    %v620 = vadd.f32 %v591, %v619
    %621 = vmatmul.f32.gmra.mxu0 %v561
    %v622 = vpop.f32.mrf.mxu0
    %v623 = vadd.f32 %v594, %v622
    %624 = vmatmul.f32.gmra.mxu0 %v564
    %v625 = vpop.f32.mrf.mxu0
    %v626 = vadd.f32 %v597, %v625
    %627 = vmatmul.f32.gmra.mxu0 %v567
    %v628 = vpop.f32.mrf.mxu0
    %v629 = vadd.f32 %v600, %v628
    %630 = vdwg.mxu0
    %s631 = scalar_lea.vmem %s4, 64
    %v632 = vld [vmem:[%s631] sm:$0xff]
    %v633 = vld [vmem:[%s631 + $0x8] sm:$0xff]
    %v634 = vld [vmem:[%s631 + $0x10] sm:$0xff]
    %v635 = vld [vmem:[%s631 + $0x18] sm:$0xff]
    %v636 = vld [vmem:[%s631 + $0x20] sm:$0xff]
    %v637 = vld [vmem:[%s631 + $0x28] sm:$0xff]
    %v638 = vld [vmem:[%s631 + $0x30] sm:$0xff]
    %v639 = vld [vmem:[%s631 + $0x38] sm:$0xff]
    %v641 = vsel %vm556, %v633, 0
    %v644 = vsel %vm556, %v635, 0
    %v647 = vsel %vm556, %v637, 0
    %v650 = vsel %vm556, %v639, 0
    %652 = vmatpush.msra.mxu0 %v542
    %653 = vmatpush.msra.mxu0 %v541
    %654 = vmatpush.msra.mxu0 %v540
    %655 = vmatpush.msra.mxu0 %v539
    %656 = vmatpush.msra.mxu0 %v538
    %657 = vmatpush.msra.mxu0 %v537
    %658 = vmatpush.msra.mxu0 %v536
    %659 = vmatpush.msra.mxu0 %v535
    %660 = vmatpush.msra.mxu0 %v534
    %661 = vmatpush.msra.mxu0 %v533
    %662 = vmatpush.msra.mxu0 %v532
    %663 = vmatpush.msra.mxu0 %v531
    %664 = vmatpush.msra.mxu0 %v530
    %665 = vmatpush.msra.mxu0 %v529
    %666 = vmatpush.msra.mxu0 %v528
    %667 = vmatpush.msra.mxu0 %v527
    %668 = vmatmul.f32.gmra.mxu0 %v632
    %v669 = vpop.f32.mrf.mxu0
    %v670 = vadd.f32 0.0, %v669
    %671 = vmatmul.f32.gmra.mxu0 %v634
    %v672 = vpop.f32.mrf.mxu0
    %v673 = vadd.f32 0.0, %v672
    %674 = vmatmul.f32.gmra.mxu0 %v636
    %v675 = vpop.f32.mrf.mxu0
    %v676 = vadd.f32 0.0, %v675
    %677 = vmatmul.f32.gmra.mxu0 %v638
    %v678 = vpop.f32.mrf.mxu0
    %v679 = vadd.f32 0.0, %v678
    %680 = vdwg.mxu0
    %681 = vmatpush.msra.mxu0 0.0
    %682 = vmatpush.msra.mxu0 0.0
    %683 = vmatpush.msra.mxu0 0.0
    %684 = vmatpush.msra.mxu0 0.0
    %685 = vmatpush.msra.mxu0 0.0
    %686 = vmatpush.msra.mxu0 0.0
    %687 = vmatpush.msra.mxu0 0.0
    %688 = vmatpush.msra.mxu0 0.0
    %689 = vmatpush.msra.mxu0 0.0
    %690 = vmatpush.msra.mxu0 0.0
    %691 = vmatpush.msra.mxu0 0.0
    %692 = vmatpush.msra.mxu0 %v571
    %693 = vmatpush.msra.mxu0 %v546
    %694 = vmatpush.msra.mxu0 %v545
    %695 = vmatpush.msra.mxu0 %v544
    %696 = vmatpush.msra.mxu0 %v543
    %697 = vmatmul.f32.gmra.mxu0 %v641
    %v698 = vpop.f32.mrf.mxu0
    %v699 = vadd.f32 %v670, %v698
    %700 = vmatmul.f32.gmra.mxu0 %v644
    %v701 = vpop.f32.mrf.mxu0
    %v702 = vadd.f32 %v673, %v701
    %703 = vmatmul.f32.gmra.mxu0 %v647
    %v704 = vpop.f32.mrf.mxu0
    %v705 = vadd.f32 %v676, %v704
    %706 = vmatmul.f32.gmra.mxu0 %v650
    %v707 = vpop.f32.mrf.mxu0
    %v708 = vadd.f32 %v679, %v707
    %709 = vdwg.mxu0
    %v710 = vmax.f32 %v620, %v699
    %v711 = vmax.f32 %v623, %v702
    %v712 = vmax.f32 %v626, %v705
    %v713 = vmax.f32 %v629, %v708
    %s714 = scalar_lea.vmem %s4, 128
    %v715 = vld [vmem:[%s714] sm:$0xff]
    %v716 = vld [vmem:[%s714 + $0x8] sm:$0xff]
    %v717 = vld [vmem:[%s714 + $0x10] sm:$0xff]
    %v718 = vld [vmem:[%s714 + $0x18] sm:$0xff]
    %v719 = vld [vmem:[%s714 + $0x20] sm:$0xff]
    %v720 = vld [vmem:[%s714 + $0x28] sm:$0xff]
    %v721 = vld [vmem:[%s714 + $0x30] sm:$0xff]
    %v722 = vld [vmem:[%s714 + $0x38] sm:$0xff]
    %v724 = vsel %vm556, %v716, 0
    %v727 = vsel %vm556, %v718, 0
    %v730 = vsel %vm556, %v720, 0
    %v733 = vsel %vm556, %v722, 0
    %735 = vmatpush.msra.mxu0 %v542
    %736 = vmatpush.msra.mxu0 %v541
    %737 = vmatpush.msra.mxu0 %v540
    %738 = vmatpush.msra.mxu0 %v539
    %739 = vmatpush.msra.mxu0 %v538
    %740 = vmatpush.msra.mxu0 %v537
    %741 = vmatpush.msra.mxu0 %v536
    %742 = vmatpush.msra.mxu0 %v535
    %743 = vmatpush.msra.mxu0 %v534
    %744 = vmatpush.msra.mxu0 %v533
    %745 = vmatpush.msra.mxu0 %v532
    %746 = vmatpush.msra.mxu0 %v531
    %747 = vmatpush.msra.mxu0 %v530
    %748 = vmatpush.msra.mxu0 %v529
    %749 = vmatpush.msra.mxu0 %v528
    %750 = vmatpush.msra.mxu0 %v527
    %751 = vmatmul.f32.gmra.mxu0 %v715
    %v752 = vpop.f32.mrf.mxu0
    %v753 = vadd.f32 0.0, %v752
    %754 = vmatmul.f32.gmra.mxu0 %v717
    %v755 = vpop.f32.mrf.mxu0
    %v756 = vadd.f32 0.0, %v755
    %757 = vmatmul.f32.gmra.mxu0 %v719
    %v758 = vpop.f32.mrf.mxu0
    %v759 = vadd.f32 0.0, %v758
    %760 = vmatmul.f32.gmra.mxu0 %v721
    %v761 = vpop.f32.mrf.mxu0
    %v762 = vadd.f32 0.0, %v761
    %763 = vdwg.mxu0
    %764 = vmatpush.msra.mxu0 0.0
    %765 = vmatpush.msra.mxu0 0.0
    %766 = vmatpush.msra.mxu0 0.0
    %767 = vmatpush.msra.mxu0 0.0
    %768 = vmatpush.msra.mxu0 0.0
    %769 = vmatpush.msra.mxu0 0.0
    %770 = vmatpush.msra.mxu0 0.0
    %771 = vmatpush.msra.mxu0 0.0
    %772 = vmatpush.msra.mxu0 0.0
    %773 = vmatpush.msra.mxu0 0.0
    %774 = vmatpush.msra.mxu0 0.0
    %775 = vmatpush.msra.mxu0 %v571
    %776 = vmatpush.msra.mxu0 %v546
    %777 = vmatpush.msra.mxu0 %v545
    %778 = vmatpush.msra.mxu0 %v544
    %779 = vmatpush.msra.mxu0 %v543
    %780 = vmatmul.f32.gmra.mxu0 %v724
    %v781 = vpop.f32.mrf.mxu0
    %v782 = vadd.f32 %v753, %v781
    %783 = vmatmul.f32.gmra.mxu0 %v727
    %v784 = vpop.f32.mrf.mxu0
    %v785 = vadd.f32 %v756, %v784
    %786 = vmatmul.f32.gmra.mxu0 %v730
    %v787 = vpop.f32.mrf.mxu0
    %v788 = vadd.f32 %v759, %v787
    %789 = vmatmul.f32.gmra.mxu0 %v733
    %v790 = vpop.f32.mrf.mxu0
    %v791 = vadd.f32 %v762, %v790
    %792 = vdwg.mxu0
    %s793 = scalar_lea.vmem %s4, 192
    %v794 = vld [vmem:[%s793] sm:$0xff]
    %v795 = vld [vmem:[%s793 + $0x8] sm:$0xff]
    %v796 = vld [vmem:[%s793 + $0x10] sm:$0xff]
    %v797 = vld [vmem:[%s793 + $0x18] sm:$0xff]
    %v798 = vld [vmem:[%s793 + $0x20] sm:$0xff]
    %v799 = vld [vmem:[%s793 + $0x28] sm:$0xff]
    %v800 = vld [vmem:[%s793 + $0x30] sm:$0xff]
    %v801 = vld [vmem:[%s793 + $0x38] sm:$0xff]
    %v803 = vsel %vm556, %v795, 0
    %v806 = vsel %vm556, %v797, 0
    %v809 = vsel %vm556, %v799, 0
    %v812 = vsel %vm556, %v801, 0
    %814 = vmatpush.msra.mxu0 %v542
    %815 = vmatpush.msra.mxu0 %v541
    %816 = vmatpush.msra.mxu0 %v540
    %817 = vmatpush.msra.mxu0 %v539
    %818 = vmatpush.msra.mxu0 %v538
    %819 = vmatpush.msra.mxu0 %v537
    %820 = vmatpush.msra.mxu0 %v536
    %821 = vmatpush.msra.mxu0 %v535
    %822 = vmatpush.msra.mxu0 %v534
    %823 = vmatpush.msra.mxu0 %v533
    %824 = vmatpush.msra.mxu0 %v532
    %825 = vmatpush.msra.mxu0 %v531
    %826 = vmatpush.msra.mxu0 %v530
    %827 = vmatpush.msra.mxu0 %v529
    %828 = vmatpush.msra.mxu0 %v528
    %829 = vmatpush.msra.mxu0 %v527
    %830 = vmatmul.f32.gmra.mxu0 %v794
    %v831 = vpop.f32.mrf.mxu0
    %v832 = vadd.f32 0.0, %v831
    %833 = vmatmul.f32.gmra.mxu0 %v796
    %v834 = vpop.f32.mrf.mxu0
    %v835 = vadd.f32 0.0, %v834
    %836 = vmatmul.f32.gmra.mxu0 %v798
    %v837 = vpop.f32.mrf.mxu0
    %v838 = vadd.f32 0.0, %v837
    %839 = vmatmul.f32.gmra.mxu0 %v800
    %v840 = vpop.f32.mrf.mxu0
    %v841 = vadd.f32 0.0, %v840
    %842 = vdwg.mxu0
    %843 = vmatpush.msra.mxu0 0.0
    %844 = vmatpush.msra.mxu0 0.0
    %845 = vmatpush.msra.mxu0 0.0
    %846 = vmatpush.msra.mxu0 0.0
    %847 = vmatpush.msra.mxu0 0.0
    %848 = vmatpush.msra.mxu0 0.0
    %849 = vmatpush.msra.mxu0 0.0
    %850 = vmatpush.msra.mxu0 0.0
    %851 = vmatpush.msra.mxu0 0.0
    %852 = vmatpush.msra.mxu0 0.0
    %853 = vmatpush.msra.mxu0 0.0
    %854 = vmatpush.msra.mxu0 %v571
    %855 = vmatpush.msra.mxu0 %v546
    %856 = vmatpush.msra.mxu0 %v545
    %857 = vmatpush.msra.mxu0 %v544
    %858 = vmatpush.msra.mxu0 %v543
    %859 = vmatmul.f32.gmra.mxu0 %v803
    %v860 = vpop.f32.mrf.mxu0
    %v861 = vadd.f32 %v832, %v860
    %862 = vmatmul.f32.gmra.mxu0 %v806
    %v863 = vpop.f32.mrf.mxu0
    %v864 = vadd.f32 %v835, %v863
    %865 = vmatmul.f32.gmra.mxu0 %v809
    %v866 = vpop.f32.mrf.mxu0
    %v867 = vadd.f32 %v838, %v866
    %868 = vmatmul.f32.gmra.mxu0 %v812
    %v869 = vpop.f32.mrf.mxu0
    %v870 = vadd.f32 %v841, %v869
    %871 = vdwg.mxu0
    %v872 = vmax.f32 %v782, %v861
    %v873 = vmax.f32 %v785, %v864
    %v874 = vmax.f32 %v788, %v867
    %v875 = vmax.f32 %v791, %v870
    %v876 = vmax.f32 %v710, %v872
    %v877 = vmax.f32 %v711, %v873
    %v878 = vmax.f32 %v712, %v874
    %v879 = vmax.f32 %v713, %v875
    %v880 = vld [vmem:[%s5] sm:$0xff]
    %v881 = vld [vmem:[%s5 + $0x8] sm:$0xff]
    %v882 = vld [vmem:[%s5 + $0x10] sm:$0x3]
    %vm883 = vcmask 261120
    %v885 = vsel %vm883, %v880, 0
    %v888 = vsel %vm883, %v881, 0
    %v891 = vsel %vm883, %v882, 0
    %893 = vmatpush.msra.mxu0 0.0
    %894 = vmatpush.msra.mxu0 0.0
    %895 = vmatpush.msra.mxu0 0.0
    %896 = vmatpush.msra.mxu0 0.0
    %897 = vmatpush.msra.mxu0 0.0
    %898 = vmatpush.msra.mxu0 0.0
    %899 = vmatpush.msra.mxu0 0.0
    %900 = vmatpush.msra.mxu0 0.0
    %901 = vmatpush.msra.mxu0 0.0
    %902 = vmatpush.msra.mxu0 0.0
    %903 = vmatpush.msra.mxu0 0.0
    %904 = vmatpush.msra.mxu0 0.0
    %905 = vmatpush.msra.mxu0 %v879
    %906 = vmatpush.msra.mxu0 %v878
    %907 = vmatpush.msra.mxu0 %v877
    %908 = vmatpush.msra.mxu0 %v876
    %909 = vmatmul.f32.gmra.mxu0 %v885
    %v910 = vpop.f32.mrf.mxu0
    %v911 = vadd.f32 0.0, %v910
    %912 = vmatmul.f32.gmra.mxu0 %v888
    %v913 = vpop.f32.mrf.mxu0
    %v914 = vadd.f32 0.0, %v913
    %915 = vmatmul.f32.gmra.mxu0 %v891
    %v916 = vpop.f32.mrf.mxu0
    %v917 = vadd.f32 0.0, %v916
    %918 = vdwg.mxu0
    %v919 = vld [vmem:[%s6] sm:$0xff]
    %v920 = vld [vmem:[%s6 + $0x8] sm:$0xff]
    %s921 = scalar_lea.vmem %s5, 24
    %v922 = vld [vmem:[%s921] sm:$0xff]
    %v923 = vld [vmem:[%s921 + $0x8] sm:$0xff]
    %v924 = vld [vmem:[%s921 + $0x10] sm:$0x3]
    %v926 = vsel %vm883, %v922, 0
    %v929 = vsel %vm883, %v923, 0
    %v932 = vsel %vm883, %v924, 0
    %934 = vmatpush.msra.mxu0 0.0
    %935 = vmatpush.msra.mxu0 0.0
    %936 = vmatpush.msra.mxu0 0.0
    %937 = vmatpush.msra.mxu0 0.0
    %938 = vmatpush.msra.mxu0 0.0
    %939 = vmatpush.msra.mxu0 0.0
    %940 = vmatpush.msra.mxu0 0.0
    %941 = vmatpush.msra.mxu0 0.0
    %942 = vmatpush.msra.mxu0 0.0
    %943 = vmatpush.msra.mxu0 0.0
    %944 = vmatpush.msra.mxu0 0.0
    %945 = vmatpush.msra.mxu0 0.0
    %946 = vmatpush.msra.mxu0 %v879
    %947 = vmatpush.msra.mxu0 %v878
    %948 = vmatpush.msra.mxu0 %v877
    %949 = vmatpush.msra.mxu0 %v876
    %950 = vmatmul.f32.gmra.mxu0 %v926
    %v951 = vpop.f32.mrf.mxu0
    %v952 = vadd.f32 0.0, %v951
    %953 = vmatmul.f32.gmra.mxu0 %v929
    %v954 = vpop.f32.mrf.mxu0
    %v955 = vadd.f32 0.0, %v954
    %956 = vmatmul.f32.gmra.mxu0 %v932
    %v957 = vpop.f32.mrf.mxu0
    %v958 = vadd.f32 0.0, %v957
    %959 = vdwg.mxu0
    %s960 = scalar_lea.vmem %s6, 16
    %v961 = vld [vmem:[%s960] sm:$0xff]
    %v962 = vld [vmem:[%s960 + $0x8] sm:$0xff]
    %v964 = vsel %vm264, %v952, 0
    %v967 = vsel %vm264, %v955, 0
    %v970 = vsel %vm264, %v958, 0
    %972 = vmatpush.msra.mxu0 0.0
    %973 = vmatpush.msra.mxu0 0.0
    %974 = vmatpush.msra.mxu0 0.0
    %975 = vmatpush.msra.mxu0 0.0
    %976 = vmatpush.msra.mxu0 0.0
    %977 = vmatpush.msra.mxu0 0.0
    %978 = vmatpush.msra.mxu0 0.0
    %979 = vmatpush.msra.mxu0 0.0
    %980 = vmatpush.msra.mxu0 0.0
    %981 = vmatpush.msra.mxu0 0.0
    %982 = vmatpush.msra.mxu0 0.0
    %983 = vmatpush.msra.mxu0 0.0
    %984 = vmatpush.msra.mxu0 0.0
    %985 = vmatpush.msra.mxu0 0.0
    %986 = vmatpush.msra.mxu0 %v962
    %987 = vmatpush.msra.mxu0 %v961
    %988 = vmatmul.f32.gmra.mxu0 %v964
    %v989 = vpop.f32.mrf.mxu0
    %v990 = vadd.f32 0.0, %v989
    %991 = vmatmul.f32.gmra.mxu0 %v967
    %v992 = vpop.f32.mrf.mxu0
    %v993 = vadd.f32 0.0, %v992
    %994 = vmatmul.f32.gmra.mxu0 %v970
    %v995 = vpop.f32.mrf.mxu0
    %v996 = vadd.f32 0.0, %v995
    %997 = vdwg.mxu0
    %v999 = vsel %vm264, %v911, 0
    %v1002 = vsel %vm264, %v914, 0
    %v1005 = vsel %vm264, %v917, 0
    %1007 = vmatpush.msra.mxu0 0.0
    %1008 = vmatpush.msra.mxu0 0.0
    %1009 = vmatpush.msra.mxu0 0.0
    %1010 = vmatpush.msra.mxu0 0.0
    %1011 = vmatpush.msra.mxu0 0.0
    %1012 = vmatpush.msra.mxu0 0.0
    %1013 = vmatpush.msra.mxu0 0.0
    %1014 = vmatpush.msra.mxu0 0.0
    %1015 = vmatpush.msra.mxu0 0.0
    %1016 = vmatpush.msra.mxu0 0.0
    %1017 = vmatpush.msra.mxu0 0.0
    %1018 = vmatpush.msra.mxu0 0.0
    %1019 = vmatpush.msra.mxu0 0.0
    %1020 = vmatpush.msra.mxu0 0.0
    %1021 = vmatpush.msra.mxu0 %v920
    %1022 = vmatpush.msra.mxu0 %v919
    %1023 = vmatmul.f32.gmra.mxu0 %v999
    %v1024 = vpop.f32.mrf.mxu0
    %v1025 = vadd.f32 %v990, %v1024
    %1026 = vmatmul.f32.gmra.mxu0 %v1002
    %v1027 = vpop.f32.mrf.mxu0
    %v1028 = vadd.f32 %v993, %v1027
    %1029 = vmatmul.f32.gmra.mxu0 %v1005
    %v1030 = vpop.f32.mrf.mxu0
    %v1031 = vadd.f32 %v996, %v1030
    %1032 = vdwg.mxu0
    %s1033 = scalar_lea.vmem %s5, 48
    %v1034 = vld [vmem:[%s1033] sm:$0xff]
    %v1035 = vld [vmem:[%s1033 + $0x8] sm:$0xff]
    %v1036 = vld [vmem:[%s1033 + $0x10] sm:$0x3]
    %v1038 = vsel %vm883, %v1034, 0
    %v1041 = vsel %vm883, %v1035, 0
    %v1044 = vsel %vm883, %v1036, 0
    %1046 = vmatpush.msra.mxu0 0.0
    %1047 = vmatpush.msra.mxu0 0.0
    %1048 = vmatpush.msra.mxu0 0.0
    %1049 = vmatpush.msra.mxu0 0.0
    %1050 = vmatpush.msra.mxu0 0.0
    %1051 = vmatpush.msra.mxu0 0.0
    %1052 = vmatpush.msra.mxu0 0.0
    %1053 = vmatpush.msra.mxu0 0.0
    %1054 = vmatpush.msra.mxu0 0.0
    %1055 = vmatpush.msra.mxu0 0.0
    %1056 = vmatpush.msra.mxu0 0.0
    %1057 = vmatpush.msra.mxu0 0.0
    %1058 = vmatpush.msra.mxu0 %v879
    %1059 = vmatpush.msra.mxu0 %v878
    %1060 = vmatpush.msra.mxu0 %v877
    %1061 = vmatpush.msra.mxu0 %v876
    %1062 = vmatmul.f32.gmra.mxu0 %v1038
    %v1063 = vpop.f32.mrf.mxu0
    %v1064 = vadd.f32 0.0, %v1063
    %1065 = vmatmul.f32.gmra.mxu0 %v1041
    %v1066 = vpop.f32.mrf.mxu0
    %v1067 = vadd.f32 0.0, %v1066
    %1068 = vmatmul.f32.gmra.mxu0 %v1044
    %v1069 = vpop.f32.mrf.mxu0
    %v1070 = vadd.f32 0.0, %v1069
    %1071 = vdwg.mxu0
    %s1072 = scalar_lea.vmem %s6, 32
    %v1073 = vld [vmem:[%s1072] sm:$0xff]
    %v1074 = vld [vmem:[%s1072 + $0x8] sm:$0xff]
    %v1076 = vsel %vm264, %v1064, 0
    %v1079 = vsel %vm264, %v1067, 0
    %v1082 = vsel %vm264, %v1070, 0
    %1084 = vmatpush.msra.mxu0 0.0
    %1085 = vmatpush.msra.mxu0 0.0
    %1086 = vmatpush.msra.mxu0 0.0
    %1087 = vmatpush.msra.mxu0 0.0
    %1088 = vmatpush.msra.mxu0 0.0
    %1089 = vmatpush.msra.mxu0 0.0
    %1090 = vmatpush.msra.mxu0 0.0
    %1091 = vmatpush.msra.mxu0 0.0
    %1092 = vmatpush.msra.mxu0 0.0
    %1093 = vmatpush.msra.mxu0 0.0
    %1094 = vmatpush.msra.mxu0 0.0
    %1095 = vmatpush.msra.mxu0 0.0
    %1096 = vmatpush.msra.mxu0 0.0
    %1097 = vmatpush.msra.mxu0 0.0
    %1098 = vmatpush.msra.mxu0 %v1074
    %1099 = vmatpush.msra.mxu0 %v1073
    %1100 = vmatmul.f32.gmra.mxu0 %v1076
    %v1101 = vpop.f32.mrf.mxu0
    %v1102 = vadd.f32 0.0, %v1101
    %1103 = vmatmul.f32.gmra.mxu0 %v1079
    %v1104 = vpop.f32.mrf.mxu0
    %v1105 = vadd.f32 0.0, %v1104
    %1106 = vmatmul.f32.gmra.mxu0 %v1082
    %v1107 = vpop.f32.mrf.mxu0
    %v1108 = vadd.f32 0.0, %v1107
    %1109 = vdwg.mxu0
    %v1110 = vadd.f32 %v1025, %v1102
    %v1111 = vadd.f32 %v1028, %v1105
    %v1112 = vadd.f32 %v1031, %v1108
    %s1113 = scalar_lea.vmem %s5, 72
    %v1114 = vld [vmem:[%s1113] sm:$0xff]
    %v1115 = vld [vmem:[%s1113 + $0x8] sm:$0xff]
    %v1116 = vld [vmem:[%s1113 + $0x10] sm:$0x3]
    %v1118 = vsel %vm883, %v1114, 0
    %v1121 = vsel %vm883, %v1115, 0
    %v1124 = vsel %vm883, %v1116, 0
    %1126 = vmatpush.msra.mxu0 0.0
    %1127 = vmatpush.msra.mxu0 0.0
    %1128 = vmatpush.msra.mxu0 0.0
    %1129 = vmatpush.msra.mxu0 0.0
    %1130 = vmatpush.msra.mxu0 0.0
    %1131 = vmatpush.msra.mxu0 0.0
    %1132 = vmatpush.msra.mxu0 0.0
    %1133 = vmatpush.msra.mxu0 0.0
    %1134 = vmatpush.msra.mxu0 0.0
    %1135 = vmatpush.msra.mxu0 0.0
    %1136 = vmatpush.msra.mxu0 0.0
    %1137 = vmatpush.msra.mxu0 0.0
    %1138 = vmatpush.msra.mxu0 %v879
    %1139 = vmatpush.msra.mxu0 %v878
    %1140 = vmatpush.msra.mxu0 %v877
    %1141 = vmatpush.msra.mxu0 %v876
    %1142 = vmatmul.f32.gmra.mxu0 %v1118
    %v1143 = vpop.f32.mrf.mxu0
    %v1144 = vadd.f32 0.0, %v1143
    %1145 = vmatmul.f32.gmra.mxu0 %v1121
    %v1146 = vpop.f32.mrf.mxu0
    %v1147 = vadd.f32 0.0, %v1146
    %1148 = vmatmul.f32.gmra.mxu0 %v1124
    %v1149 = vpop.f32.mrf.mxu0
    %v1150 = vadd.f32 0.0, %v1149
    %1151 = vdwg.mxu0
    %s1152 = scalar_lea.vmem %s6, 48
    %v1153 = vld [vmem:[%s1152] sm:$0xff]
    %v1154 = vld [vmem:[%s1152 + $0x8] sm:$0xff]
    %v1156 = vsel %vm264, %v1144, 0
    %v1159 = vsel %vm264, %v1147, 0
    %v1162 = vsel %vm264, %v1150, 0
    %1164 = vmatpush.msra.mxu0 0.0
    %1165 = vmatpush.msra.mxu0 0.0
    %1166 = vmatpush.msra.mxu0 0.0
    %1167 = vmatpush.msra.mxu0 0.0
    %1168 = vmatpush.msra.mxu0 0.0
    %1169 = vmatpush.msra.mxu0 0.0
    %1170 = vmatpush.msra.mxu0 0.0
    %1171 = vmatpush.msra.mxu0 0.0
    %1172 = vmatpush.msra.mxu0 0.0
    %1173 = vmatpush.msra.mxu0 0.0
    %1174 = vmatpush.msra.mxu0 0.0
    %1175 = vmatpush.msra.mxu0 0.0
    %1176 = vmatpush.msra.mxu0 0.0
    %1177 = vmatpush.msra.mxu0 0.0
    %1178 = vmatpush.msra.mxu0 %v1154
    %1179 = vmatpush.msra.mxu0 %v1153
    %1180 = vmatmul.f32.gmra.mxu0 %v1156
    %v1181 = vpop.f32.mrf.mxu0
    %v1182 = vadd.f32 0.0, %v1181
    %1183 = vmatmul.f32.gmra.mxu0 %v1159
    %v1184 = vpop.f32.mrf.mxu0
    %v1185 = vadd.f32 0.0, %v1184
    %1186 = vmatmul.f32.gmra.mxu0 %v1162
    %v1187 = vpop.f32.mrf.mxu0
    %v1188 = vadd.f32 0.0, %v1187
    %1189 = vdwg.mxu0
    %v1190 = vadd.f32 %v1110, %v1182
    %v1191 = vadd.f32 %v1111, %v1185
    %v1192 = vadd.f32 %v1112, %v1188
    %s1193 = scalar_lea.vmem %s5, 96
    %v1194 = vld [vmem:[%s1193] sm:$0xff]
    %v1195 = vld [vmem:[%s1193 + $0x8] sm:$0xff]
    %v1196 = vld [vmem:[%s1193 + $0x10] sm:$0x3]
    %v1198 = vsel %vm883, %v1194, 0
    %v1201 = vsel %vm883, %v1195, 0
    %v1204 = vsel %vm883, %v1196, 0
    %1206 = vmatpush.msra.mxu0 0.0
    %1207 = vmatpush.msra.mxu0 0.0
    %1208 = vmatpush.msra.mxu0 0.0
    %1209 = vmatpush.msra.mxu0 0.0
    %1210 = vmatpush.msra.mxu0 0.0
    %1211 = vmatpush.msra.mxu0 0.0
    %1212 = vmatpush.msra.mxu0 0.0
    %1213 = vmatpush.msra.mxu0 0.0
    %1214 = vmatpush.msra.mxu0 0.0
    %1215 = vmatpush.msra.mxu0 0.0
    %1216 = vmatpush.msra.mxu0 0.0
    %1217 = vmatpush.msra.mxu0 0.0
    %1218 = vmatpush.msra.mxu0 %v879
    %1219 = vmatpush.msra.mxu0 %v878
    %1220 = vmatpush.msra.mxu0 %v877
    %1221 = vmatpush.msra.mxu0 %v876
    %1222 = vmatmul.f32.gmra.mxu0 %v1198
    %v1223 = vpop.f32.mrf.mxu0
    %v1224 = vadd.f32 0.0, %v1223
    %1225 = vmatmul.f32.gmra.mxu0 %v1201
    %v1226 = vpop.f32.mrf.mxu0
    %v1227 = vadd.f32 0.0, %v1226
    %1228 = vmatmul.f32.gmra.mxu0 %v1204
    %v1229 = vpop.f32.mrf.mxu0
    %v1230 = vadd.f32 0.0, %v1229
    %1231 = vdwg.mxu0
    %s1232 = scalar_lea.vmem %s6, 64
    %v1233 = vld [vmem:[%s1232] sm:$0xff]
    %v1234 = vld [vmem:[%s1232 + $0x8] sm:$0xff]
    %v1236 = vsel %vm264, %v1224, 0
    %v1239 = vsel %vm264, %v1227, 0
    %v1242 = vsel %vm264, %v1230, 0
    %1244 = vmatpush.msra.mxu0 0.0
    %1245 = vmatpush.msra.mxu0 0.0
    %1246 = vmatpush.msra.mxu0 0.0
    %1247 = vmatpush.msra.mxu0 0.0
    %1248 = vmatpush.msra.mxu0 0.0
    %1249 = vmatpush.msra.mxu0 0.0
    %1250 = vmatpush.msra.mxu0 0.0
    %1251 = vmatpush.msra.mxu0 0.0
    %1252 = vmatpush.msra.mxu0 0.0
    %1253 = vmatpush.msra.mxu0 0.0
    %1254 = vmatpush.msra.mxu0 0.0
    %1255 = vmatpush.msra.mxu0 0.0
    %1256 = vmatpush.msra.mxu0 0.0
    %1257 = vmatpush.msra.mxu0 0.0
    %1258 = vmatpush.msra.mxu0 %v1234
    %1259 = vmatpush.msra.mxu0 %v1233
    %1260 = vmatmul.f32.gmra.mxu0 %v1236
    %v1261 = vpop.f32.mrf.mxu0
    %v1262 = vadd.f32 0.0, %v1261
    %1263 = vmatmul.f32.gmra.mxu0 %v1239
    %v1264 = vpop.f32.mrf.mxu0
    %v1265 = vadd.f32 0.0, %v1264
    %1266 = vmatmul.f32.gmra.mxu0 %v1242
    %v1267 = vpop.f32.mrf.mxu0
    %v1268 = vadd.f32 0.0, %v1267
    %1269 = vdwg.mxu0
    %v1270 = vadd.f32 %v1190, %v1262
    %v1271 = vadd.f32 %v1191, %v1265
    %v1272 = vadd.f32 %v1192, %v1268
    %s1273 = scalar_lea.vmem %s5, 120
    %v1274 = vld [vmem:[%s1273] sm:$0xff]
    %v1275 = vld [vmem:[%s1273 + $0x8] sm:$0xff]
    %v1276 = vld [vmem:[%s1273 + $0x10] sm:$0x3]
    %v1278 = vsel %vm883, %v1274, 0
    %v1281 = vsel %vm883, %v1275, 0
    %v1284 = vsel %vm883, %v1276, 0
    %1286 = vmatpush.msra.mxu0 0.0
    %1287 = vmatpush.msra.mxu0 0.0
    %1288 = vmatpush.msra.mxu0 0.0
    %1289 = vmatpush.msra.mxu0 0.0
    %1290 = vmatpush.msra.mxu0 0.0
    %1291 = vmatpush.msra.mxu0 0.0
    %1292 = vmatpush.msra.mxu0 0.0
    %1293 = vmatpush.msra.mxu0 0.0
    %1294 = vmatpush.msra.mxu0 0.0
    %1295 = vmatpush.msra.mxu0 0.0
    %1296 = vmatpush.msra.mxu0 0.0
    %1297 = vmatpush.msra.mxu0 0.0
    %1298 = vmatpush.msra.mxu0 %v879
    %1299 = vmatpush.msra.mxu0 %v878
    %1300 = vmatpush.msra.mxu0 %v877
    %1301 = vmatpush.msra.mxu0 %v876
    %1302 = vmatmul.f32.gmra.mxu0 %v1278
    %v1303 = vpop.f32.mrf.mxu0
    %v1304 = vadd.f32 0.0, %v1303
    %1305 = vmatmul.f32.gmra.mxu0 %v1281
    %v1306 = vpop.f32.mrf.mxu0
    %v1307 = vadd.f32 0.0, %v1306
    %1308 = vmatmul.f32.gmra.mxu0 %v1284
    %v1309 = vpop.f32.mrf.mxu0
    %v1310 = vadd.f32 0.0, %v1309
    %1311 = vdwg.mxu0
    %s1312 = scalar_lea.vmem %s6, 80
    %v1313 = vld [vmem:[%s1312] sm:$0xff]
    %v1314 = vld [vmem:[%s1312 + $0x8] sm:$0xff]
    %v1316 = vsel %vm264, %v1304, 0
    %v1319 = vsel %vm264, %v1307, 0
    %v1322 = vsel %vm264, %v1310, 0
    %1324 = vmatpush.msra.mxu0 0.0
    %1325 = vmatpush.msra.mxu0 0.0
    %1326 = vmatpush.msra.mxu0 0.0
    %1327 = vmatpush.msra.mxu0 0.0
    %1328 = vmatpush.msra.mxu0 0.0
    %1329 = vmatpush.msra.mxu0 0.0
    %1330 = vmatpush.msra.mxu0 0.0
    %1331 = vmatpush.msra.mxu0 0.0
    %1332 = vmatpush.msra.mxu0 0.0
    %1333 = vmatpush.msra.mxu0 0.0
    %1334 = vmatpush.msra.mxu0 0.0
    %1335 = vmatpush.msra.mxu0 0.0
    %1336 = vmatpush.msra.mxu0 0.0
    %1337 = vmatpush.msra.mxu0 0.0
    %1338 = vmatpush.msra.mxu0 %v1314
    %1339 = vmatpush.msra.mxu0 %v1313
    %1340 = vmatmul.f32.gmra.mxu0 %v1316
    %v1341 = vpop.f32.mrf.mxu0
    %v1342 = vadd.f32 0.0, %v1341
    %1343 = vmatmul.f32.gmra.mxu0 %v1319
    %v1344 = vpop.f32.mrf.mxu0
    %v1345 = vadd.f32 0.0, %v1344
    %1346 = vmatmul.f32.gmra.mxu0 %v1322
    %v1347 = vpop.f32.mrf.mxu0
    %v1348 = vadd.f32 0.0, %v1347
    %1349 = vdwg.mxu0
    %v1350 = vadd.f32 %v1270, %v1342
    %v1351 = vadd.f32 %v1271, %v1345
    %v1352 = vadd.f32 %v1272, %v1348
    %s1353 = scalar_lea.vmem %s5, 144
    %v1354 = vld [vmem:[%s1353] sm:$0xff]
    %v1355 = vld [vmem:[%s1353 + $0x8] sm:$0xff]
    %v1356 = vld [vmem:[%s1353 + $0x10] sm:$0x3]
    %v1358 = vsel %vm883, %v1354, 0
    %v1361 = vsel %vm883, %v1355, 0
    %v1364 = vsel %vm883, %v1356, 0
    %1366 = vmatpush.msra.mxu0 0.0
    %1367 = vmatpush.msra.mxu0 0.0
    %1368 = vmatpush.msra.mxu0 0.0
    %1369 = vmatpush.msra.mxu0 0.0
    %1370 = vmatpush.msra.mxu0 0.0
    %1371 = vmatpush.msra.mxu0 0.0
    %1372 = vmatpush.msra.mxu0 0.0
    %1373 = vmatpush.msra.mxu0 0.0
    %1374 = vmatpush.msra.mxu0 0.0
    %1375 = vmatpush.msra.mxu0 0.0
    %1376 = vmatpush.msra.mxu0 0.0
    %1377 = vmatpush.msra.mxu0 0.0
    %1378 = vmatpush.msra.mxu0 %v879
    %1379 = vmatpush.msra.mxu0 %v878
    %1380 = vmatpush.msra.mxu0 %v877
    %1381 = vmatpush.msra.mxu0 %v876
    %1382 = vmatmul.f32.gmra.mxu0 %v1358
    %v1383 = vpop.f32.mrf.mxu0
    %v1384 = vadd.f32 0.0, %v1383
    %1385 = vmatmul.f32.gmra.mxu0 %v1361
    %v1386 = vpop.f32.mrf.mxu0
    %v1387 = vadd.f32 0.0, %v1386
    %1388 = vmatmul.f32.gmra.mxu0 %v1364
    %v1389 = vpop.f32.mrf.mxu0
    %v1390 = vadd.f32 0.0, %v1389
    %1391 = vdwg.mxu0
    %s1392 = scalar_lea.vmem %s6, 96
    %v1393 = vld [vmem:[%s1392] sm:$0xff]
    %v1394 = vld [vmem:[%s1392 + $0x8] sm:$0xff]
    %v1396 = vsel %vm264, %v1384, 0
    %v1399 = vsel %vm264, %v1387, 0
    %v1402 = vsel %vm264, %v1390, 0
    %1404 = vmatpush.msra.mxu0 0.0
    %1405 = vmatpush.msra.mxu0 0.0
    %1406 = vmatpush.msra.mxu0 0.0
    %1407 = vmatpush.msra.mxu0 0.0
    %1408 = vmatpush.msra.mxu0 0.0
    %1409 = vmatpush.msra.mxu0 0.0
    %1410 = vmatpush.msra.mxu0 0.0
    %1411 = vmatpush.msra.mxu0 0.0
    %1412 = vmatpush.msra.mxu0 0.0
    %1413 = vmatpush.msra.mxu0 0.0
    %1414 = vmatpush.msra.mxu0 0.0
    %1415 = vmatpush.msra.mxu0 0.0
    %1416 = vmatpush.msra.mxu0 0.0
    %1417 = vmatpush.msra.mxu0 0.0
    %1418 = vmatpush.msra.mxu0 %v1394
    %1419 = vmatpush.msra.mxu0 %v1393
    %1420 = vmatmul.f32.gmra.mxu0 %v1396
    %v1421 = vpop.f32.mrf.mxu0
    %v1422 = vadd.f32 0.0, %v1421
    %1423 = vmatmul.f32.gmra.mxu0 %v1399
    %v1424 = vpop.f32.mrf.mxu0
    %v1425 = vadd.f32 0.0, %v1424
    %1426 = vmatmul.f32.gmra.mxu0 %v1402
    %v1427 = vpop.f32.mrf.mxu0
    %v1428 = vadd.f32 0.0, %v1427
    %1429 = vdwg.mxu0
    %v1430 = vadd.f32 %v1350, %v1422
    %v1431 = vadd.f32 %v1351, %v1425
    %v1432 = vadd.f32 %v1352, %v1428
    %s1433 = scalar_lea.vmem %s5, 168
    %v1434 = vld [vmem:[%s1433] sm:$0xff]
    %v1435 = vld [vmem:[%s1433 + $0x8] sm:$0xff]
    %v1436 = vld [vmem:[%s1433 + $0x10] sm:$0x3]
    %v1438 = vsel %vm883, %v1434, 0
    %v1441 = vsel %vm883, %v1435, 0
    %v1444 = vsel %vm883, %v1436, 0
    %1446 = vmatpush.msra.mxu0 0.0
    %1447 = vmatpush.msra.mxu0 0.0
    %1448 = vmatpush.msra.mxu0 0.0
    %1449 = vmatpush.msra.mxu0 0.0
    %1450 = vmatpush.msra.mxu0 0.0
    %1451 = vmatpush.msra.mxu0 0.0
    %1452 = vmatpush.msra.mxu0 0.0
    %1453 = vmatpush.msra.mxu0 0.0
    %1454 = vmatpush.msra.mxu0 0.0
    %1455 = vmatpush.msra.mxu0 0.0
    %1456 = vmatpush.msra.mxu0 0.0
    %1457 = vmatpush.msra.mxu0 0.0
    %1458 = vmatpush.msra.mxu0 %v879
    %1459 = vmatpush.msra.mxu0 %v878
    %1460 = vmatpush.msra.mxu0 %v877
    %1461 = vmatpush.msra.mxu0 %v876
    %1462 = vmatmul.f32.gmra.mxu0 %v1438
    %v1463 = vpop.f32.mrf.mxu0
    %v1464 = vadd.f32 0.0, %v1463
    %1465 = vmatmul.f32.gmra.mxu0 %v1441
    %v1466 = vpop.f32.mrf.mxu0
    %v1467 = vadd.f32 0.0, %v1466
    %1468 = vmatmul.f32.gmra.mxu0 %v1444
    %v1469 = vpop.f32.mrf.mxu0
    %v1470 = vadd.f32 0.0, %v1469
    %1471 = vdwg.mxu0
    %s1472 = scalar_lea.vmem %s6, 112
    %v1473 = vld [vmem:[%s1472] sm:$0xff]
    %v1474 = vld [vmem:[%s1472 + $0x8] sm:$0xff]
    %v1476 = vsel %vm264, %v1464, 0
    %v1479 = vsel %vm264, %v1467, 0
    %v1482 = vsel %vm264, %v1470, 0
    %1484 = vmatpush.msra.mxu0 0.0
    %1485 = vmatpush.msra.mxu0 0.0
    %1486 = vmatpush.msra.mxu0 0.0
    %1487 = vmatpush.msra.mxu0 0.0
    %1488 = vmatpush.msra.mxu0 0.0
    %1489 = vmatpush.msra.mxu0 0.0
    %1490 = vmatpush.msra.mxu0 0.0
    %1491 = vmatpush.msra.mxu0 0.0
    %1492 = vmatpush.msra.mxu0 0.0
    %1493 = vmatpush.msra.mxu0 0.0
    %1494 = vmatpush.msra.mxu0 0.0
    %1495 = vmatpush.msra.mxu0 0.0
    %1496 = vmatpush.msra.mxu0 0.0
    %1497 = vmatpush.msra.mxu0 0.0
    %1498 = vmatpush.msra.mxu0 %v1474
    %1499 = vmatpush.msra.mxu0 %v1473
    %1500 = vmatmul.f32.gmra.mxu0 %v1476
    %v1501 = vpop.f32.mrf.mxu0
    %v1502 = vadd.f32 0.0, %v1501
    %1503 = vmatmul.f32.gmra.mxu0 %v1479
    %v1504 = vpop.f32.mrf.mxu0
    %v1505 = vadd.f32 0.0, %v1504
    %1506 = vmatmul.f32.gmra.mxu0 %v1482
    %v1507 = vpop.f32.mrf.mxu0
    %v1508 = vadd.f32 0.0, %v1507
    %1509 = vdwg.mxu0
    %v1510 = vadd.f32 %v1430, %v1502
    %v1511 = vadd.f32 %v1431, %v1505
    %v1512 = vadd.f32 %v1432, %v1508
    %s1513 = scalar_lea.vmem %s5, 192
    %v1514 = vld [vmem:[%s1513] sm:$0xff]
    %v1515 = vld [vmem:[%s1513 + $0x8] sm:$0xff]
    %v1516 = vld [vmem:[%s1513 + $0x10] sm:$0x3]
    %v1518 = vsel %vm883, %v1514, 0
    %v1521 = vsel %vm883, %v1515, 0
    %v1524 = vsel %vm883, %v1516, 0
    %1526 = vmatpush.msra.mxu0 0.0
    %1527 = vmatpush.msra.mxu0 0.0
    %1528 = vmatpush.msra.mxu0 0.0
    %1529 = vmatpush.msra.mxu0 0.0
    %1530 = vmatpush.msra.mxu0 0.0
    %1531 = vmatpush.msra.mxu0 0.0
    %1532 = vmatpush.msra.mxu0 0.0
    %1533 = vmatpush.msra.mxu0 0.0
    %1534 = vmatpush.msra.mxu0 0.0
    %1535 = vmatpush.msra.mxu0 0.0
    %1536 = vmatpush.msra.mxu0 0.0
    %1537 = vmatpush.msra.mxu0 0.0
    %1538 = vmatpush.msra.mxu0 %v879
    %1539 = vmatpush.msra.mxu0 %v878
    %1540 = vmatpush.msra.mxu0 %v877
    %1541 = vmatpush.msra.mxu0 %v876
    %1542 = vmatmul.f32.gmra.mxu0 %v1518
    %v1543 = vpop.f32.mrf.mxu0
    %v1544 = vadd.f32 0.0, %v1543
    %1545 = vmatmul.f32.gmra.mxu0 %v1521
    %v1546 = vpop.f32.mrf.mxu0
    %v1547 = vadd.f32 0.0, %v1546
    %1548 = vmatmul.f32.gmra.mxu0 %v1524
    %v1549 = vpop.f32.mrf.mxu0
    %v1550 = vadd.f32 0.0, %v1549
    %1551 = vdwg.mxu0
    %s1552 = scalar_lea.vmem %s6, 128
    %v1553 = vld [vmem:[%s1552] sm:$0xff]
    %v1554 = vld [vmem:[%s1552 + $0x8] sm:$0xff]
    %v1556 = vsel %vm264, %v1544, 0
    %v1559 = vsel %vm264, %v1547, 0
    %v1562 = vsel %vm264, %v1550, 0
    %1564 = vmatpush.msra.mxu0 0.0
    %1565 = vmatpush.msra.mxu0 0.0
    %1566 = vmatpush.msra.mxu0 0.0
    %1567 = vmatpush.msra.mxu0 0.0
    %1568 = vmatpush.msra.mxu0 0.0
    %1569 = vmatpush.msra.mxu0 0.0
    %1570 = vmatpush.msra.mxu0 0.0
    %1571 = vmatpush.msra.mxu0 0.0
    %1572 = vmatpush.msra.mxu0 0.0
    %1573 = vmatpush.msra.mxu0 0.0
    %1574 = vmatpush.msra.mxu0 0.0
    %1575 = vmatpush.msra.mxu0 0.0
    %1576 = vmatpush.msra.mxu0 0.0
    %1577 = vmatpush.msra.mxu0 0.0
    %1578 = vmatpush.msra.mxu0 %v1554
    %1579 = vmatpush.msra.mxu0 %v1553
    %1580 = vmatmul.f32.gmra.mxu0 %v1556
    %v1581 = vpop.f32.mrf.mxu0
    %v1582 = vadd.f32 0.0, %v1581
    %1583 = vmatmul.f32.gmra.mxu0 %v1559
    %v1584 = vpop.f32.mrf.mxu0
    %v1585 = vadd.f32 0.0, %v1584
    %1586 = vmatmul.f32.gmra.mxu0 %v1562
    %v1587 = vpop.f32.mrf.mxu0
    %v1588 = vadd.f32 0.0, %v1587
    %1589 = vdwg.mxu0
    %v1590 = vadd.f32 %v1510, %v1582
    %v1591 = vadd.f32 %v1511, %v1585
    %v1592 = vadd.f32 %v1512, %v1588
    %v1593 = vld [vmem:[%s7] sm:$0x7]
    %v1594 = vperm.slane %v1593, 0
    %v1595 = vadd.f32 %v1590, %v1594
    %v1596 = vadd.f32 %v1591, %v1594
    %v1597 = vadd.f32 %v1592, %v1594
    %v1598 = vsel %vm883, %v1595, 0.0
    %v1599 = vsel %vm883, %v1596, 0.0
    %v1600 = vadd.f32 %v1598, %v1599
    %vm1601 = vcmask 254976
    %v1602 = vsel %vm1601, %v1597, 0.0
    %v1603 = vadd.f32 %v1600, %v1602
    %v1604 = vrot.slane %v1603, 4
    %v1605 = vadd.f32 %v1603, %v1604
    %v1606 = vrot.slane %v1605, 2
    %v1607 = vadd.f32 %v1605, %v1606
    %v1608 = vrot.slane %v1607, 1
    %v1609 = vadd.f32 %v1607, %v1608
    %v1610 = vmul.f32 %v1595, %v1595
    %v1611 = vmul.f32 %v1596, %v1596
    %v1612 = vmul.f32 %v1597, %v1597
    %v1613 = vsel %vm883, %v1610, 0.0
    %v1614 = vsel %vm883, %v1611, 0.0
    %v1615 = vadd.f32 %v1613, %v1614
    %v1616 = vsel %vm1601, %v1612, 0.0
    %v1617 = vadd.f32 %v1615, %v1616
    %v1618 = vrot.slane %v1617, 4
    %v1619 = vadd.f32 %v1617, %v1618
    %v1620 = vrot.slane %v1619, 2
    %v1621 = vadd.f32 %v1619, %v1620
    %v1622 = vrot.slane %v1621, 1
    %v1623 = vadd.f32 %v1621, %v1622
    %v1624 = vmul.f32 %v1609, 0.055555556
    %v1625 = vmul.f32 %v1623, 0.055555556
    %v1626 = vmul.f32 %v1624, %v1624
    %v1627 = vsub.f32 %v1625, %v1626
    %v1628 = vmax.f32 %v1627, 0.0
    %v1629 = vsub.f32 %v1595, %v1624
    %v1630 = vsub.f32 %v1596, %v1624
    %v1631 = vsub.f32 %v1597, %v1624
    %v1632 = vperm.slane %v1593, 1
    %v1633 = vmul.f32 %v1632, %v1629
    %v1634 = vmul.f32 %v1632, %v1630
    %v1635 = vmul.f32 %v1632, %v1631
    %v1636 = vadd.f32 %v1628, 1e-05
    %v1637 = vrsqrt.pop %v1636
    %v1638 = vmul.f32 %v1637, %v1636
    %v1639 = vmul.f32 %v1638, %v1637
    %v1640 = vmul.f32 0.5, %v1639
    %v1641 = vsub.f32 1.5, %v1640
    %v1642 = vmul.f32 %v1637, %v1641
    %vm1643 = vweird.f32 %v1636
    %vm1644 = vweird.f32 %v1637
    %vm1645 = vmor %vm1643, %vm1644
    %v1646 = vsel %vm1645, %v1637, %v1642
    %v1647 = vmul.f32 %v1633, %v1646
    %v1648 = vmul.f32 %v1634, %v1646
    %v1649 = vmul.f32 %v1635, %v1646
    %v1650 = vperm.slane %v1593, 2
    %v1651 = vadd.f32 %v1647, %v1650
    %v1652 = vadd.f32 %v1648, %v1650
    %v1653 = vadd.f32 %v1649, %v1650
    %s1654 = sld [smem:[#allocation2 + $0x1]]
    %vm1655 = vcmp.ge.f32.partialorder %v1651, 0.0
    %vm1656 = vcmp.ge.f32.partialorder %v1652, 0.0
    %vm1657 = vcmp.ge.f32.partialorder %v1653, 0.0
    %v1658 = vstv %s1654
    %v1659 = vmul.f32 %v1658, %v1651
    %v1660 = vmul.f32 %v1658, %v1652
    %v1661 = vmul.f32 %v1658, %v1653
    %v1662 = vsel %vm1655, %v1651, %v1659
    %v1663 = vsel %vm1656, %v1652, %v1660
    %v1664 = vsel %vm1657, %v1653, %v1661
    %v1665 = vld [vmem:[%s8] sm:$0x3]
    %vm1666 = vcmask 146432
    %v1668 = vsel %vm1666, %v1665, 0
    %v1671 = vsel %vm569, %v1664, 0
    %1673 = vmatpush.msra.mxu0 0.0
    %1674 = vmatpush.msra.mxu0 0.0
    %1675 = vmatpush.msra.mxu0 0.0
    %1676 = vmatpush.msra.mxu0 0.0
    %1677 = vmatpush.msra.mxu0 0.0
    %1678 = vmatpush.msra.mxu0 0.0
    %1679 = vmatpush.msra.mxu0 0.0
    %1680 = vmatpush.msra.mxu0 0.0
    %1681 = vmatpush.msra.mxu0 0.0
    %1682 = vmatpush.msra.mxu0 0.0
    %1683 = vmatpush.msra.mxu0 0.0
    %1684 = vmatpush.msra.mxu0 0.0
    %1685 = vmatpush.msra.mxu0 0.0
    %1686 = vmatpush.msra.mxu0 %v1671
    %1687 = vmatpush.msra.mxu0 %v1663
    %1688 = vmatpush.msra.mxu0 %v1662
    %1689 = vmatmul.f32.gmra.mxu0 %v1668
    %v1690 = vpop.f32.mrf.mxu0
    %v1691 = vadd.f32 0.0, %v1690
    %1692 = vdwg.mxu0
    %s1693 = scalar_lea.vmem %s8, 2
    %v1694 = vld [vmem:[%s1693] sm:$0x3]
    %v1696 = vsel %vm1666, %v1694, 0
    %1698 = vmatpush.msra.mxu0 0.0
    %1699 = vmatpush.msra.mxu0 0.0
    %1700 = vmatpush.msra.mxu0 0.0
    %1701 = vmatpush.msra.mxu0 0.0
    %1702 = vmatpush.msra.mxu0 0.0
    %1703 = vmatpush.msra.mxu0 0.0
    %1704 = vmatpush.msra.mxu0 0.0
    %1705 = vmatpush.msra.mxu0 0.0
    %1706 = vmatpush.msra.mxu0 0.0
    %1707 = vmatpush.msra.mxu0 0.0
    %1708 = vmatpush.msra.mxu0 0.0
    %1709 = vmatpush.msra.mxu0 0.0
    %1710 = vmatpush.msra.mxu0 0.0
    %1711 = vmatpush.msra.mxu0 %v1671
    %1712 = vmatpush.msra.mxu0 %v1663
    %1713 = vmatpush.msra.mxu0 %v1662
    %1714 = vmatmul.f32.gmra.mxu0 %v1696
    %v1715 = vpop.f32.mrf.mxu0
    %v1716 = vadd.f32 0.0, %v1715
    %1717 = vdwg.mxu0
    %v1718 = vmax.f32 %v1691, %v1716
    %s1719 = scalar_lea.vmem %s8, 4
    %v1720 = vld [vmem:[%s1719] sm:$0x3]
    %v1722 = vsel %vm1666, %v1720, 0
    %1724 = vmatpush.msra.mxu0 0.0
    %1725 = vmatpush.msra.mxu0 0.0
    %1726 = vmatpush.msra.mxu0 0.0
    %1727 = vmatpush.msra.mxu0 0.0
    %1728 = vmatpush.msra.mxu0 0.0
    %1729 = vmatpush.msra.mxu0 0.0
    %1730 = vmatpush.msra.mxu0 0.0
    %1731 = vmatpush.msra.mxu0 0.0
    %1732 = vmatpush.msra.mxu0 0.0
    %1733 = vmatpush.msra.mxu0 0.0
    %1734 = vmatpush.msra.mxu0 0.0
    %1735 = vmatpush.msra.mxu0 0.0
    %1736 = vmatpush.msra.mxu0 0.0
    %1737 = vmatpush.msra.mxu0 %v1671
    %1738 = vmatpush.msra.mxu0 %v1663
    %1739 = vmatpush.msra.mxu0 %v1662
    %1740 = vmatmul.f32.gmra.mxu0 %v1722
    %v1741 = vpop.f32.mrf.mxu0
    %v1742 = vadd.f32 0.0, %v1741
    %1743 = vdwg.mxu0
    %s1744 = scalar_lea.vmem %s8, 6
    %v1745 = vld [vmem:[%s1744] sm:$0x3]
    %v1747 = vsel %vm1666, %v1745, 0
    %1749 = vmatpush.msra.mxu0 0.0
    %1750 = vmatpush.msra.mxu0 0.0
    %1751 = vmatpush.msra.mxu0 0.0
    %1752 = vmatpush.msra.mxu0 0.0
    %1753 = vmatpush.msra.mxu0 0.0
    %1754 = vmatpush.msra.mxu0 0.0
    %1755 = vmatpush.msra.mxu0 0.0
    %1756 = vmatpush.msra.mxu0 0.0
    %1757 = vmatpush.msra.mxu0 0.0
    %1758 = vmatpush.msra.mxu0 0.0
    %1759 = vmatpush.msra.mxu0 0.0
    %1760 = vmatpush.msra.mxu0 0.0
    %1761 = vmatpush.msra.mxu0 0.0
    %1762 = vmatpush.msra.mxu0 %v1671
    %1763 = vmatpush.msra.mxu0 %v1663
    %1764 = vmatpush.msra.mxu0 %v1662
    %1765 = vmatmul.f32.gmra.mxu0 %v1747
    %v1766 = vpop.f32.mrf.mxu0
    %v1767 = vadd.f32 0.0, %v1766
    %1768 = vdwg.mxu0
    %v1769 = vmax.f32 %v1742, %v1767
    %v1770 = vmax.f32 %v1718, %v1769
    %v1771 = vld [vmem:[%s9] sm:$0xff]
    %v1772 = vld [vmem:[%s9 + $0x8] sm:$0xff]
    %v1773 = vld [vmem:[%s9 + $0x10] sm:$0x3]
    %vm1774 = vcmask 15360
    %v1776 = vsel %vm1774, %v1771, 0
    %v1779 = vsel %vm1774, %v1772, 0
    %v1782 = vsel %vm1774, %v1773, 0
    %v1785 = vsel %vm569, %v1770, 0
    %1787 = vmatpush.msra.mxu0 0.0
    %1788 = vmatpush.msra.mxu0 0.0
    %1789 = vmatpush.msra.mxu0 0.0
    %1790 = vmatpush.msra.mxu0 0.0
    %1791 = vmatpush.msra.mxu0 0.0
    %1792 = vmatpush.msra.mxu0 0.0
    %1793 = vmatpush.msra.mxu0 0.0
    %1794 = vmatpush.msra.mxu0 0.0
    %1795 = vmatpush.msra.mxu0 0.0
    %1796 = vmatpush.msra.mxu0 0.0
    %1797 = vmatpush.msra.mxu0 0.0
    %1798 = vmatpush.msra.mxu0 0.0
    %1799 = vmatpush.msra.mxu0 0.0
    %1800 = vmatpush.msra.mxu0 0.0
    %1801 = vmatpush.msra.mxu0 0.0
    %1802 = vmatpush.msra.mxu0 %v1785
    %1803 = vmatmul.f32.gmra.mxu0 %v1776
    %v1804 = vpop.f32.mrf.mxu0
    %v1805 = vadd.f32 0.0, %v1804
    %1806 = vmatmul.f32.gmra.mxu0 %v1779
    %v1807 = vpop.f32.mrf.mxu0
    %v1808 = vadd.f32 0.0, %v1807
    %1809 = vmatmul.f32.gmra.mxu0 %v1782
    %v1810 = vpop.f32.mrf.mxu0
    %v1811 = vadd.f32 0.0, %v1810
    %1812 = vdwg.mxu0
    %v1813 = vld [vmem:[%s10] sm:$0xff]
    %v1814 = vld [vmem:[%s10 + $0x8] sm:$0xff]
    %v1815 = vld [vmem:[%s10 + $0x10] sm:$0xff]
    %v1816 = vld [vmem:[%s10 + $0x18] sm:$0xff]
    %s1817 = scalar_lea.vmem %s9, 24
    %v1818 = vld [vmem:[%s1817] sm:$0xff]
    %v1819 = vld [vmem:[%s1817 + $0x8] sm:$0xff]
    %v1820 = vld [vmem:[%s1817 + $0x10] sm:$0x3]
    %v1822 = vsel %vm1774, %v1818, 0
    %v1825 = vsel %vm1774, %v1819, 0
    %v1828 = vsel %vm1774, %v1820, 0
    %1830 = vmatpush.msra.mxu0 0.0
    %1831 = vmatpush.msra.mxu0 0.0
    %1832 = vmatpush.msra.mxu0 0.0
    %1833 = vmatpush.msra.mxu0 0.0
    %1834 = vmatpush.msra.mxu0 0.0
    %1835 = vmatpush.msra.mxu0 0.0
    %1836 = vmatpush.msra.mxu0 0.0
    %1837 = vmatpush.msra.mxu0 0.0
    %1838 = vmatpush.msra.mxu0 0.0
    %1839 = vmatpush.msra.mxu0 0.0
    %1840 = vmatpush.msra.mxu0 0.0
    %1841 = vmatpush.msra.mxu0 0.0
    %1842 = vmatpush.msra.mxu0 0.0
    %1843 = vmatpush.msra.mxu0 0.0
    %1844 = vmatpush.msra.mxu0 0.0
    %1845 = vmatpush.msra.mxu0 %v1785
    %1846 = vmatmul.f32.gmra.mxu0 %v1822
    %v1847 = vpop.f32.mrf.mxu0
    %v1848 = vadd.f32 0.0, %v1847
    %1849 = vmatmul.f32.gmra.mxu0 %v1825
    %v1850 = vpop.f32.mrf.mxu0
    %v1851 = vadd.f32 0.0, %v1850
    %1852 = vmatmul.f32.gmra.mxu0 %v1828
    %v1853 = vpop.f32.mrf.mxu0
    %v1854 = vadd.f32 0.0, %v1853
    %1855 = vdwg.mxu0
    %s1856 = scalar_lea.vmem %s10, 32
    %v1857 = vld [vmem:[%s1856] sm:$0xff]
    %v1858 = vld [vmem:[%s1856 + $0x8] sm:$0xff]
    %v1859 = vld [vmem:[%s1856 + $0x10] sm:$0xff]
    %v1860 = vld [vmem:[%s1856 + $0x18] sm:$0xff]
    %v1862 = vsel %vm883, %v1848, 0
    %v1865 = vsel %vm883, %v1851, 0
    %v1868 = vsel %vm883, %v1854, 0
    %1870 = vmatpush.msra.mxu0 0.0
    %1871 = vmatpush.msra.mxu0 0.0
    %1872 = vmatpush.msra.mxu0 0.0
    %1873 = vmatpush.msra.mxu0 0.0
    %1874 = vmatpush.msra.mxu0 0.0
    %1875 = vmatpush.msra.mxu0 0.0
    %1876 = vmatpush.msra.mxu0 0.0
    %1877 = vmatpush.msra.mxu0 0.0
    %1878 = vmatpush.msra.mxu0 0.0
    %1879 = vmatpush.msra.mxu0 0.0
    %1880 = vmatpush.msra.mxu0 0.0
    %1881 = vmatpush.msra.mxu0 0.0
    %1882 = vmatpush.msra.mxu0 %v1860
    %1883 = vmatpush.msra.mxu0 %v1859
    %1884 = vmatpush.msra.mxu0 %v1858
    %1885 = vmatpush.msra.mxu0 %v1857
    %1886 = vmatmul.f32.gmra.mxu0 %v1862
    %v1887 = vpop.f32.mrf.mxu0
    %v1888 = vadd.f32 0.0, %v1887
    %1889 = vmatmul.f32.gmra.mxu0 %v1865
    %v1890 = vpop.f32.mrf.mxu0
    %v1891 = vadd.f32 0.0, %v1890
    %1892 = vmatmul.f32.gmra.mxu0 %v1868
    %v1893 = vpop.f32.mrf.mxu0
    %v1894 = vadd.f32 0.0, %v1893
    %1895 = vdwg.mxu0
    %v1897 = vsel %vm883, %v1805, 0
    %v1900 = vsel %vm883, %v1808, 0
    %v1903 = vsel %vm883, %v1811, 0
    %1905 = vmatpush.msra.mxu0 0.0
    %1906 = vmatpush.msra.mxu0 0.0
    %1907 = vmatpush.msra.mxu0 0.0
    %1908 = vmatpush.msra.mxu0 0.0
    %1909 = vmatpush.msra.mxu0 0.0
    %1910 = vmatpush.msra.mxu0 0.0
    %1911 = vmatpush.msra.mxu0 0.0
    %1912 = vmatpush.msra.mxu0 0.0
    %1913 = vmatpush.msra.mxu0 0.0
    %1914 = vmatpush.msra.mxu0 0.0
    %1915 = vmatpush.msra.mxu0 0.0
    %1916 = vmatpush.msra.mxu0 0.0
    %1917 = vmatpush.msra.mxu0 %v1816
    %1918 = vmatpush.msra.mxu0 %v1815
    %1919 = vmatpush.msra.mxu0 %v1814
    %1920 = vmatpush.msra.mxu0 %v1813
    %1921 = vmatmul.f32.gmra.mxu0 %v1897
    %v1922 = vpop.f32.mrf.mxu0
    %v1923 = vadd.f32 %v1888, %v1922
    %1924 = vmatmul.f32.gmra.mxu0 %v1900
    %v1925 = vpop.f32.mrf.mxu0
    %v1926 = vadd.f32 %v1891, %v1925
    %1927 = vmatmul.f32.gmra.mxu0 %v1903
    %v1928 = vpop.f32.mrf.mxu0
    %v1929 = vadd.f32 %v1894, %v1928
    %1930 = vdwg.mxu0
    %s1931 = scalar_lea.vmem %s9, 48
    %v1932 = vld [vmem:[%s1931] sm:$0xff]
    %v1933 = vld [vmem:[%s1931 + $0x8] sm:$0xff]
    %v1934 = vld [vmem:[%s1931 + $0x10] sm:$0x3]
    %v1936 = vsel %vm1774, %v1932, 0
    %v1939 = vsel %vm1774, %v1933, 0
    %v1942 = vsel %vm1774, %v1934, 0
    %1944 = vmatpush.msra.mxu0 0.0
    %1945 = vmatpush.msra.mxu0 0.0
    %1946 = vmatpush.msra.mxu0 0.0
    %1947 = vmatpush.msra.mxu0 0.0
    %1948 = vmatpush.msra.mxu0 0.0
    %1949 = vmatpush.msra.mxu0 0.0
    %1950 = vmatpush.msra.mxu0 0.0
    %1951 = vmatpush.msra.mxu0 0.0
    %1952 = vmatpush.msra.mxu0 0.0
    %1953 = vmatpush.msra.mxu0 0.0
    %1954 = vmatpush.msra.mxu0 0.0
    %1955 = vmatpush.msra.mxu0 0.0
    %1956 = vmatpush.msra.mxu0 0.0
    %1957 = vmatpush.msra.mxu0 0.0
    %1958 = vmatpush.msra.mxu0 0.0
    %1959 = vmatpush.msra.mxu0 %v1785
    %1960 = vmatmul.f32.gmra.mxu0 %v1936
    %v1961 = vpop.f32.mrf.mxu0
    %v1962 = vadd.f32 0.0, %v1961
    %1963 = vmatmul.f32.gmra.mxu0 %v1939
    %v1964 = vpop.f32.mrf.mxu0
    %v1965 = vadd.f32 0.0, %v1964
    %1966 = vmatmul.f32.gmra.mxu0 %v1942
    %v1967 = vpop.f32.mrf.mxu0
    %v1968 = vadd.f32 0.0, %v1967
    %1969 = vdwg.mxu0
    %s1970 = scalar_lea.vmem %s10, 64
    %v1971 = vld [vmem:[%s1970] sm:$0xff]
    %v1972 = vld [vmem:[%s1970 + $0x8] sm:$0xff]
    %v1973 = vld [vmem:[%s1970 + $0x10] sm:$0xff]
    %v1974 = vld [vmem:[%s1970 + $0x18] sm:$0xff]
    %v1976 = vsel %vm883, %v1962, 0
    %v1979 = vsel %vm883, %v1965, 0
    %v1982 = vsel %vm883, %v1968, 0
    %1984 = vmatpush.msra.mxu0 0.0
    %1985 = vmatpush.msra.mxu0 0.0
    %1986 = vmatpush.msra.mxu0 0.0
    %1987 = vmatpush.msra.mxu0 0.0
    %1988 = vmatpush.msra.mxu0 0.0
    %1989 = vmatpush.msra.mxu0 0.0
    %1990 = vmatpush.msra.mxu0 0.0
    %1991 = vmatpush.msra.mxu0 0.0
    %1992 = vmatpush.msra.mxu0 0.0
    %1993 = vmatpush.msra.mxu0 0.0
    %1994 = vmatpush.msra.mxu0 0.0
    %1995 = vmatpush.msra.mxu0 0.0
    %1996 = vmatpush.msra.mxu0 %v1974
    %1997 = vmatpush.msra.mxu0 %v1973
    %1998 = vmatpush.msra.mxu0 %v1972
    %1999 = vmatpush.msra.mxu0 %v1971
    %2000 = vmatmul.f32.gmra.mxu0 %v1976
    %v2001 = vpop.f32.mrf.mxu0
    %v2002 = vadd.f32 0.0, %v2001
    %2003 = vmatmul.f32.gmra.mxu0 %v1979
    %v2004 = vpop.f32.mrf.mxu0
    %v2005 = vadd.f32 0.0, %v2004
    %2006 = vmatmul.f32.gmra.mxu0 %v1982
    %v2007 = vpop.f32.mrf.mxu0
    %v2008 = vadd.f32 0.0, %v2007
    %2009 = vdwg.mxu0
    %v2010 = vadd.f32 %v1923, %v2002
    %v2011 = vadd.f32 %v1926, %v2005
    %v2012 = vadd.f32 %v1929, %v2008
    %s2013 = scalar_lea.vmem %s9, 72
    %v2014 = vld [vmem:[%s2013] sm:$0xff]
    %v2015 = vld [vmem:[%s2013 + $0x8] sm:$0xff]
    %v2016 = vld [vmem:[%s2013 + $0x10] sm:$0x3]
    %v2018 = vsel %vm1774, %v2014, 0
    %v2021 = vsel %vm1774, %v2015, 0
    %v2024 = vsel %vm1774, %v2016, 0
    %2026 = vmatpush.msra.mxu0 0.0
    %2027 = vmatpush.msra.mxu0 0.0
    %2028 = vmatpush.msra.mxu0 0.0
    %2029 = vmatpush.msra.mxu0 0.0
    %2030 = vmatpush.msra.mxu0 0.0
    %2031 = vmatpush.msra.mxu0 0.0
    %2032 = vmatpush.msra.mxu0 0.0
    %2033 = vmatpush.msra.mxu0 0.0
    %2034 = vmatpush.msra.mxu0 0.0
    %2035 = vmatpush.msra.mxu0 0.0
    %2036 = vmatpush.msra.mxu0 0.0
    %2037 = vmatpush.msra.mxu0 0.0
    %2038 = vmatpush.msra.mxu0 0.0
    %2039 = vmatpush.msra.mxu0 0.0
    %2040 = vmatpush.msra.mxu0 0.0
    %2041 = vmatpush.msra.mxu0 %v1785
    %2042 = vmatmul.f32.gmra.mxu0 %v2018
    %v2043 = vpop.f32.mrf.mxu0
    %v2044 = vadd.f32 0.0, %v2043
    %2045 = vmatmul.f32.gmra.mxu0 %v2021
    %v2046 = vpop.f32.mrf.mxu0
    %v2047 = vadd.f32 0.0, %v2046
    %2048 = vmatmul.f32.gmra.mxu0 %v2024
    %v2049 = vpop.f32.mrf.mxu0
    %v2050 = vadd.f32 0.0, %v2049
    %2051 = vdwg.mxu0
    %s2052 = scalar_lea.vmem %s10, 96
    %v2053 = vld [vmem:[%s2052] sm:$0xff]
    %v2054 = vld [vmem:[%s2052 + $0x8] sm:$0xff]
    %v2055 = vld [vmem:[%s2052 + $0x10] sm:$0xff]
    %v2056 = vld [vmem:[%s2052 + $0x18] sm:$0xff]
    %v2058 = vsel %vm883, %v2044, 0
    %v2061 = vsel %vm883, %v2047, 0
    %v2064 = vsel %vm883, %v2050, 0
    %2066 = vmatpush.msra.mxu0 0.0
    %2067 = vmatpush.msra.mxu0 0.0
    %2068 = vmatpush.msra.mxu0 0.0
    %2069 = vmatpush.msra.mxu0 0.0
    %2070 = vmatpush.msra.mxu0 0.0
    %2071 = vmatpush.msra.mxu0 0.0
    %2072 = vmatpush.msra.mxu0 0.0
    %2073 = vmatpush.msra.mxu0 0.0
    %2074 = vmatpush.msra.mxu0 0.0
    %2075 = vmatpush.msra.mxu0 0.0
    %2076 = vmatpush.msra.mxu0 0.0
    %2077 = vmatpush.msra.mxu0 0.0
    %2078 = vmatpush.msra.mxu0 %v2056
    %2079 = vmatpush.msra.mxu0 %v2055
    %2080 = vmatpush.msra.mxu0 %v2054
    %2081 = vmatpush.msra.mxu0 %v2053
    %2082 = vmatmul.f32.gmra.mxu0 %v2058
    %v2083 = vpop.f32.mrf.mxu0
    %v2084 = vadd.f32 0.0, %v2083
    %2085 = vmatmul.f32.gmra.mxu0 %v2061
    %v2086 = vpop.f32.mrf.mxu0
    %v2087 = vadd.f32 0.0, %v2086
    %2088 = vmatmul.f32.gmra.mxu0 %v2064
    %v2089 = vpop.f32.mrf.mxu0
    %v2090 = vadd.f32 0.0, %v2089
    %2091 = vdwg.mxu0
    %v2092 = vadd.f32 %v2010, %v2084
    %v2093 = vadd.f32 %v2011, %v2087
    %v2094 = vadd.f32 %v2012, %v2090
    %s2095 = scalar_lea.vmem %s9, 96
    %v2096 = vld [vmem:[%s2095] sm:$0xff]
    %v2097 = vld [vmem:[%s2095 + $0x8] sm:$0xff]
    %v2098 = vld [vmem:[%s2095 + $0x10] sm:$0x3]
    %v2100 = vsel %vm1774, %v2096, 0
    %v2103 = vsel %vm1774, %v2097, 0
    %v2106 = vsel %vm1774, %v2098, 0
    %2108 = vmatpush.msra.mxu0 0.0
    %2109 = vmatpush.msra.mxu0 0.0
    %2110 = vmatpush.msra.mxu0 0.0
    %2111 = vmatpush.msra.mxu0 0.0
    %2112 = vmatpush.msra.mxu0 0.0
    %2113 = vmatpush.msra.mxu0 0.0
    %2114 = vmatpush.msra.mxu0 0.0
    %2115 = vmatpush.msra.mxu0 0.0
    %2116 = vmatpush.msra.mxu0 0.0
    %2117 = vmatpush.msra.mxu0 0.0
    %2118 = vmatpush.msra.mxu0 0.0
    %2119 = vmatpush.msra.mxu0 0.0
    %2120 = vmatpush.msra.mxu0 0.0
    %2121 = vmatpush.msra.mxu0 0.0
    %2122 = vmatpush.msra.mxu0 0.0
    %2123 = vmatpush.msra.mxu0 %v1785
    %2124 = vmatmul.f32.gmra.mxu0 %v2100
    %v2125 = vpop.f32.mrf.mxu0
    %v2126 = vadd.f32 0.0, %v2125
    %2127 = vmatmul.f32.gmra.mxu0 %v2103
    %v2128 = vpop.f32.mrf.mxu0
    %v2129 = vadd.f32 0.0, %v2128
    %2130 = vmatmul.f32.gmra.mxu0 %v2106
    %v2131 = vpop.f32.mrf.mxu0
    %v2132 = vadd.f32 0.0, %v2131
    %2133 = vdwg.mxu0
    %s2134 = scalar_lea.vmem %s10, 128
    %v2135 = vld [vmem:[%s2134] sm:$0xff]
    %v2136 = vld [vmem:[%s2134 + $0x8] sm:$0xff]
    %v2137 = vld [vmem:[%s2134 + $0x10] sm:$0xff]
    %v2138 = vld [vmem:[%s2134 + $0x18] sm:$0xff]
    %v2140 = vsel %vm883, %v2126, 0
    %v2143 = vsel %vm883, %v2129, 0
    %v2146 = vsel %vm883, %v2132, 0
    %2148 = vmatpush.msra.mxu0 0.0
    %2149 = vmatpush.msra.mxu0 0.0
    %2150 = vmatpush.msra.mxu0 0.0
    %2151 = vmatpush.msra.mxu0 0.0
    %2152 = vmatpush.msra.mxu0 0.0
    %2153 = vmatpush.msra.mxu0 0.0
    %2154 = vmatpush.msra.mxu0 0.0
    %2155 = vmatpush.msra.mxu0 0.0
    %2156 = vmatpush.msra.mxu0 0.0
    %2157 = vmatpush.msra.mxu0 0.0
    %2158 = vmatpush.msra.mxu0 0.0
    %2159 = vmatpush.msra.mxu0 0.0
    %2160 = vmatpush.msra.mxu0 %v2138
    %2161 = vmatpush.msra.mxu0 %v2137
    %2162 = vmatpush.msra.mxu0 %v2136
    %2163 = vmatpush.msra.mxu0 %v2135
    %2164 = vmatmul.f32.gmra.mxu0 %v2140
    %v2165 = vpop.f32.mrf.mxu0
    %v2166 = vadd.f32 0.0, %v2165
    %2167 = vmatmul.f32.gmra.mxu0 %v2143
    %v2168 = vpop.f32.mrf.mxu0
    %v2169 = vadd.f32 0.0, %v2168
    %2170 = vmatmul.f32.gmra.mxu0 %v2146
    %v2171 = vpop.f32.mrf.mxu0
    %v2172 = vadd.f32 0.0, %v2171
    %2173 = vdwg.mxu0
    %v2174 = vadd.f32 %v2092, %v2166
    %v2175 = vadd.f32 %v2093, %v2169
    %v2176 = vadd.f32 %v2094, %v2172
    %s2177 = scalar_lea.vmem %s9, 120
    %v2178 = vld [vmem:[%s2177] sm:$0xff]
    %v2179 = vld [vmem:[%s2177 + $0x8] sm:$0xff]
    %v2180 = vld [vmem:[%s2177 + $0x10] sm:$0x3]
    %v2182 = vsel %vm1774, %v2178, 0
    %v2185 = vsel %vm1774, %v2179, 0
    %v2188 = vsel %vm1774, %v2180, 0
    %2190 = vmatpush.msra.mxu0 0.0
    %2191 = vmatpush.msra.mxu0 0.0
    %2192 = vmatpush.msra.mxu0 0.0
    %2193 = vmatpush.msra.mxu0 0.0
    %2194 = vmatpush.msra.mxu0 0.0
    %2195 = vmatpush.msra.mxu0 0.0
    %2196 = vmatpush.msra.mxu0 0.0
    %2197 = vmatpush.msra.mxu0 0.0
    %2198 = vmatpush.msra.mxu0 0.0
    %2199 = vmatpush.msra.mxu0 0.0
    %2200 = vmatpush.msra.mxu0 0.0
    %2201 = vmatpush.msra.mxu0 0.0
    %2202 = vmatpush.msra.mxu0 0.0
    %2203 = vmatpush.msra.mxu0 0.0
    %2204 = vmatpush.msra.mxu0 0.0
    %2205 = vmatpush.msra.mxu0 %v1785
    %2206 = vmatmul.f32.gmra.mxu0 %v2182
    %v2207 = vpop.f32.mrf.mxu0
    %v2208 = vadd.f32 0.0, %v2207
    %2209 = vmatmul.f32.gmra.mxu0 %v2185
    %v2210 = vpop.f32.mrf.mxu0
    %v2211 = vadd.f32 0.0, %v2210
    %2212 = vmatmul.f32.gmra.mxu0 %v2188
    %v2213 = vpop.f32.mrf.mxu0
    %v2214 = vadd.f32 0.0, %v2213
    %2215 = vdwg.mxu0
    %s2216 = scalar_lea.vmem %s10, 160
    %v2217 = vld [vmem:[%s2216] sm:$0xff]
    %v2218 = vld [vmem:[%s2216 + $0x8] sm:$0xff]
    %v2219 = vld [vmem:[%s2216 + $0x10] sm:$0xff]
    %v2220 = vld [vmem:[%s2216 + $0x18] sm:$0xff]
    %v2222 = vsel %vm883, %v2208, 0
    %v2225 = vsel %vm883, %v2211, 0
    %v2228 = vsel %vm883, %v2214, 0
    %2230 = vmatpush.msra.mxu0 0.0
    %2231 = vmatpush.msra.mxu0 0.0
    %2232 = vmatpush.msra.mxu0 0.0
    %2233 = vmatpush.msra.mxu0 0.0
    %2234 = vmatpush.msra.mxu0 0.0
    %2235 = vmatpush.msra.mxu0 0.0
    %2236 = vmatpush.msra.mxu0 0.0
    %2237 = vmatpush.msra.mxu0 0.0
    %2238 = vmatpush.msra.mxu0 0.0
    %2239 = vmatpush.msra.mxu0 0.0
    %2240 = vmatpush.msra.mxu0 0.0
    %2241 = vmatpush.msra.mxu0 0.0
    %2242 = vmatpush.msra.mxu0 %v2220
    %2243 = vmatpush.msra.mxu0 %v2219
    %2244 = vmatpush.msra.mxu0 %v2218
    %2245 = vmatpush.msra.mxu0 %v2217
    %2246 = vmatmul.f32.gmra.mxu0 %v2222
    %v2247 = vpop.f32.mrf.mxu0
    %v2248 = vadd.f32 0.0, %v2247
    %2249 = vmatmul.f32.gmra.mxu0 %v2225
    %v2250 = vpop.f32.mrf.mxu0
    %v2251 = vadd.f32 0.0, %v2250
    %2252 = vmatmul.f32.gmra.mxu0 %v2228
    %v2253 = vpop.f32.mrf.mxu0
    %v2254 = vadd.f32 0.0, %v2253
    %2255 = vdwg.mxu0
    %v2256 = vadd.f32 %v2174, %v2248
    %v2257 = vadd.f32 %v2175, %v2251
    %v2258 = vadd.f32 %v2176, %v2254
    %s2259 = scalar_lea.vmem %s9, 144
    %v2260 = vld [vmem:[%s2259] sm:$0xff]
    %v2261 = vld [vmem:[%s2259 + $0x8] sm:$0xff]
    %v2262 = vld [vmem:[%s2259 + $0x10] sm:$0x3]
    %v2264 = vsel %vm1774, %v2260, 0
    %v2267 = vsel %vm1774, %v2261, 0
    %v2270 = vsel %vm1774, %v2262, 0
    %2272 = vmatpush.msra.mxu0 0.0
    %2273 = vmatpush.msra.mxu0 0.0
    %2274 = vmatpush.msra.mxu0 0.0
    %2275 = vmatpush.msra.mxu0 0.0
    %2276 = vmatpush.msra.mxu0 0.0
    %2277 = vmatpush.msra.mxu0 0.0
    %2278 = vmatpush.msra.mxu0 0.0
    %2279 = vmatpush.msra.mxu0 0.0
    %2280 = vmatpush.msra.mxu0 0.0
    %2281 = vmatpush.msra.mxu0 0.0
    %2282 = vmatpush.msra.mxu0 0.0
    %2283 = vmatpush.msra.mxu0 0.0
    %2284 = vmatpush.msra.mxu0 0.0
    %2285 = vmatpush.msra.mxu0 0.0
    %2286 = vmatpush.msra.mxu0 0.0
    %2287 = vmatpush.msra.mxu0 %v1785
    %2288 = vmatmul.f32.gmra.mxu0 %v2264
    %v2289 = vpop.f32.mrf.mxu0
    %v2290 = vadd.f32 0.0, %v2289
    %2291 = vmatmul.f32.gmra.mxu0 %v2267
    %v2292 = vpop.f32.mrf.mxu0
    %v2293 = vadd.f32 0.0, %v2292
    %2294 = vmatmul.f32.gmra.mxu0 %v2270
    %v2295 = vpop.f32.mrf.mxu0
    %v2296 = vadd.f32 0.0, %v2295
    %2297 = vdwg.mxu0
    %s2298 = scalar_lea.vmem %s10, 192
    %v2299 = vld [vmem:[%s2298] sm:$0xff]
    %v2300 = vld [vmem:[%s2298 + $0x8] sm:$0xff]
    %v2301 = vld [vmem:[%s2298 + $0x10] sm:$0xff]
    %v2302 = vld [vmem:[%s2298 + $0x18] sm:$0xff]
    %v2304 = vsel %vm883, %v2290, 0
    %v2307 = vsel %vm883, %v2293, 0
    %v2310 = vsel %vm883, %v2296, 0
    %2312 = vmatpush.msra.mxu0 0.0
    %2313 = vmatpush.msra.mxu0 0.0
    %2314 = vmatpush.msra.mxu0 0.0
    %2315 = vmatpush.msra.mxu0 0.0
    %2316 = vmatpush.msra.mxu0 0.0
    %2317 = vmatpush.msra.mxu0 0.0
    %2318 = vmatpush.msra.mxu0 0.0
    %2319 = vmatpush.msra.mxu0 0.0
    %2320 = vmatpush.msra.mxu0 0.0
    %2321 = vmatpush.msra.mxu0 0.0
    %2322 = vmatpush.msra.mxu0 0.0
    %2323 = vmatpush.msra.mxu0 0.0
    %2324 = vmatpush.msra.mxu0 %v2302
    %2325 = vmatpush.msra.mxu0 %v2301
    %2326 = vmatpush.msra.mxu0 %v2300
    %2327 = vmatpush.msra.mxu0 %v2299
    %2328 = vmatmul.f32.gmra.mxu0 %v2304
    %v2329 = vpop.f32.mrf.mxu0
    %v2330 = vadd.f32 0.0, %v2329
    %2331 = vmatmul.f32.gmra.mxu0 %v2307
    %v2332 = vpop.f32.mrf.mxu0
    %v2333 = vadd.f32 0.0, %v2332
    %2334 = vmatmul.f32.gmra.mxu0 %v2310
    %v2335 = vpop.f32.mrf.mxu0
    %v2336 = vadd.f32 0.0, %v2335
    %2337 = vdwg.mxu0
    %v2338 = vadd.f32 %v2256, %v2330
    %v2339 = vadd.f32 %v2257, %v2333
    %v2340 = vadd.f32 %v2258, %v2336
    %s2341 = scalar_lea.vmem %s9, 168
    %v2342 = vld [vmem:[%s2341] sm:$0xff]
    %v2343 = vld [vmem:[%s2341 + $0x8] sm:$0xff]
    %v2344 = vld [vmem:[%s2341 + $0x10] sm:$0x3]
    %v2346 = vsel %vm1774, %v2342, 0
    %v2349 = vsel %vm1774, %v2343, 0
    %v2352 = vsel %vm1774, %v2344, 0
    %2354 = vmatpush.msra.mxu0 0.0
    %2355 = vmatpush.msra.mxu0 0.0
    %2356 = vmatpush.msra.mxu0 0.0
    %2357 = vmatpush.msra.mxu0 0.0
    %2358 = vmatpush.msra.mxu0 0.0
    %2359 = vmatpush.msra.mxu0 0.0
    %2360 = vmatpush.msra.mxu0 0.0
    %2361 = vmatpush.msra.mxu0 0.0
    %2362 = vmatpush.msra.mxu0 0.0
    %2363 = vmatpush.msra.mxu0 0.0
    %2364 = vmatpush.msra.mxu0 0.0
    %2365 = vmatpush.msra.mxu0 0.0
    %2366 = vmatpush.msra.mxu0 0.0
    %2367 = vmatpush.msra.mxu0 0.0
    %2368 = vmatpush.msra.mxu0 0.0
    %2369 = vmatpush.msra.mxu0 %v1785
    %2370 = vmatmul.f32.gmra.mxu0 %v2346
    %v2371 = vpop.f32.mrf.mxu0
    %v2372 = vadd.f32 0.0, %v2371
    %2373 = vmatmul.f32.gmra.mxu0 %v2349
    %v2374 = vpop.f32.mrf.mxu0
    %v2375 = vadd.f32 0.0, %v2374
    %2376 = vmatmul.f32.gmra.mxu0 %v2352
    %v2377 = vpop.f32.mrf.mxu0
    %v2378 = vadd.f32 0.0, %v2377
    %2379 = vdwg.mxu0
    %s2380 = scalar_lea.vmem %s10, 224
    %v2381 = vld [vmem:[%s2380] sm:$0xff]
    %v2382 = vld [vmem:[%s2380 + $0x8] sm:$0xff]
    %v2383 = vld [vmem:[%s2380 + $0x10] sm:$0xff]
    %v2384 = vld [vmem:[%s2380 + $0x18] sm:$0xff]
    %v2386 = vsel %vm883, %v2372, 0
    %v2389 = vsel %vm883, %v2375, 0
    %v2392 = vsel %vm883, %v2378, 0
    %2394 = vmatpush.msra.mxu0 0.0
    %2395 = vmatpush.msra.mxu0 0.0
    %2396 = vmatpush.msra.mxu0 0.0
    %2397 = vmatpush.msra.mxu0 0.0
    %2398 = vmatpush.msra.mxu0 0.0
    %2399 = vmatpush.msra.mxu0 0.0
    %2400 = vmatpush.msra.mxu0 0.0
    %2401 = vmatpush.msra.mxu0 0.0
    %2402 = vmatpush.msra.mxu0 0.0
    %2403 = vmatpush.msra.mxu0 0.0
    %2404 = vmatpush.msra.mxu0 0.0
    %2405 = vmatpush.msra.mxu0 0.0
    %2406 = vmatpush.msra.mxu0 %v2384
    %2407 = vmatpush.msra.mxu0 %v2383
    %2408 = vmatpush.msra.mxu0 %v2382
    %2409 = vmatpush.msra.mxu0 %v2381
    %2410 = vmatmul.f32.gmra.mxu0 %v2386
    %v2411 = vpop.f32.mrf.mxu0
    %v2412 = vadd.f32 0.0, %v2411
    %2413 = vmatmul.f32.gmra.mxu0 %v2389
    %v2414 = vpop.f32.mrf.mxu0
    %v2415 = vadd.f32 0.0, %v2414
    %2416 = vmatmul.f32.gmra.mxu0 %v2392
    %v2417 = vpop.f32.mrf.mxu0
    %v2418 = vadd.f32 0.0, %v2417
    %2419 = vdwg.mxu0
    %v2420 = vadd.f32 %v2338, %v2412
    %v2421 = vadd.f32 %v2339, %v2415
    %v2422 = vadd.f32 %v2340, %v2418
    %s2423 = scalar_lea.vmem %s9, 192
    %v2424 = vld [vmem:[%s2423] sm:$0xff]
    %v2425 = vld [vmem:[%s2423 + $0x8] sm:$0xff]
    %v2426 = vld [vmem:[%s2423 + $0x10] sm:$0x3]
    %v2428 = vsel %vm1774, %v2424, 0
    %v2431 = vsel %vm1774, %v2425, 0
    %v2434 = vsel %vm1774, %v2426, 0
    %2436 = vmatpush.msra.mxu0 0.0
    %2437 = vmatpush.msra.mxu0 0.0
    %2438 = vmatpush.msra.mxu0 0.0
    %2439 = vmatpush.msra.mxu0 0.0
    %2440 = vmatpush.msra.mxu0 0.0
    %2441 = vmatpush.msra.mxu0 0.0
    %2442 = vmatpush.msra.mxu0 0.0
    %2443 = vmatpush.msra.mxu0 0.0
    %2444 = vmatpush.msra.mxu0 0.0
    %2445 = vmatpush.msra.mxu0 0.0
    %2446 = vmatpush.msra.mxu0 0.0
    %2447 = vmatpush.msra.mxu0 0.0
    %2448 = vmatpush.msra.mxu0 0.0
    %2449 = vmatpush.msra.mxu0 0.0
    %2450 = vmatpush.msra.mxu0 0.0
    %2451 = vmatpush.msra.mxu0 %v1785
    %2452 = vmatmul.f32.gmra.mxu0 %v2428
    %v2453 = vpop.f32.mrf.mxu0
    %v2454 = vadd.f32 0.0, %v2453
    %2455 = vmatmul.f32.gmra.mxu0 %v2431
    %v2456 = vpop.f32.mrf.mxu0
    %v2457 = vadd.f32 0.0, %v2456
    %2458 = vmatmul.f32.gmra.mxu0 %v2434
    %v2459 = vpop.f32.mrf.mxu0
    %v2460 = vadd.f32 0.0, %v2459
    %2461 = vdwg.mxu0
    %s2462 = scalar_lea.vmem %s10, 256
    %v2463 = vld [vmem:[%s2462] sm:$0xff]
    %v2464 = vld [vmem:[%s2462 + $0x8] sm:$0xff]
    %v2465 = vld [vmem:[%s2462 + $0x10] sm:$0xff]
    %v2466 = vld [vmem:[%s2462 + $0x18] sm:$0xff]
    %v2468 = vsel %vm883, %v2454, 0
    %v2471 = vsel %vm883, %v2457, 0
    %v2474 = vsel %vm883, %v2460, 0
    %2476 = vmatpush.msra.mxu0 0.0
    %2477 = vmatpush.msra.mxu0 0.0
    %2478 = vmatpush.msra.mxu0 0.0
    %2479 = vmatpush.msra.mxu0 0.0
    %2480 = vmatpush.msra.mxu0 0.0
    %2481 = vmatpush.msra.mxu0 0.0
    %2482 = vmatpush.msra.mxu0 0.0
    %2483 = vmatpush.msra.mxu0 0.0
    %2484 = vmatpush.msra.mxu0 0.0
    %2485 = vmatpush.msra.mxu0 0.0
    %2486 = vmatpush.msra.mxu0 0.0
    %2487 = vmatpush.msra.mxu0 0.0
    %2488 = vmatpush.msra.mxu0 %v2466
    %2489 = vmatpush.msra.mxu0 %v2465
    %2490 = vmatpush.msra.mxu0 %v2464
    %2491 = vmatpush.msra.mxu0 %v2463
    %2492 = vmatmul.f32.gmra.mxu0 %v2468
    %v2493 = vpop.f32.mrf.mxu0
    %v2494 = vadd.f32 0.0, %v2493
    %2495 = vmatmul.f32.gmra.mxu0 %v2471
    %v2496 = vpop.f32.mrf.mxu0
    %v2497 = vadd.f32 0.0, %v2496
    %2498 = vmatmul.f32.gmra.mxu0 %v2474
    %v2499 = vpop.f32.mrf.mxu0
    %v2500 = vadd.f32 0.0, %v2499
    %2501 = vdwg.mxu0
    %v2502 = vadd.f32 %v2420, %v2494
    %v2503 = vadd.f32 %v2421, %v2497
    %v2504 = vadd.f32 %v2422, %v2500
    %v2505 = vld [vmem:[%s11] sm:$0x7]
    %v2506 = vperm.slane %v2505, 0
    %v2507 = vadd.f32 %v2502, %v2506
    %v2508 = vadd.f32 %v2503, %v2506
    %v2509 = vadd.f32 %v2504, %v2506
    %vm2510 = vcmask 523264
    %v2511 = vsel %vm2510, %v2507, 0.0
    %v2512 = vsel %vm2510, %v2508, 0.0
    %v2513 = vadd.f32 %v2511, %v2512
    %vm2514 = vcmask 517120
    %v2515 = vsel %vm2514, %v2509, 0.0
    %v2516 = vadd.f32 %v2513, %v2515
    %v2517 = vrot.slane %v2516, 4
    %v2518 = vadd.f32 %v2516, %v2517
    %v2519 = vrot.slane %v2518, 2
    %v2520 = vadd.f32 %v2518, %v2519
    %v2521 = vrot.slane %v2520, 1
    %v2522 = vadd.f32 %v2520, %v2521
    %v2523 = vmul.f32 %v2507, %v2507
    %v2524 = vmul.f32 %v2508, %v2508
    %v2525 = vmul.f32 %v2509, %v2509
    %v2526 = vsel %vm2510, %v2523, 0.0
    %v2527 = vsel %vm2510, %v2524, 0.0
    %v2528 = vadd.f32 %v2526, %v2527
    %v2529 = vsel %vm2514, %v2525, 0.0
    %v2530 = vadd.f32 %v2528, %v2529
    %v2531 = vrot.slane %v2530, 4
    %v2532 = vadd.f32 %v2530, %v2531
    %v2533 = vrot.slane %v2532, 2
    %v2534 = vadd.f32 %v2532, %v2533
    %v2535 = vrot.slane %v2534, 1
    %v2536 = vadd.f32 %v2534, %v2535
    %v2537 = vmul.f32 %v2522, 0.055555556
    %v2538 = vmul.f32 %v2536, 0.055555556
    %v2539 = vmul.f32 %v2537, %v2537
    %v2540 = vsub.f32 %v2538, %v2539
    %v2541 = vmax.f32 %v2540, 0.0
    %v2542 = vsub.f32 %v2507, %v2537
    %v2543 = vsub.f32 %v2508, %v2537
    %v2544 = vsub.f32 %v2509, %v2537
    %v2545 = vperm.slane %v2505, 1
    %v2546 = vmul.f32 %v2545, %v2542
    %v2547 = vmul.f32 %v2545, %v2543
    %v2548 = vmul.f32 %v2545, %v2544
    %v2549 = vadd.f32 %v2541, 1e-05
    %v2550 = vrsqrt.pop %v2549
    %v2551 = vmul.f32 %v2550, %v2549
    %v2552 = vmul.f32 %v2551, %v2550
    %v2553 = vmul.f32 0.5, %v2552
    %v2554 = vsub.f32 1.5, %v2553
    %v2555 = vmul.f32 %v2550, %v2554
    %vm2556 = vweird.f32 %v2549
    %vm2557 = vweird.f32 %v2550
    %vm2558 = vmor %vm2556, %vm2557
    %v2559 = vsel %vm2558, %v2550, %v2555
    %v2560 = vmul.f32 %v2546, %v2559
    %v2561 = vmul.f32 %v2547, %v2559
    %v2562 = vmul.f32 %v2548, %v2559
    %v2563 = vperm.slane %v2505, 2
    %v2564 = vadd.f32 %v2560, %v2563
    %v2565 = vadd.f32 %v2561, %v2563
    %v2566 = vadd.f32 %v2562, %v2563
    %s2567 = sld [smem:[#allocation2 + $0x2]]
    %vm2568 = vcmp.ge.f32.partialorder %v2564, 0.0
    %vm2569 = vcmp.ge.f32.partialorder %v2565, 0.0
    %vm2570 = vcmp.ge.f32.partialorder %v2566, 0.0
    %v2571 = vstv %s2567
    %v2572 = vmul.f32 %v2571, %v2564
    %v2573 = vmul.f32 %v2571, %v2565
    %v2574 = vmul.f32 %v2571, %v2566
    %v2575 = vsel %vm2568, %v2564, %v2572
    %v2576 = vsel %vm2569, %v2565, %v2573
    %v2577 = vsel %vm2570, %v2566, %v2574
    %v2578 = vld [vmem:[%s12] sm:$0xff]
    %v2579 = vld [vmem:[%s12 + $0x8] sm:$0xff]
    %v2580 = vld [vmem:[%s12 + $0x10] sm:$0xff]
    %v2581 = vld [vmem:[%s12 + $0x18] sm:$0xff]
    %v2582 = vld [vmem:[%s12 + $0x20] sm:$0xff]
    %v2583 = vld [vmem:[%s12 + $0x28] sm:$0xff]
    %v2584 = vld [vmem:[%s12 + $0x30] sm:$0xff]
    %v2585 = vld [vmem:[%s12 + $0x38] sm:$0xff]
    %v2586 = vld [vmem:[%s13] sm:$0x7]
    %v2587 = vperm.slane %v2586, 0
    %v2589 = vsel %vm2510, %v2575, 0
    %v2592 = vsel %vm2510, %v2576, 0
    %v2595 = vsel %vm2510, %v2577, 0
    %2597 = vmatpush.msra.mxu0 0.0
    %2598 = vmatpush.msra.mxu0 0.0
    %2599 = vmatpush.msra.mxu0 0.0
    %2600 = vmatpush.msra.mxu0 0.0
    %2601 = vmatpush.msra.mxu0 0.0
    %2602 = vmatpush.msra.mxu0 0.0
    %2603 = vmatpush.msra.mxu0 0.0
    %2604 = vmatpush.msra.mxu0 0.0
    %2605 = vmatpush.msra.mxu0 %v2585
    %2606 = vmatpush.msra.mxu0 %v2584
    %2607 = vmatpush.msra.mxu0 %v2583
    %2608 = vmatpush.msra.mxu0 %v2582
    %2609 = vmatpush.msra.mxu0 %v2581
    %2610 = vmatpush.msra.mxu0 %v2580
    %2611 = vmatpush.msra.mxu0 %v2579
    %2612 = vmatpush.msra.mxu0 %v2578
    %2613 = vmatmul.f32.gmra.mxu0 %v2589
    %v2614 = vpop.f32.mrf.mxu0
    %v2615 = vadd.f32 %v2587, %v2614
    %2616 = vmatmul.f32.gmra.mxu0 %v2592
    %v2617 = vpop.f32.mrf.mxu0
    %v2618 = vadd.f32 %v2587, %v2617
    %2619 = vmatmul.f32.gmra.mxu0 %v2595
    %v2620 = vpop.f32.mrf.mxu0
    %v2621 = vadd.f32 %v2587, %v2620
    %2622 = vdwg.mxu0
    %v2623 = vsel %vm883, %v2615, 0.0
    %v2624 = vsel %vm883, %v2618, 0.0
    %v2625 = vadd.f32 %v2623, %v2624
    %v2626 = vsel %vm1601, %v2621, 0.0
    %v2627 = vadd.f32 %v2625, %v2626
    %v2628 = vrot.slane %v2627, 4
    %v2629 = vadd.f32 %v2627, %v2628
    %v2630 = vrot.slane %v2629, 2
    %v2631 = vadd.f32 %v2629, %v2630
    %v2632 = vrot.slane %v2631, 1
    %v2633 = vadd.f32 %v2631, %v2632
    %v2634 = vmul.f32 %v2615, %v2615
    %v2635 = vmul.f32 %v2618, %v2618
    %v2636 = vmul.f32 %v2621, %v2621
    %v2637 = vsel %vm883, %v2634, 0.0
    %v2638 = vsel %vm883, %v2635, 0.0
    %v2639 = vadd.f32 %v2637, %v2638
    %v2640 = vsel %vm1601, %v2636, 0.0
    %v2641 = vadd.f32 %v2639, %v2640
    %v2642 = vrot.slane %v2641, 4
    %v2643 = vadd.f32 %v2641, %v2642
    %v2644 = vrot.slane %v2643, 2
    %v2645 = vadd.f32 %v2643, %v2644
    %v2646 = vrot.slane %v2645, 1
    %v2647 = vadd.f32 %v2645, %v2646
    %v2648 = vmul.f32 %v2633, 0.055555556
    %v2649 = vmul.f32 %v2647, 0.055555556
    %v2650 = vmul.f32 %v2648, %v2648
    %v2651 = vsub.f32 %v2649, %v2650
    %v2652 = vmax.f32 %v2651, 0.0
    %v2653 = vsub.f32 %v2615, %v2648
    %v2654 = vsub.f32 %v2618, %v2648
    %v2655 = vsub.f32 %v2621, %v2648
    %v2656 = vperm.slane %v2586, 1
    %v2657 = vmul.f32 %v2656, %v2653
    %v2658 = vmul.f32 %v2656, %v2654
    %v2659 = vmul.f32 %v2656, %v2655
    %v2660 = vadd.f32 %v2652, 1e-05
    %v2661 = vrsqrt.pop %v2660
    %v2662 = vmul.f32 %v2661, %v2660
    %v2663 = vmul.f32 %v2662, %v2661
    %v2664 = vmul.f32 0.5, %v2663
    %v2665 = vsub.f32 1.5, %v2664
    %v2666 = vmul.f32 %v2661, %v2665
    %vm2667 = vweird.f32 %v2660
    %vm2668 = vweird.f32 %v2661
    %vm2669 = vmor %vm2667, %vm2668
    %v2670 = vsel %vm2669, %v2661, %v2666
    %v2671 = vmul.f32 %v2657, %v2670
    %v2672 = vmul.f32 %v2658, %v2670
    %v2673 = vmul.f32 %v2659, %v2670
    %v2674 = vperm.slane %v2586, 2
    %v2675 = vadd.f32 %v2671, %v2674
    %v2676 = vadd.f32 %v2672, %v2674
    %v2677 = vadd.f32 %v2673, %v2674
    %s2678 = sld [smem:[#allocation2 + $0x3]]
    %vm2679 = vcmp.ge.f32.partialorder %v2675, 0.0
    %vm2680 = vcmp.ge.f32.partialorder %v2676, 0.0
    %vm2681 = vcmp.ge.f32.partialorder %v2677, 0.0
    %v2682 = vstv %s2678
    %v2683 = vmul.f32 %v2682, %v2675
    %v2684 = vmul.f32 %v2682, %v2676
    %v2685 = vmul.f32 %v2682, %v2677
    %v2686 = vsel %vm2679, %v2675, %v2683
    %v2687 = vsel %vm2680, %v2676, %v2684
    %v2688 = vsel %vm2681, %v2677, %v2685
    %v2689 = vld [vmem:[%s14] sm:$0xff]
    %v2690 = vld [vmem:[%s14 + $0x8] sm:$0xff]
    %v2691 = vld [vmem:[%s14 + $0x10] sm:$0x3]
    %v2693 = vsel %vm1666, %v2689, 0
    %v2696 = vsel %vm1666, %v2690, 0
    %v2699 = vsel %vm1666, %v2691, 0
    %v2702 = vsel %vm569, %v2688, 0
    %2704 = vmatpush.msra.mxu0 0.0
    %2705 = vmatpush.msra.mxu0 0.0
    %2706 = vmatpush.msra.mxu0 0.0
    %2707 = vmatpush.msra.mxu0 0.0
    %2708 = vmatpush.msra.mxu0 0.0
    %2709 = vmatpush.msra.mxu0 0.0
    %2710 = vmatpush.msra.mxu0 0.0
    %2711 = vmatpush.msra.mxu0 0.0
    %2712 = vmatpush.msra.mxu0 0.0
    %2713 = vmatpush.msra.mxu0 0.0
    %2714 = vmatpush.msra.mxu0 0.0
    %2715 = vmatpush.msra.mxu0 0.0
    %2716 = vmatpush.msra.mxu0 0.0
    %2717 = vmatpush.msra.mxu0 %v2702
    %2718 = vmatpush.msra.mxu0 %v2687
    %2719 = vmatpush.msra.mxu0 %v2686
    %2720 = vmatmul.f32.gmra.mxu0 %v2693
    %v2721 = vpop.f32.mrf.mxu0
    %v2722 = vadd.f32 0.0, %v2721
    %2723 = vmatmul.f32.gmra.mxu0 %v2696
    %v2724 = vpop.f32.mrf.mxu0
    %v2725 = vadd.f32 0.0, %v2724
    %2726 = vmatmul.f32.gmra.mxu0 %v2699
    %v2727 = vpop.f32.mrf.mxu0
    %v2728 = vadd.f32 0.0, %v2727
    %2729 = vdwg.mxu0
    %v2730 = vld [vmem:[%s15] sm:$0xff]
    %v2731 = vld [vmem:[%s15 + $0x8] sm:$0xff]
    %v2732 = vld [vmem:[%s15 + $0x10] sm:$0xff]
    %v2733 = vld [vmem:[%s15 + $0x18] sm:$0xff]
    %s2734 = scalar_lea.vmem %s14, 24
    %v2735 = vld [vmem:[%s2734] sm:$0xff]
    %v2736 = vld [vmem:[%s2734 + $0x8] sm:$0xff]
    %v2737 = vld [vmem:[%s2734 + $0x10] sm:$0x3]
    %v2739 = vsel %vm1666, %v2735, 0
    %v2742 = vsel %vm1666, %v2736, 0
    %v2745 = vsel %vm1666, %v2737, 0
    %2747 = vmatpush.msra.mxu0 0.0
    %2748 = vmatpush.msra.mxu0 0.0
    %2749 = vmatpush.msra.mxu0 0.0
    %2750 = vmatpush.msra.mxu0 0.0
    %2751 = vmatpush.msra.mxu0 0.0
    %2752 = vmatpush.msra.mxu0 0.0
    %2753 = vmatpush.msra.mxu0 0.0
    %2754 = vmatpush.msra.mxu0 0.0
    %2755 = vmatpush.msra.mxu0 0.0
    %2756 = vmatpush.msra.mxu0 0.0
    %2757 = vmatpush.msra.mxu0 0.0
    %2758 = vmatpush.msra.mxu0 0.0
    %2759 = vmatpush.msra.mxu0 0.0
    %2760 = vmatpush.msra.mxu0 %v2702
    %2761 = vmatpush.msra.mxu0 %v2687
    %2762 = vmatpush.msra.mxu0 %v2686
    %2763 = vmatmul.f32.gmra.mxu0 %v2739
    %v2764 = vpop.f32.mrf.mxu0
    %v2765 = vadd.f32 0.0, %v2764
    %2766 = vmatmul.f32.gmra.mxu0 %v2742
    %v2767 = vpop.f32.mrf.mxu0
    %v2768 = vadd.f32 0.0, %v2767
    %2769 = vmatmul.f32.gmra.mxu0 %v2745
    %v2770 = vpop.f32.mrf.mxu0
    %v2771 = vadd.f32 0.0, %v2770
    %2772 = vdwg.mxu0
    %s2773 = scalar_lea.vmem %s15, 32
    %v2774 = vld [vmem:[%s2773] sm:$0xff]
    %v2775 = vld [vmem:[%s2773 + $0x8] sm:$0xff]
    %v2776 = vld [vmem:[%s2773 + $0x10] sm:$0xff]
    %v2777 = vld [vmem:[%s2773 + $0x18] sm:$0xff]
    %v2779 = vsel %vm883, %v2765, 0
    %v2782 = vsel %vm883, %v2768, 0
    %v2785 = vsel %vm883, %v2771, 0
    %2787 = vmatpush.msra.mxu0 0.0
    %2788 = vmatpush.msra.mxu0 0.0
    %2789 = vmatpush.msra.mxu0 0.0
    %2790 = vmatpush.msra.mxu0 0.0
    %2791 = vmatpush.msra.mxu0 0.0
    %2792 = vmatpush.msra.mxu0 0.0
    %2793 = vmatpush.msra.mxu0 0.0
    %2794 = vmatpush.msra.mxu0 0.0
    %2795 = vmatpush.msra.mxu0 0.0
    %2796 = vmatpush.msra.mxu0 0.0
    %2797 = vmatpush.msra.mxu0 0.0
    %2798 = vmatpush.msra.mxu0 0.0
    %2799 = vmatpush.msra.mxu0 %v2777
    %2800 = vmatpush.msra.mxu0 %v2776
    %2801 = vmatpush.msra.mxu0 %v2775
    %2802 = vmatpush.msra.mxu0 %v2774
    %2803 = vmatmul.f32.gmra.mxu0 %v2779
    %v2804 = vpop.f32.mrf.mxu0
    %v2805 = vadd.f32 0.0, %v2804
    %2806 = vmatmul.f32.gmra.mxu0 %v2782
    %v2807 = vpop.f32.mrf.mxu0
    %v2808 = vadd.f32 0.0, %v2807
    %2809 = vmatmul.f32.gmra.mxu0 %v2785
    %v2810 = vpop.f32.mrf.mxu0
    %v2811 = vadd.f32 0.0, %v2810
    %2812 = vdwg.mxu0
    %v2814 = vsel %vm883, %v2722, 0
    %v2817 = vsel %vm883, %v2725, 0
    %v2820 = vsel %vm883, %v2728, 0
    %2822 = vmatpush.msra.mxu0 0.0
    %2823 = vmatpush.msra.mxu0 0.0
    %2824 = vmatpush.msra.mxu0 0.0
    %2825 = vmatpush.msra.mxu0 0.0
    %2826 = vmatpush.msra.mxu0 0.0
    %2827 = vmatpush.msra.mxu0 0.0
    %2828 = vmatpush.msra.mxu0 0.0
    %2829 = vmatpush.msra.mxu0 0.0
    %2830 = vmatpush.msra.mxu0 0.0
    %2831 = vmatpush.msra.mxu0 0.0
    %2832 = vmatpush.msra.mxu0 0.0
    %2833 = vmatpush.msra.mxu0 0.0
    %2834 = vmatpush.msra.mxu0 %v2733
    %2835 = vmatpush.msra.mxu0 %v2732
    %2836 = vmatpush.msra.mxu0 %v2731
    %2837 = vmatpush.msra.mxu0 %v2730
    %2838 = vmatmul.f32.gmra.mxu0 %v2814
    %v2839 = vpop.f32.mrf.mxu0
    %v2840 = vadd.f32 %v2805, %v2839
    %2841 = vmatmul.f32.gmra.mxu0 %v2817
    %v2842 = vpop.f32.mrf.mxu0
    %v2843 = vadd.f32 %v2808, %v2842
    %2844 = vmatmul.f32.gmra.mxu0 %v2820
    %v2845 = vpop.f32.mrf.mxu0
    %v2846 = vadd.f32 %v2811, %v2845
    %2847 = vdwg.mxu0
    %s2848 = scalar_lea.vmem %s14, 48
    %v2849 = vld [vmem:[%s2848] sm:$0xff]
    %v2850 = vld [vmem:[%s2848 + $0x8] sm:$0xff]
    %v2851 = vld [vmem:[%s2848 + $0x10] sm:$0x3]
    %v2853 = vsel %vm1666, %v2849, 0
    %v2856 = vsel %vm1666, %v2850, 0
    %v2859 = vsel %vm1666, %v2851, 0
    %2861 = vmatpush.msra.mxu0 0.0
    %2862 = vmatpush.msra.mxu0 0.0
    %2863 = vmatpush.msra.mxu0 0.0
    %2864 = vmatpush.msra.mxu0 0.0
    %2865 = vmatpush.msra.mxu0 0.0
    %2866 = vmatpush.msra.mxu0 0.0
    %2867 = vmatpush.msra.mxu0 0.0
    %2868 = vmatpush.msra.mxu0 0.0
    %2869 = vmatpush.msra.mxu0 0.0
    %2870 = vmatpush.msra.mxu0 0.0
    %2871 = vmatpush.msra.mxu0 0.0
    %2872 = vmatpush.msra.mxu0 0.0
    %2873 = vmatpush.msra.mxu0 0.0
    %2874 = vmatpush.msra.mxu0 %v2702
    %2875 = vmatpush.msra.mxu0 %v2687
    %2876 = vmatpush.msra.mxu0 %v2686
    %2877 = vmatmul.f32.gmra.mxu0 %v2853
    %v2878 = vpop.f32.mrf.mxu0
    %v2879 = vadd.f32 0.0, %v2878
    %2880 = vmatmul.f32.gmra.mxu0 %v2856
    %v2881 = vpop.f32.mrf.mxu0
    %v2882 = vadd.f32 0.0, %v2881
    %2883 = vmatmul.f32.gmra.mxu0 %v2859
    %v2884 = vpop.f32.mrf.mxu0
    %v2885 = vadd.f32 0.0, %v2884
    %2886 = vdwg.mxu0
    %s2887 = scalar_lea.vmem %s15, 64
    %v2888 = vld [vmem:[%s2887] sm:$0xff]
    %v2889 = vld [vmem:[%s2887 + $0x8] sm:$0xff]
    %v2890 = vld [vmem:[%s2887 + $0x10] sm:$0xff]
    %v2891 = vld [vmem:[%s2887 + $0x18] sm:$0xff]
    %v2893 = vsel %vm883, %v2879, 0
    %v2896 = vsel %vm883, %v2882, 0
    %v2899 = vsel %vm883, %v2885, 0
    %2901 = vmatpush.msra.mxu0 0.0
    %2902 = vmatpush.msra.mxu0 0.0
    %2903 = vmatpush.msra.mxu0 0.0
    %2904 = vmatpush.msra.mxu0 0.0
    %2905 = vmatpush.msra.mxu0 0.0
    %2906 = vmatpush.msra.mxu0 0.0
    %2907 = vmatpush.msra.mxu0 0.0
    %2908 = vmatpush.msra.mxu0 0.0
    %2909 = vmatpush.msra.mxu0 0.0
    %2910 = vmatpush.msra.mxu0 0.0
    %2911 = vmatpush.msra.mxu0 0.0
    %2912 = vmatpush.msra.mxu0 0.0
    %2913 = vmatpush.msra.mxu0 %v2891
    %2914 = vmatpush.msra.mxu0 %v2890
    %2915 = vmatpush.msra.mxu0 %v2889
    %2916 = vmatpush.msra.mxu0 %v2888
    %2917 = vmatmul.f32.gmra.mxu0 %v2893
    %v2918 = vpop.f32.mrf.mxu0
    %v2919 = vadd.f32 0.0, %v2918
    %2920 = vmatmul.f32.gmra.mxu0 %v2896
    %v2921 = vpop.f32.mrf.mxu0
    %v2922 = vadd.f32 0.0, %v2921
    %2923 = vmatmul.f32.gmra.mxu0 %v2899
    %v2924 = vpop.f32.mrf.mxu0
    %v2925 = vadd.f32 0.0, %v2924
    %2926 = vdwg.mxu0
    %v2927 = vadd.f32 %v2840, %v2919
    %v2928 = vadd.f32 %v2843, %v2922
    %v2929 = vadd.f32 %v2846, %v2925
    %s2930 = scalar_lea.vmem %s14, 72
    %v2931 = vld [vmem:[%s2930] sm:$0xff]
    %v2932 = vld [vmem:[%s2930 + $0x8] sm:$0xff]
    %v2933 = vld [vmem:[%s2930 + $0x10] sm:$0x3]
    %v2935 = vsel %vm1666, %v2931, 0
    %v2938 = vsel %vm1666, %v2932, 0
    %v2941 = vsel %vm1666, %v2933, 0
    %2943 = vmatpush.msra.mxu0 0.0
    %2944 = vmatpush.msra.mxu0 0.0
    %2945 = vmatpush.msra.mxu0 0.0
    %2946 = vmatpush.msra.mxu0 0.0
    %2947 = vmatpush.msra.mxu0 0.0
    %2948 = vmatpush.msra.mxu0 0.0
    %2949 = vmatpush.msra.mxu0 0.0
    %2950 = vmatpush.msra.mxu0 0.0
    %2951 = vmatpush.msra.mxu0 0.0
    %2952 = vmatpush.msra.mxu0 0.0
    %2953 = vmatpush.msra.mxu0 0.0
    %2954 = vmatpush.msra.mxu0 0.0
    %2955 = vmatpush.msra.mxu0 0.0
    %2956 = vmatpush.msra.mxu0 %v2702
    %2957 = vmatpush.msra.mxu0 %v2687
    %2958 = vmatpush.msra.mxu0 %v2686
    %2959 = vmatmul.f32.gmra.mxu0 %v2935
    %v2960 = vpop.f32.mrf.mxu0
    %v2961 = vadd.f32 0.0, %v2960
    %2962 = vmatmul.f32.gmra.mxu0 %v2938
    %v2963 = vpop.f32.mrf.mxu0
    %v2964 = vadd.f32 0.0, %v2963
    %2965 = vmatmul.f32.gmra.mxu0 %v2941
    %v2966 = vpop.f32.mrf.mxu0
    %v2967 = vadd.f32 0.0, %v2966
    %2968 = vdwg.mxu0
    %s2969 = scalar_lea.vmem %s15, 96
    %v2970 = vld [vmem:[%s2969] sm:$0xff]
    %v2971 = vld [vmem:[%s2969 + $0x8] sm:$0xff]
    %v2972 = vld [vmem:[%s2969 + $0x10] sm:$0xff]
    %v2973 = vld [vmem:[%s2969 + $0x18] sm:$0xff]
    %v2975 = vsel %vm883, %v2961, 0
    %v2978 = vsel %vm883, %v2964, 0
    %v2981 = vsel %vm883, %v2967, 0
    %2983 = vmatpush.msra.mxu0 0.0
    %2984 = vmatpush.msra.mxu0 0.0
    %2985 = vmatpush.msra.mxu0 0.0
    %2986 = vmatpush.msra.mxu0 0.0
    %2987 = vmatpush.msra.mxu0 0.0
    %2988 = vmatpush.msra.mxu0 0.0
    %2989 = vmatpush.msra.mxu0 0.0
    %2990 = vmatpush.msra.mxu0 0.0
    %2991 = vmatpush.msra.mxu0 0.0
    %2992 = vmatpush.msra.mxu0 0.0
    %2993 = vmatpush.msra.mxu0 0.0
    %2994 = vmatpush.msra.mxu0 0.0
    %2995 = vmatpush.msra.mxu0 %v2973
    %2996 = vmatpush.msra.mxu0 %v2972
    %2997 = vmatpush.msra.mxu0 %v2971
    %2998 = vmatpush.msra.mxu0 %v2970
    %2999 = vmatmul.f32.gmra.mxu0 %v2975
    %v3000 = vpop.f32.mrf.mxu0
    %v3001 = vadd.f32 0.0, %v3000
    %3002 = vmatmul.f32.gmra.mxu0 %v2978
    %v3003 = vpop.f32.mrf.mxu0
    %v3004 = vadd.f32 0.0, %v3003
    %3005 = vmatmul.f32.gmra.mxu0 %v2981
    %v3006 = vpop.f32.mrf.mxu0
    %v3007 = vadd.f32 0.0, %v3006
    %3008 = vdwg.mxu0
    %v3009 = vadd.f32 %v2927, %v3001
    %v3010 = vadd.f32 %v2928, %v3004
    %v3011 = vadd.f32 %v2929, %v3007
    %s3012 = scalar_lea.vmem %s14, 96
    %v3013 = vld [vmem:[%s3012] sm:$0xff]
    %v3014 = vld [vmem:[%s3012 + $0x8] sm:$0xff]
    %v3015 = vld [vmem:[%s3012 + $0x10] sm:$0x3]
    %v3017 = vsel %vm1666, %v3013, 0
    %v3020 = vsel %vm1666, %v3014, 0
    %v3023 = vsel %vm1666, %v3015, 0
    %3025 = vmatpush.msra.mxu0 0.0
    %3026 = vmatpush.msra.mxu0 0.0
    %3027 = vmatpush.msra.mxu0 0.0
    %3028 = vmatpush.msra.mxu0 0.0
    %3029 = vmatpush.msra.mxu0 0.0
    %3030 = vmatpush.msra.mxu0 0.0
    %3031 = vmatpush.msra.mxu0 0.0
    %3032 = vmatpush.msra.mxu0 0.0
    %3033 = vmatpush.msra.mxu0 0.0
    %3034 = vmatpush.msra.mxu0 0.0
    %3035 = vmatpush.msra.mxu0 0.0
    %3036 = vmatpush.msra.mxu0 0.0
    %3037 = vmatpush.msra.mxu0 0.0
    %3038 = vmatpush.msra.mxu0 %v2702
    %3039 = vmatpush.msra.mxu0 %v2687
    %3040 = vmatpush.msra.mxu0 %v2686
    %3041 = vmatmul.f32.gmra.mxu0 %v3017
    %v3042 = vpop.f32.mrf.mxu0
    %v3043 = vadd.f32 0.0, %v3042
    %3044 = vmatmul.f32.gmra.mxu0 %v3020
    %v3045 = vpop.f32.mrf.mxu0
    %v3046 = vadd.f32 0.0, %v3045
    %3047 = vmatmul.f32.gmra.mxu0 %v3023
    %v3048 = vpop.f32.mrf.mxu0
    %v3049 = vadd.f32 0.0, %v3048
    %3050 = vdwg.mxu0
    %s3051 = scalar_lea.vmem %s15, 128
    %v3052 = vld [vmem:[%s3051] sm:$0xff]
    %v3053 = vld [vmem:[%s3051 + $0x8] sm:$0xff]
    %v3054 = vld [vmem:[%s3051 + $0x10] sm:$0xff]
    %v3055 = vld [vmem:[%s3051 + $0x18] sm:$0xff]
    %v3057 = vsel %vm883, %v3043, 0
    %v3060 = vsel %vm883, %v3046, 0
    %v3063 = vsel %vm883, %v3049, 0
    %3065 = vmatpush.msra.mxu0 0.0
    %3066 = vmatpush.msra.mxu0 0.0
    %3067 = vmatpush.msra.mxu0 0.0
    %3068 = vmatpush.msra.mxu0 0.0
    %3069 = vmatpush.msra.mxu0 0.0
    %3070 = vmatpush.msra.mxu0 0.0
    %3071 = vmatpush.msra.mxu0 0.0
    %3072 = vmatpush.msra.mxu0 0.0
    %3073 = vmatpush.msra.mxu0 0.0
    %3074 = vmatpush.msra.mxu0 0.0
    %3075 = vmatpush.msra.mxu0 0.0
    %3076 = vmatpush.msra.mxu0 0.0
    %3077 = vmatpush.msra.mxu0 %v3055
    %3078 = vmatpush.msra.mxu0 %v3054
    %3079 = vmatpush.msra.mxu0 %v3053
    %3080 = vmatpush.msra.mxu0 %v3052
    %3081 = vmatmul.f32.gmra.mxu0 %v3057
    %v3082 = vpop.f32.mrf.mxu0
    %v3083 = vadd.f32 0.0, %v3082
    %3084 = vmatmul.f32.gmra.mxu0 %v3060
    %v3085 = vpop.f32.mrf.mxu0
    %v3086 = vadd.f32 0.0, %v3085
    %3087 = vmatmul.f32.gmra.mxu0 %v3063
    %v3088 = vpop.f32.mrf.mxu0
    %v3089 = vadd.f32 0.0, %v3088
    %3090 = vdwg.mxu0
    %v3091 = vadd.f32 %v3009, %v3083
    %v3092 = vadd.f32 %v3010, %v3086
    %v3093 = vadd.f32 %v3011, %v3089
    %s3094 = scalar_lea.vmem %s14, 120
    %v3095 = vld [vmem:[%s3094] sm:$0xff]
    %v3096 = vld [vmem:[%s3094 + $0x8] sm:$0xff]
    %v3097 = vld [vmem:[%s3094 + $0x10] sm:$0x3]
    %v3099 = vsel %vm1666, %v3095, 0
    %v3102 = vsel %vm1666, %v3096, 0
    %v3105 = vsel %vm1666, %v3097, 0
    %3107 = vmatpush.msra.mxu0 0.0
    %3108 = vmatpush.msra.mxu0 0.0
    %3109 = vmatpush.msra.mxu0 0.0
    %3110 = vmatpush.msra.mxu0 0.0
    %3111 = vmatpush.msra.mxu0 0.0
    %3112 = vmatpush.msra.mxu0 0.0
    %3113 = vmatpush.msra.mxu0 0.0
    %3114 = vmatpush.msra.mxu0 0.0
    %3115 = vmatpush.msra.mxu0 0.0
    %3116 = vmatpush.msra.mxu0 0.0
    %3117 = vmatpush.msra.mxu0 0.0
    %3118 = vmatpush.msra.mxu0 0.0
    %3119 = vmatpush.msra.mxu0 0.0
    %3120 = vmatpush.msra.mxu0 %v2702
    %3121 = vmatpush.msra.mxu0 %v2687
    %3122 = vmatpush.msra.mxu0 %v2686
    %3123 = vmatmul.f32.gmra.mxu0 %v3099
    %v3124 = vpop.f32.mrf.mxu0
    %v3125 = vadd.f32 0.0, %v3124
    %3126 = vmatmul.f32.gmra.mxu0 %v3102
    %v3127 = vpop.f32.mrf.mxu0
    %v3128 = vadd.f32 0.0, %v3127
    %3129 = vmatmul.f32.gmra.mxu0 %v3105
    %v3130 = vpop.f32.mrf.mxu0
    %v3131 = vadd.f32 0.0, %v3130
    %3132 = vdwg.mxu0
    %s3133 = scalar_lea.vmem %s15, 160
    %v3134 = vld [vmem:[%s3133] sm:$0xff]
    %v3135 = vld [vmem:[%s3133 + $0x8] sm:$0xff]
    %v3136 = vld [vmem:[%s3133 + $0x10] sm:$0xff]
    %v3137 = vld [vmem:[%s3133 + $0x18] sm:$0xff]
    %v3139 = vsel %vm883, %v3125, 0
    %v3142 = vsel %vm883, %v3128, 0
    %v3145 = vsel %vm883, %v3131, 0
    %3147 = vmatpush.msra.mxu0 0.0
    %3148 = vmatpush.msra.mxu0 0.0
    %3149 = vmatpush.msra.mxu0 0.0
    %3150 = vmatpush.msra.mxu0 0.0
    %3151 = vmatpush.msra.mxu0 0.0
    %3152 = vmatpush.msra.mxu0 0.0
    %3153 = vmatpush.msra.mxu0 0.0
    %3154 = vmatpush.msra.mxu0 0.0
    %3155 = vmatpush.msra.mxu0 0.0
    %3156 = vmatpush.msra.mxu0 0.0
    %3157 = vmatpush.msra.mxu0 0.0
    %3158 = vmatpush.msra.mxu0 0.0
    %3159 = vmatpush.msra.mxu0 %v3137
    %3160 = vmatpush.msra.mxu0 %v3136
    %3161 = vmatpush.msra.mxu0 %v3135
    %3162 = vmatpush.msra.mxu0 %v3134
    %3163 = vmatmul.f32.gmra.mxu0 %v3139
    %v3164 = vpop.f32.mrf.mxu0
    %v3165 = vadd.f32 0.0, %v3164
    %3166 = vmatmul.f32.gmra.mxu0 %v3142
    %v3167 = vpop.f32.mrf.mxu0
    %v3168 = vadd.f32 0.0, %v3167
    %3169 = vmatmul.f32.gmra.mxu0 %v3145
    %v3170 = vpop.f32.mrf.mxu0
    %v3171 = vadd.f32 0.0, %v3170
    %3172 = vdwg.mxu0
    %v3173 = vadd.f32 %v3091, %v3165
    %v3174 = vadd.f32 %v3092, %v3168
    %v3175 = vadd.f32 %v3093, %v3171
    %s3176 = scalar_lea.vmem %s14, 144
    %v3177 = vld [vmem:[%s3176] sm:$0xff]
    %v3178 = vld [vmem:[%s3176 + $0x8] sm:$0xff]
    %v3179 = vld [vmem:[%s3176 + $0x10] sm:$0x3]
    %v3181 = vsel %vm1666, %v3177, 0
    %v3184 = vsel %vm1666, %v3178, 0
    %v3187 = vsel %vm1666, %v3179, 0
    %3189 = vmatpush.msra.mxu0 0.0
    %3190 = vmatpush.msra.mxu0 0.0
    %3191 = vmatpush.msra.mxu0 0.0
    %3192 = vmatpush.msra.mxu0 0.0
    %3193 = vmatpush.msra.mxu0 0.0
    %3194 = vmatpush.msra.mxu0 0.0
    %3195 = vmatpush.msra.mxu0 0.0
    %3196 = vmatpush.msra.mxu0 0.0
    %3197 = vmatpush.msra.mxu0 0.0
    %3198 = vmatpush.msra.mxu0 0.0
    %3199 = vmatpush.msra.mxu0 0.0
    %3200 = vmatpush.msra.mxu0 0.0
    %3201 = vmatpush.msra.mxu0 0.0
    %3202 = vmatpush.msra.mxu0 %v2702
    %3203 = vmatpush.msra.mxu0 %v2687
    %3204 = vmatpush.msra.mxu0 %v2686
    %3205 = vmatmul.f32.gmra.mxu0 %v3181
    %v3206 = vpop.f32.mrf.mxu0
    %v3207 = vadd.f32 0.0, %v3206
    %3208 = vmatmul.f32.gmra.mxu0 %v3184
    %v3209 = vpop.f32.mrf.mxu0
    %v3210 = vadd.f32 0.0, %v3209
    %3211 = vmatmul.f32.gmra.mxu0 %v3187
    %v3212 = vpop.f32.mrf.mxu0
    %v3213 = vadd.f32 0.0, %v3212
    %3214 = vdwg.mxu0
    %s3215 = scalar_lea.vmem %s15, 192
    %v3216 = vld [vmem:[%s3215] sm:$0xff]
    %v3217 = vld [vmem:[%s3215 + $0x8] sm:$0xff]
    %v3218 = vld [vmem:[%s3215 + $0x10] sm:$0xff]
    %v3219 = vld [vmem:[%s3215 + $0x18] sm:$0xff]
    %v3221 = vsel %vm883, %v3207, 0
    %v3224 = vsel %vm883, %v3210, 0
    %v3227 = vsel %vm883, %v3213, 0
    %3229 = vmatpush.msra.mxu0 0.0
    %3230 = vmatpush.msra.mxu0 0.0
    %3231 = vmatpush.msra.mxu0 0.0
    %3232 = vmatpush.msra.mxu0 0.0
    %3233 = vmatpush.msra.mxu0 0.0
    %3234 = vmatpush.msra.mxu0 0.0
    %3235 = vmatpush.msra.mxu0 0.0
    %3236 = vmatpush.msra.mxu0 0.0
    %3237 = vmatpush.msra.mxu0 0.0
    %3238 = vmatpush.msra.mxu0 0.0
    %3239 = vmatpush.msra.mxu0 0.0
    %3240 = vmatpush.msra.mxu0 0.0
    %3241 = vmatpush.msra.mxu0 %v3219
    %3242 = vmatpush.msra.mxu0 %v3218
    %3243 = vmatpush.msra.mxu0 %v3217
    %3244 = vmatpush.msra.mxu0 %v3216
    %3245 = vmatmul.f32.gmra.mxu0 %v3221
    %v3246 = vpop.f32.mrf.mxu0
    %v3247 = vadd.f32 0.0, %v3246
    %3248 = vmatmul.f32.gmra.mxu0 %v3224
    %v3249 = vpop.f32.mrf.mxu0
    %v3250 = vadd.f32 0.0, %v3249
    %3251 = vmatmul.f32.gmra.mxu0 %v3227
    %v3252 = vpop.f32.mrf.mxu0
    %v3253 = vadd.f32 0.0, %v3252
    %3254 = vdwg.mxu0
    %v3255 = vadd.f32 %v3173, %v3247
    %v3256 = vadd.f32 %v3174, %v3250
    %v3257 = vadd.f32 %v3175, %v3253
    %s3258 = scalar_lea.vmem %s14, 168
    %v3259 = vld [vmem:[%s3258] sm:$0xff]
    %v3260 = vld [vmem:[%s3258 + $0x8] sm:$0xff]
    %v3261 = vld [vmem:[%s3258 + $0x10] sm:$0x3]
    %v3263 = vsel %vm1666, %v3259, 0
    %v3266 = vsel %vm1666, %v3260, 0
    %v3269 = vsel %vm1666, %v3261, 0
    %3271 = vmatpush.msra.mxu0 0.0
    %3272 = vmatpush.msra.mxu0 0.0
    %3273 = vmatpush.msra.mxu0 0.0
    %3274 = vmatpush.msra.mxu0 0.0
    %3275 = vmatpush.msra.mxu0 0.0
    %3276 = vmatpush.msra.mxu0 0.0
    %3277 = vmatpush.msra.mxu0 0.0
    %3278 = vmatpush.msra.mxu0 0.0
    %3279 = vmatpush.msra.mxu0 0.0
    %3280 = vmatpush.msra.mxu0 0.0
    %3281 = vmatpush.msra.mxu0 0.0
    %3282 = vmatpush.msra.mxu0 0.0
    %3283 = vmatpush.msra.mxu0 0.0
    %3284 = vmatpush.msra.mxu0 %v2702
    %3285 = vmatpush.msra.mxu0 %v2687
    %3286 = vmatpush.msra.mxu0 %v2686
    %3287 = vmatmul.f32.gmra.mxu0 %v3263
    %v3288 = vpop.f32.mrf.mxu0
    %v3289 = vadd.f32 0.0, %v3288
    %3290 = vmatmul.f32.gmra.mxu0 %v3266
    %v3291 = vpop.f32.mrf.mxu0
    %v3292 = vadd.f32 0.0, %v3291
    %3293 = vmatmul.f32.gmra.mxu0 %v3269
    %v3294 = vpop.f32.mrf.mxu0
    %v3295 = vadd.f32 0.0, %v3294
    %3296 = vdwg.mxu0
    %s3297 = scalar_lea.vmem %s15, 224
    %v3298 = vld [vmem:[%s3297] sm:$0xff]
    %v3299 = vld [vmem:[%s3297 + $0x8] sm:$0xff]
    %v3300 = vld [vmem:[%s3297 + $0x10] sm:$0xff]
    %v3301 = vld [vmem:[%s3297 + $0x18] sm:$0xff]
    %v3303 = vsel %vm883, %v3289, 0
    %v3306 = vsel %vm883, %v3292, 0
    %v3309 = vsel %vm883, %v3295, 0
    %3311 = vmatpush.msra.mxu0 0.0
    %3312 = vmatpush.msra.mxu0 0.0
    %3313 = vmatpush.msra.mxu0 0.0
    %3314 = vmatpush.msra.mxu0 0.0
    %3315 = vmatpush.msra.mxu0 0.0
    %3316 = vmatpush.msra.mxu0 0.0
    %3317 = vmatpush.msra.mxu0 0.0
    %3318 = vmatpush.msra.mxu0 0.0
    %3319 = vmatpush.msra.mxu0 0.0
    %3320 = vmatpush.msra.mxu0 0.0
    %3321 = vmatpush.msra.mxu0 0.0
    %3322 = vmatpush.msra.mxu0 0.0
    %3323 = vmatpush.msra.mxu0 %v3301
    %3324 = vmatpush.msra.mxu0 %v3300
    %3325 = vmatpush.msra.mxu0 %v3299
    %3326 = vmatpush.msra.mxu0 %v3298
    %3327 = vmatmul.f32.gmra.mxu0 %v3303
    %v3328 = vpop.f32.mrf.mxu0
    %v3329 = vadd.f32 0.0, %v3328
    %3330 = vmatmul.f32.gmra.mxu0 %v3306
    %v3331 = vpop.f32.mrf.mxu0
    %v3332 = vadd.f32 0.0, %v3331
    %3333 = vmatmul.f32.gmra.mxu0 %v3309
    %v3334 = vpop.f32.mrf.mxu0
    %v3335 = vadd.f32 0.0, %v3334
    %3336 = vdwg.mxu0
    %v3337 = vadd.f32 %v3255, %v3329
    %v3338 = vadd.f32 %v3256, %v3332
    %v3339 = vadd.f32 %v3257, %v3335
    %s3340 = scalar_lea.vmem %s14, 192
    %v3341 = vld [vmem:[%s3340] sm:$0xff]
    %v3342 = vld [vmem:[%s3340 + $0x8] sm:$0xff]
    %v3343 = vld [vmem:[%s3340 + $0x10] sm:$0x3]
    %v3345 = vsel %vm1666, %v3341, 0
    %v3348 = vsel %vm1666, %v3342, 0
    %v3351 = vsel %vm1666, %v3343, 0
    %3353 = vmatpush.msra.mxu0 0.0
    %3354 = vmatpush.msra.mxu0 0.0
    %3355 = vmatpush.msra.mxu0 0.0
    %3356 = vmatpush.msra.mxu0 0.0
    %3357 = vmatpush.msra.mxu0 0.0
    %3358 = vmatpush.msra.mxu0 0.0
    %3359 = vmatpush.msra.mxu0 0.0
    %3360 = vmatpush.msra.mxu0 0.0
    %3361 = vmatpush.msra.mxu0 0.0
    %3362 = vmatpush.msra.mxu0 0.0
    %3363 = vmatpush.msra.mxu0 0.0
    %3364 = vmatpush.msra.mxu0 0.0
    %3365 = vmatpush.msra.mxu0 0.0
    %3366 = vmatpush.msra.mxu0 %v2702
    %3367 = vmatpush.msra.mxu0 %v2687
    %3368 = vmatpush.msra.mxu0 %v2686
    %3369 = vmatmul.f32.gmra.mxu0 %v3345
    %v3370 = vpop.f32.mrf.mxu0
    %v3371 = vadd.f32 0.0, %v3370
    %3372 = vmatmul.f32.gmra.mxu0 %v3348
    %v3373 = vpop.f32.mrf.mxu0
    %v3374 = vadd.f32 0.0, %v3373
    %3375 = vmatmul.f32.gmra.mxu0 %v3351
    %v3376 = vpop.f32.mrf.mxu0
    %v3377 = vadd.f32 0.0, %v3376
    %3378 = vdwg.mxu0
    %s3379 = scalar_lea.vmem %s15, 256
    %v3380 = vld [vmem:[%s3379] sm:$0xff]
    %v3381 = vld [vmem:[%s3379 + $0x8] sm:$0xff]
    %v3382 = vld [vmem:[%s3379 + $0x10] sm:$0xff]
    %v3383 = vld [vmem:[%s3379 + $0x18] sm:$0xff]
    %v3385 = vsel %vm883, %v3371, 0
    %v3388 = vsel %vm883, %v3374, 0
    %v3391 = vsel %vm883, %v3377, 0
    %3393 = vmatpush.msra.mxu0 0.0
    %3394 = vmatpush.msra.mxu0 0.0
    %3395 = vmatpush.msra.mxu0 0.0
    %3396 = vmatpush.msra.mxu0 0.0
    %3397 = vmatpush.msra.mxu0 0.0
    %3398 = vmatpush.msra.mxu0 0.0
    %3399 = vmatpush.msra.mxu0 0.0
    %3400 = vmatpush.msra.mxu0 0.0
    %3401 = vmatpush.msra.mxu0 0.0
    %3402 = vmatpush.msra.mxu0 0.0
    %3403 = vmatpush.msra.mxu0 0.0
    %3404 = vmatpush.msra.mxu0 0.0
    %3405 = vmatpush.msra.mxu0 %v3383
    %3406 = vmatpush.msra.mxu0 %v3382
    %3407 = vmatpush.msra.mxu0 %v3381
    %3408 = vmatpush.msra.mxu0 %v3380
    %3409 = vmatmul.f32.gmra.mxu0 %v3385
    %v3410 = vpop.f32.mrf.mxu0
    %v3411 = vadd.f32 0.0, %v3410
    %3412 = vmatmul.f32.gmra.mxu0 %v3388
    %v3413 = vpop.f32.mrf.mxu0
    %v3414 = vadd.f32 0.0, %v3413
    %3415 = vmatmul.f32.gmra.mxu0 %v3391
    %v3416 = vpop.f32.mrf.mxu0
    %v3417 = vadd.f32 0.0, %v3416
    %3418 = vdwg.mxu0
    %v3419 = vadd.f32 %v3337, %v3411
    %v3420 = vadd.f32 %v3338, %v3414
    %v3421 = vadd.f32 %v3339, %v3417
    %v3422 = vld [vmem:[%s16] sm:$0x7]
    %v3423 = vperm.slane %v3422, 0
    %v3424 = vadd.f32 %v3419, %v3423
    %v3425 = vadd.f32 %v3420, %v3423
    %v3426 = vadd.f32 %v3421, %v3423
    %v3427 = vsel %vm2510, %v3424, 0.0
    %v3428 = vsel %vm2510, %v3425, 0.0
    %v3429 = vadd.f32 %v3427, %v3428
    %v3430 = vsel %vm2514, %v3426, 0.0
    %v3431 = vadd.f32 %v3429, %v3430
    %v3432 = vrot.slane %v3431, 4
    %v3433 = vadd.f32 %v3431, %v3432
    %v3434 = vrot.slane %v3433, 2
    %v3435 = vadd.f32 %v3433, %v3434
    %v3436 = vrot.slane %v3435, 1
    %v3437 = vadd.f32 %v3435, %v3436
    %v3438 = vmul.f32 %v3424, %v3424
    %v3439 = vmul.f32 %v3425, %v3425
    %v3440 = vmul.f32 %v3426, %v3426
    %v3441 = vsel %vm2510, %v3438, 0.0
    %v3442 = vsel %vm2510, %v3439, 0.0
    %v3443 = vadd.f32 %v3441, %v3442
    %v3444 = vsel %vm2514, %v3440, 0.0
    %v3445 = vadd.f32 %v3443, %v3444
    %v3446 = vrot.slane %v3445, 4
    %v3447 = vadd.f32 %v3445, %v3446
    %v3448 = vrot.slane %v3447, 2
    %v3449 = vadd.f32 %v3447, %v3448
    %v3450 = vrot.slane %v3449, 1
    %v3451 = vadd.f32 %v3449, %v3450
    %v3452 = vmul.f32 %v3437, 0.055555556
    %v3453 = vmul.f32 %v3451, 0.055555556
    %v3454 = vmul.f32 %v3452, %v3452
    %v3455 = vsub.f32 %v3453, %v3454
    %v3456 = vmax.f32 %v3455, 0.0
    %v3457 = vsub.f32 %v3424, %v3452
    %v3458 = vsub.f32 %v3425, %v3452
    %v3459 = vsub.f32 %v3426, %v3452
    %v3460 = vperm.slane %v3422, 1
    %v3461 = vmul.f32 %v3460, %v3457
    %v3462 = vmul.f32 %v3460, %v3458
    %v3463 = vmul.f32 %v3460, %v3459
    %v3464 = vadd.f32 %v3456, 1e-05
    %v3465 = vrsqrt.pop %v3464
    %v3466 = vmul.f32 %v3465, %v3464
    %v3467 = vmul.f32 %v3466, %v3465
    %v3468 = vmul.f32 0.5, %v3467
    %v3469 = vsub.f32 1.5, %v3468
    %v3470 = vmul.f32 %v3465, %v3469
    %vm3471 = vweird.f32 %v3464
    %vm3472 = vweird.f32 %v3465
    %vm3473 = vmor %vm3471, %vm3472
    %v3474 = vsel %vm3473, %v3465, %v3470
    %v3475 = vmul.f32 %v3461, %v3474
    %v3476 = vmul.f32 %v3462, %v3474
    %v3477 = vmul.f32 %v3463, %v3474
    %v3478 = vperm.slane %v3422, 2
    %v3479 = vadd.f32 %v3475, %v3478
    %v3480 = vadd.f32 %v3476, %v3478
    %v3481 = vadd.f32 %v3477, %v3478
    %s3482 = sld [smem:[#allocation2 + $0x4]]
    %vm3483 = vcmp.ge.f32.partialorder %v3479, 0.0
    %vm3484 = vcmp.ge.f32.partialorder %v3480, 0.0
    %vm3485 = vcmp.ge.f32.partialorder %v3481, 0.0
    %v3486 = vstv %s3482
    %v3487 = vmul.f32 %v3486, %v3479
    %v3488 = vmul.f32 %v3486, %v3480
    %v3489 = vmul.f32 %v3486, %v3481
    %v3490 = vsel %vm3483, %v3479, %v3487
    %v3491 = vsel %vm3484, %v3480, %v3488
    %v3492 = vsel %vm3485, %v3481, %v3489
    %v3493 = vld [vmem:[%s17] sm:$0x3]
    %v3495 = vsel %vm1666, %v3493, 0
    %v3498 = vsel %vm569, %v3492, 0
    %3500 = vmatpush.msra.mxu0 0.0
    %3501 = vmatpush.msra.mxu0 0.0
    %3502 = vmatpush.msra.mxu0 0.0
    %3503 = vmatpush.msra.mxu0 0.0
    %3504 = vmatpush.msra.mxu0 0.0
    %3505 = vmatpush.msra.mxu0 0.0
    %3506 = vmatpush.msra.mxu0 0.0
    %3507 = vmatpush.msra.mxu0 0.0
    %3508 = vmatpush.msra.mxu0 0.0
    %3509 = vmatpush.msra.mxu0 0.0
    %3510 = vmatpush.msra.mxu0 0.0
    %3511 = vmatpush.msra.mxu0 0.0
    %3512 = vmatpush.msra.mxu0 0.0
    %3513 = vmatpush.msra.mxu0 %v3498
    %3514 = vmatpush.msra.mxu0 %v3491
    %3515 = vmatpush.msra.mxu0 %v3490
    %3516 = vmatmul.f32.gmra.mxu0 %v3495
    %v3517 = vpop.f32.mrf.mxu0
    %v3518 = vadd.f32 0.0, %v3517
    %3519 = vdwg.mxu0
    %s3520 = scalar_lea.vmem %s17, 2
    %v3521 = vld [vmem:[%s3520] sm:$0x3]
    %v3523 = vsel %vm1666, %v3521, 0
    %3525 = vmatpush.msra.mxu0 0.0
    %3526 = vmatpush.msra.mxu0 0.0
    %3527 = vmatpush.msra.mxu0 0.0
    %3528 = vmatpush.msra.mxu0 0.0
    %3529 = vmatpush.msra.mxu0 0.0
    %3530 = vmatpush.msra.mxu0 0.0
    %3531 = vmatpush.msra.mxu0 0.0
    %3532 = vmatpush.msra.mxu0 0.0
    %3533 = vmatpush.msra.mxu0 0.0
    %3534 = vmatpush.msra.mxu0 0.0
    %3535 = vmatpush.msra.mxu0 0.0
    %3536 = vmatpush.msra.mxu0 0.0
    %3537 = vmatpush.msra.mxu0 0.0
    %3538 = vmatpush.msra.mxu0 %v3498
    %3539 = vmatpush.msra.mxu0 %v3491
    %3540 = vmatpush.msra.mxu0 %v3490
    %3541 = vmatmul.f32.gmra.mxu0 %v3523
    %v3542 = vpop.f32.mrf.mxu0
    %v3543 = vadd.f32 0.0, %v3542
    %3544 = vdwg.mxu0
    %v3545 = vmax.f32 %v3518, %v3543
    %s3546 = scalar_lea.vmem %s17, 4
    %v3547 = vld [vmem:[%s3546] sm:$0x3]
    %v3549 = vsel %vm1666, %v3547, 0
    %3551 = vmatpush.msra.mxu0 0.0
    %3552 = vmatpush.msra.mxu0 0.0
    %3553 = vmatpush.msra.mxu0 0.0
    %3554 = vmatpush.msra.mxu0 0.0
    %3555 = vmatpush.msra.mxu0 0.0
    %3556 = vmatpush.msra.mxu0 0.0
    %3557 = vmatpush.msra.mxu0 0.0
    %3558 = vmatpush.msra.mxu0 0.0
    %3559 = vmatpush.msra.mxu0 0.0
    %3560 = vmatpush.msra.mxu0 0.0
    %3561 = vmatpush.msra.mxu0 0.0
    %3562 = vmatpush.msra.mxu0 0.0
    %3563 = vmatpush.msra.mxu0 0.0
    %3564 = vmatpush.msra.mxu0 %v3498
    %3565 = vmatpush.msra.mxu0 %v3491
    %3566 = vmatpush.msra.mxu0 %v3490
    %3567 = vmatmul.f32.gmra.mxu0 %v3549
    %v3568 = vpop.f32.mrf.mxu0
    %v3569 = vadd.f32 0.0, %v3568
    %3570 = vdwg.mxu0
    %s3571 = scalar_lea.vmem %s17, 6
    %v3572 = vld [vmem:[%s3571] sm:$0x3]
    %v3574 = vsel %vm1666, %v3572, 0
    %3576 = vmatpush.msra.mxu0 0.0
    %3577 = vmatpush.msra.mxu0 0.0
    %3578 = vmatpush.msra.mxu0 0.0
    %3579 = vmatpush.msra.mxu0 0.0
    %3580 = vmatpush.msra.mxu0 0.0
    %3581 = vmatpush.msra.mxu0 0.0
    %3582 = vmatpush.msra.mxu0 0.0
    %3583 = vmatpush.msra.mxu0 0.0
    %3584 = vmatpush.msra.mxu0 0.0
    %3585 = vmatpush.msra.mxu0 0.0
    %3586 = vmatpush.msra.mxu0 0.0
    %3587 = vmatpush.msra.mxu0 0.0
    %3588 = vmatpush.msra.mxu0 0.0
    %3589 = vmatpush.msra.mxu0 %v3498
    %3590 = vmatpush.msra.mxu0 %v3491
    %3591 = vmatpush.msra.mxu0 %v3490
    %3592 = vmatmul.f32.gmra.mxu0 %v3574
    %v3593 = vpop.f32.mrf.mxu0
    %v3594 = vadd.f32 0.0, %v3593
    %3595 = vdwg.mxu0
    %v3596 = vmax.f32 %v3569, %v3594
    %v3597 = vmax.f32 %v3545, %v3596
    %v3598 = vld [vmem:[%s18] sm:$0x3]
    %v3600 = vsel %vm1774, %v3598, 0
    %v3603 = vsel %vm569, %v3597, 0
    %3605 = vmatpush.msra.mxu0 0.0
    %3606 = vmatpush.msra.mxu0 0.0
    %3607 = vmatpush.msra.mxu0 0.0
    %3608 = vmatpush.msra.mxu0 0.0
    %3609 = vmatpush.msra.mxu0 0.0
    %3610 = vmatpush.msra.mxu0 0.0
    %3611 = vmatpush.msra.mxu0 0.0
    %3612 = vmatpush.msra.mxu0 0.0
    %3613 = vmatpush.msra.mxu0 0.0
    %3614 = vmatpush.msra.mxu0 0.0
    %3615 = vmatpush.msra.mxu0 0.0
    %3616 = vmatpush.msra.mxu0 0.0
    %3617 = vmatpush.msra.mxu0 0.0
    %3618 = vmatpush.msra.mxu0 0.0
    %3619 = vmatpush.msra.mxu0 0.0
    %3620 = vmatpush.msra.mxu0 %v3603
    %3621 = vmatmul.f32.gmra.mxu0 %v3600
    %v3622 = vpop.f32.mrf.mxu0
    %v3623 = vadd.f32 0.0, %v3622
    %3624 = vdwg.mxu0
    %v3625 = vld [vmem:[%s19] sm:$0xff]
    %v3626 = vld [vmem:[%s19 + $0x8] sm:$0xff]
    %v3627 = vld [vmem:[%s19 + $0x10] sm:$0xff]
    %v3628 = vld [vmem:[%s19 + $0x18] sm:$0xff]
    %v3629 = vld [vmem:[%s19 + $0x20] sm:$0xff]
    %v3630 = vld [vmem:[%s19 + $0x28] sm:$0xff]
    %v3631 = vld [vmem:[%s19 + $0x30] sm:$0xff]
    %v3632 = vld [vmem:[%s19 + $0x38] sm:$0xff]
    %v3633 = vld [vmem:[%s20] sm:$0x7]
    %v3634 = vperm.slane %v3633, 0
    %v3636 = vsel %vm2510, %v3623, 0
    %3638 = vmatpush.msra.mxu0 0.0
    %3639 = vmatpush.msra.mxu0 0.0
    %3640 = vmatpush.msra.mxu0 0.0
    %3641 = vmatpush.msra.mxu0 0.0
    %3642 = vmatpush.msra.mxu0 0.0
    %3643 = vmatpush.msra.mxu0 0.0
    %3644 = vmatpush.msra.mxu0 0.0
    %3645 = vmatpush.msra.mxu0 0.0
    %3646 = vmatpush.msra.mxu0 %v3632
    %3647 = vmatpush.msra.mxu0 %v3631
    %3648 = vmatpush.msra.mxu0 %v3630
    %3649 = vmatpush.msra.mxu0 %v3629
    %3650 = vmatpush.msra.mxu0 %v3628
    %3651 = vmatpush.msra.mxu0 %v3627
    %3652 = vmatpush.msra.mxu0 %v3626
    %3653 = vmatpush.msra.mxu0 %v3625
    %3654 = vmatmul.f32.gmra.mxu0 %v3636
    %v3655 = vpop.f32.mrf.mxu0
    %v3656 = vadd.f32 %v3634, %v3655
    %3657 = vdwg.mxu0
    %v3658 = vsel %vm569, %v3656, 0.0
    %v3659 = vrot.slane %v3658, 4
    %v3660 = vadd.f32 %v3658, %v3659
    %v3661 = vrot.slane %v3660, 2
    %v3662 = vadd.f32 %v3660, %v3661
    %v3663 = vrot.slane %v3662, 1
    %v3664 = vadd.f32 %v3662, %v3663
    %v3665 = vmul.f32 %v3656, %v3656
    %v3666 = vsel %vm569, %v3665, 0.0
    %v3667 = vrot.slane %v3666, 4
    %v3668 = vadd.f32 %v3666, %v3667
    %v3669 = vrot.slane %v3668, 2
    %v3670 = vadd.f32 %v3668, %v3669
    %v3671 = vrot.slane %v3670, 1
    %v3672 = vadd.f32 %v3670, %v3671
    %v3673 = vmul.f32 %v3664, 0.5
    %v3674 = vmul.f32 %v3672, 0.5
    %v3675 = vmul.f32 %v3673, %v3673
    %v3676 = vsub.f32 %v3674, %v3675
    %v3677 = vmax.f32 %v3676, 0.0
    %v3678 = vsub.f32 %v3656, %v3673
    %v3679 = vperm.slane %v3633, 1
    %v3680 = vmul.f32 %v3679, %v3678
    %v3681 = vadd.f32 %v3677, 1e-05
    %v3682 = vrsqrt.pop %v3681
    %v3683 = vmul.f32 %v3682, %v3681
    %v3684 = vmul.f32 %v3683, %v3682
    %v3685 = vmul.f32 0.5, %v3684
    %v3686 = vsub.f32 1.5, %v3685
    %v3687 = vmul.f32 %v3682, %v3686
    %vm3688 = vweird.f32 %v3681
    %vm3689 = vweird.f32 %v3682
    %vm3690 = vmor %vm3688, %vm3689
    %v3691 = vsel %vm3690, %v3682, %v3687
    %v3692 = vmul.f32 %v3680, %v3691
    %v3693 = vperm.slane %v3633, 2
    %v3694 = vadd.f32 %v3692, %v3693
    %s3695 = sld [smem:[#allocation2 + $0x5]]
    %vm3696 = vcmp.ge.f32.partialorder %v3694, 0.0
    %v3697 = vstv %s3695
    %v3698 = vmul.f32 %v3697, %v3694
    %v3699 = vsel %vm3696, %v3694, %v3698
    %v3700 = vld [vmem:[%s21] sm:$0xff]
    %v3701 = vld [vmem:[%s21 + $0x8] sm:$0xff]
    %v3702 = vld [vmem:[%s21 + $0x10] sm:$0xff]
    %v3703 = vld [vmem:[%s21 + $0x18] sm:$0xff]
    %v3704 = vld [vmem:[%s21 + $0x20] sm:$0xff]
    %v3705 = vld [vmem:[%s21 + $0x28] sm:$0xff]
    %v3706 = vld [vmem:[%s21 + $0x30] sm:$0xff]
    %v3707 = vld [vmem:[%s21 + $0x38] sm:$0xff]
    %v3708 = vld [vmem:[%s21 + $0x40] sm:$0xff]
    %v3709 = vld [vmem:[%s21 + $0x48] sm:$0xff]
    %v3710 = vld [vmem:[%s21 + $0x50] sm:$0xff]
    %v3711 = vld [vmem:[%s21 + $0x58] sm:$0xff]
    %v3712 = vld [vmem:[%s21 + $0x60] sm:$0xff]
    %v3713 = vld [vmem:[%s21 + $0x68] sm:$0xff]
    %v3714 = vld [vmem:[%s21 + $0x70] sm:$0xff]
    %v3715 = vld [vmem:[%s21 + $0x78] sm:$0xff]
    %v3716 = vld [vmem:[%s22] sm:$0x1]
    %v3718 = vperm.slane %v3716, 0
    %3720 = vmatpush.msra.mxu0 %v3715
    %3721 = vmatpush.msra.mxu0 %v3714
    %3722 = vmatpush.msra.mxu0 %v3713
    %3723 = vmatpush.msra.mxu0 %v3712
    %3724 = vmatpush.msra.mxu0 %v3711
    %3725 = vmatpush.msra.mxu0 %v3710
    %3726 = vmatpush.msra.mxu0 %v3709
    %3727 = vmatpush.msra.mxu0 %v3708
    %3728 = vmatpush.msra.mxu0 %v3707
    %3729 = vmatpush.msra.mxu0 %v3706
    %3730 = vmatpush.msra.mxu0 %v3705
    %3731 = vmatpush.msra.mxu0 %v3704
    %3732 = vmatpush.msra.mxu0 %v3703
    %3733 = vmatpush.msra.mxu0 %v3702
    %3734 = vmatpush.msra.mxu0 %v3701
    %3735 = vmatpush.msra.mxu0 %v3700
    %3736 = vmatmul.f32.gmra.mxu0 %v3699
    %v3737 = vpop.f32.mrf.mxu0
    %v3738 = vadd.f32 %v3718, %v3737
    %3739 = vdwg.mxu0
    %v3740 = vsub.f32 0.0, %v3738
    %v3741 = vmul.f32 %v3740, 1.442695
    %v3742 = vpow.pop %v3741
    %v3743 = vadd.f32 %v3742, 1.0
    %v3744 = vrcp.pop %v3743
    %3745 = vst [vmem:[%s23] sm:$0x3] %v3744
    // Predicated region
    $region98: #{_fused_forward.1} parent=1 // pred_check
      _
    $region99: #{_fused_forward.1} parent=1 // pred_check_branch
      %3747 = sbr.rel (0) target = $region101
    $region100: #{_fused_forward.1} parent=1 // pred_region
      _
    $region101: #{_fused_forward.1} parent=1 // pred_fallthru
      _
    // Predicated region
    $region102: #{_fused_forward.1} parent=1 // pred_check
      _
    $region103: #{_fused_forward.1} parent=1 // pred_check_branch
      %3749 = sbr.rel (0) target = $region105
    $region104: #{_fused_forward.1} parent=1 // pred_region
      _
    $region105: #{_fused_forward.1} parent=1 // pred_fallthru
      _
    %3750 = vsyncpa [#allocation3], 1

</llo_original>
